<compile_context>
chip_gen: v6e
topology: v6e:2x2x1
jax: 0.10.0
libtpu: 0.0.40
codegen_flags: <defaults>
</compile_context>

<pallas_src>
import math
from functools import partial

import jax
import jax.numpy as jnp
from jax.experimental import pallas as pl
from jax.experimental.pallas import tpu as pltpu

LANE = 128          # lane-dense padding target for the decoder (vocab) dim
ROW_TILE = 512      # max row tile for token-major kernels

_VMEM_LIMIT_CACHE = None


# ------------------------------ small helpers ------------------------------

def _round_up(n, m):
    return ((n + m - 1) // m) * m


def _vmem_limit_bytes():
    """Per-generation scoped-VMEM budget (v5e/v6e: 128 MiB phys -> 96 MiB, v7x: 64 -> 48)."""
    global _VMEM_LIMIT_CACHE
    if _VMEM_LIMIT_CACHE is None:
        try:
            cap = int(pltpu.get_tpu_info().vmem_capacity_bytes)
            _VMEM_LIMIT_CACHE = int(max(32 << 20, min((cap * 3) // 4, 96 << 20)))
        except Exception:
            _VMEM_LIMIT_CACHE = 32 << 20
    return _VMEM_LIMIT_CACHE


def _cparams():
    return pltpu.CompilerParams(dimension_semantics=("parallel",),
                                vmem_limit_bytes=_vmem_limit_bytes())


def _pick_tile(rows):
    """Row tile giving >= 2 grid steps whenever possible (both v7x TensorCores busy)."""
    if rows >= 2 * ROW_TILE:
        return ROW_TILE
    return max(8, _round_up((rows + 1) // 2, 8))


def _pad_rows(x, tile):
    rows = x.shape[0]
    rp = _round_up(rows, tile)
    return x if rp == rows else jnp.pad(x, ((0, rp - rows), (0, 0)))


def _group_tile(bh, s, hd, lvl):
    """Dispatcher tile over the B*H group axis: fits VMEM, >= 2 grid steps, divides B*H."""
    per_group = 4 * s * (2 * hd + lvl) * 2          # V in+out + att, double-buffered
    cap = max(1, (8 << 20) // max(per_group, 1))
    g = max(1, min(max(1, bh // 2), cap, bh))
    while bh % g:
        g -= 1
    return g


# ----------------------------- Pallas kernels -------------------------------

def _proj_kernel(x_ref, w_in_ref, w_attn_ref, v_ref, a_ref):
    """linear_in + internal_attention for layer 0: two MXU matmuls, two outputs."""
    x = x_ref[...].astype(w_in_ref.dtype)
    v_ref[...] = jnp.dot(x, w_in_ref[...], preferred_element_type=jnp.float32)
    a_ref[...] = jnp.dot(x, w_attn_ref[...], preferred_element_type=jnp.float32)


def _dispatch_kernel(v_ref, a_ref, m_ref, o_ref, *, levels):
    """Dispatcher accumulation on a (G, S, hd) block (G = batch*head groups):
         V <- V + att[..., i] * roll(V, 2**i, seq)   for i in range(levels)
       The causal mask zeroes att for seq positions < shift, so each level updates only
       rows [shift, S) of the output block in place -- no concatenates, no V temporaries."""
    s = v_ref.shape[1]
    att = a_ref[...] * m_ref[...]              # (G,S,L) * (S,L) causal gate
    o_ref[...] = v_ref[...]                    # V_0
    for i in range(levels):
        shift = 2 ** i
        if shift >= s:                         # shift == s is fully masked; > s breaks
            break
        v = o_ref[...]                         # (G,S,hd) current V
        a = att[:, shift:, i:i + 1]            # (G, S-shift, 1)
        # rolled[t] = V[t - shift]  for t >= shift
        o_ref[:, shift:, :] = v[:, shift:, :] + a * v[:, :s - shift, :]


def _layernorm(x, gamma, beta, eps=1e-5):
    mean = jnp.mean(x, axis=-1, keepdims=True)
    var = jnp.mean((x - mean) ** 2, axis=-1, keepdims=True)
    return (x - mean) * jax.lax.rsqrt(var + eps) * gamma + beta


def _post_body(x_ref, v_ref, w_out_ref, w1_ref, b1_ref, w2_ref, b2_ref,
               g1_ref, be1_ref, g2_ref, be2_ref):
    cdt = w_out_ref.dtype                      # matmul operand dtype (f32 or bf16)
    x = x_ref[...]
    attn_out = jnp.dot(v_ref[...].astype(cdt), w_out_ref[...],
                       preferred_element_type=jnp.float32)
    h = _layernorm(x + attn_out, g1_ref[...], be1_ref[...])
    ff = jnp.dot(h.astype(cdt), w1_ref[...],
                 preferred_element_type=jnp.float32) + b1_ref[...]
    ff = jnp.maximum(ff, 0.0)
    ff = jnp.dot(ff.astype(cdt), w2_ref[...],
                 preferred_element_type=jnp.float32) + b2_ref[...]
    return _layernorm(h + ff, g2_ref[...], be2_ref[...])


def _post_proj_kernel(x_ref, v_ref, w_out_ref, w1_ref, b1_ref, w2_ref, b2_ref,
                      g1_ref, be1_ref, g2_ref, be2_ref, nwi_ref, nwa_ref,
                      y_ref, nv_ref, na_ref):
    """Post block of layer i fused with layer i+1's linear_in / internal_attention."""
    y = _post_body(x_ref, v_ref, w_out_ref, w1_ref, b1_ref, w2_ref, b2_ref,
                   g1_ref, be1_ref, g2_ref, be2_ref)
    y_ref[...] = y
    yc = y.astype(nwi_ref.dtype)
    nv_ref[...] = jnp.dot(yc, nwi_ref[...], preferred_element_type=jnp.float32)
    na_ref[...] = jnp.dot(yc, nwa_ref[...], preferred_element_type=jnp.float32)


def _post_dec_kernel(x_ref, v_ref, w_out_ref, w1_ref, b1_ref, w2_ref, b2_ref,
                     g1_ref, be1_ref, g2_ref, be2_ref, dw_ref, db_ref, o_ref):
    """Final-layer post block fused with the decoder matmul (vocab padded to 128)."""
    y = _post_body(x_ref, v_ref, w_out_ref, w1_ref, b1_ref, w2_ref, b2_ref,
                   g1_ref, be1_ref, g2_ref, be2_ref)
    o_ref[...] = jnp.dot(y.astype(dw_ref.dtype), dw_ref[...],
                         preferred_element_type=jnp.float32) + db_ref[...]


# --------------------------- pallas_call wrappers ---------------------------

def dispatcher_projections(x2d, w_in, w_attn):
    rows, e = x2d.shape
    la = w_attn.shape[1]
    tile = _pick_tile(rows)
    xp = _pad_rows(x2d, tile)
    rp = xp.shape[0]
    wbytes = (w_in.size + w_attn.size) * w_in.dtype.itemsize
    v, a = pl.pallas_call(
        _proj_kernel,
        out_shape=(jax.ShapeDtypeStruct((rp, e), jnp.float32),
                   jax.ShapeDtypeStruct((rp, la), jnp.float32)),
        grid=(rp // tile,),
        in_specs=[pl.BlockSpec((tile, e), lambda i: (i, 0)),
                  pl.BlockSpec((e, e), lambda i: (0, 0)),
                  pl.BlockSpec((e, la), lambda i: (0, 0))],
        out_specs=(pl.BlockSpec((tile, e), lambda i: (i, 0)),
                   pl.BlockSpec((tile, la), lambda i: (i, 0))),
        compiler_params=_cparams(),
        cost_estimate=pl.CostEstimate(flops=2 * rp * e * (e + la),
                                      transcendentals=0,
                                      bytes_accessed=4 * rp * (2 * e + la) + wbytes),
    )(xp, w_in, w_attn)
    if rp != rows:
        v, a = v[:rows], a[:rows]
    return v, a


def dispatcher_accumulate(v3, a3, mask, *, levels):
    bh, s, hd = v3.shape
    lvl = a3.shape[-1]
    g = _group_tile(bh, s, hd, lvl)
    return pl.pallas_call(
        partial(_dispatch_kernel, levels=levels),
        out_shape=jax.ShapeDtypeStruct((bh, s, hd), jnp.float32),
        grid=(bh // g,),
        in_specs=[pl.BlockSpec((g, s, hd), lambda i: (i, 0, 0)),
                  pl.BlockSpec((g, s, lvl), lambda i: (i, 0, 0)),
                  pl.BlockSpec((s, lvl), lambda i: (0, 0))],
        out_specs=pl.BlockSpec((g, s, hd), lambda i: (i, 0, 0)),
        compiler_params=_cparams(),
    )(v3, a3, mask)


def encoder_layer_post(x2d, v2d, p, *, nxt=None, dec=None):
    assert (nxt is None) != (dec is None)
    rows, e = x2d.shape
    nh = p["w1"].shape[1]
    tile = _pick_tile(rows)
    xp = _pad_rows(x2d, tile)
    vp = _pad_rows(v2d, tile)
    rp = xp.shape[0]

    def wspec(shape):
        return pl.BlockSpec(shape, lambda i: (0, 0))

    def rowspec(width):
        return pl.BlockSpec((tile, width), lambda i: (i, 0))

    in_specs = [rowspec(e), rowspec(e),
                wspec((e, e)), wspec((e, nh)), wspec((1, nh)),
                wspec((nh, e)), wspec((1, e)),
                wspec((1, e)), wspec((1, e)), wspec((1, e)), wspec((1, e))]
    args = [xp, vp, p["w_out"], p["w1"], p["b1"], p["w2"], p["b2"],
            p["g1"], p["be1"], p["g2"], p["be2"]]
    flops = 2 * rp * (e * e + 2 * e * nh)

    if dec is not None:
        dw, db = dec
        tp = dw.shape[1]
        in_specs += [wspec((e, tp)), wspec((1, tp))]
        args += [dw, db]
        flops += 2 * rp * e * tp
        out_shape = jax.ShapeDtypeStruct((rp, tp), jnp.float32)
        out_specs = rowspec(tp)
        kernel = _post_dec_kernel
    else:
        la = nxt["w_attn"].shape[1]
        in_specs += [wspec((e, e)), wspec((e, la))]
        args += [nxt["w_in"], nxt["w_attn"]]
        flops += 2 * rp * e * (e + la)
        out_shape = (jax.ShapeDtypeStruct((rp, e), jnp.float32),
                     jax.ShapeDtypeStruct((rp, e), jnp.float32),
                     jax.ShapeDtypeStruct((rp, la), jnp.float32))
        out_specs = (rowspec(e), rowspec(e), rowspec(la))
        kernel = _post_proj_kernel

    out = pl.pallas_call(
        kernel,
        out_shape=out_shape,
        grid=(rp // tile,),
        in_specs=in_specs,
        out_specs=out_specs,
        compiler_params=_cparams(),
        cost_estimate=pl.CostEstimate(flops=flops, transcendentals=2 * rp,
                                      bytes_accessed=4 * rp * 4 * e),
    )(*args)

    if dec is not None:
        return out[:rows] if rp != rows else out
    y, nv, na = out
    if rp != rows:
        y, nv, na = y[:rows], nv[:rows], na[:rows]
    return y, nv, na


# --------------------------------- glue -------------------------------------

def positional_encoding(seq_len, d_model):
    pos = jnp.arange(seq_len, dtype=jnp.float32)[:, None]
    div = jnp.exp(jnp.arange(0, d_model, 2, dtype=jnp.float32)
                  * (-math.log(10000.0) / d_model))
    pe = jnp.zeros((seq_len, d_model), jnp.float32)
    pe = pe.at[:, 0::2].set(jnp.sin(pos * div))
    pe = pe.at[:, 1::2].set(jnp.cos(pos * div))
    return pe                                               # (S, E)


def dispatcher_mask(seq_len, levels):
    s = jnp.arange(seq_len)[:, None]
    shifts = jnp.array([2 ** i for i in range(levels)])[None, :]
    return (s >= shifts).astype(jnp.float32)                # (S, levels)


def dispatcher_model_forward(tokens, params, *, nhead, levels, ntoken):
    # tokens: (S, B) int32 -- PyTorch seq-first convention
    s, b = tokens.shape
    e = params["embedding"].shape[1]
    hd = e // nhead
    rows = b * s
    # Embedding gathered directly in batch-major order (no big activation transpose).
    emb = jnp.take(params["embedding"], tokens.T, axis=0) * math.sqrt(e)   # (B,S,E)
    x2d = (emb + positional_encoding(s, e)[None, :, :]).reshape(rows, e)   # (B*S, E)
    mask = dispatcher_mask(s, levels)                                      # (S, L)

    layers = params["layers"]
    nlayers = len(layers)
    assert nlayers >= 1
    v2d, att2d = dispatcher_projections(x2d, layers[0]["w_in"], layers[0]["w_attn"])

    logits = None
    for li, p in enumerate(layers):
        # Exact PyTorch flat reshapes (rows,E)->(B*H,S,hd) and (rows,H*L)->(B*H,S,L):
        # pure row-major reinterpretations, no transpose copies.
        v3 = v2d.reshape(b * nhead, s, hd)
        a3 = att2d.reshape(b * nhead, s, levels)
        vflat = dispatcher_accumulate(v3, a3, mask, levels=levels).reshape(rows, e)
        if li == nlayers - 1:
            logits = encoder_layer_post(x2d, vflat, p,
                                        dec=(params["dec_w"], params["dec_b"]))
        else:
            x2d, v2d, att2d = encoder_layer_post(x2d, vflat, p, nxt=layers[li + 1])

    out = logits[:, :ntoken].reshape(b, s, ntoken)
    return jnp.transpose(out, (1, 0, 2))                    # (S, B, ntoken)


# --------------------------- deterministic params ---------------------------

def init_params(key, *, ntoken, ninp, nhead, nhid, nlayers, bptt):
    levels = int(math.log(bptt, 2))
    keys = jax.random.split(key, 2 + 6 * nlayers)
    initrange = 0.1
    params = {
        "embedding": jax.random.uniform(keys[0], (ntoken, ninp), jnp.float32,
                                        -initrange, initrange),
        # weights stored as (in, out): kernels compute x @ W  (== x @ W_pt.T)
        "dec_w": jax.random.uniform(keys[1], (ninp, ntoken), jnp.float32,
                                    -initrange, initrange),
        "dec_b": jnp.zeros((1, ntoken), jnp.float32),
        "layers": [],
    }
    k = 2
    for _ in range(nlayers):
        def u(shape, kk):
            bound = 1.0 / math.sqrt(shape[0])
            return jax.random.uniform(kk, shape, jnp.float32, -bound, bound)
        p = {
            "w_in": u((ninp, ninp), keys[k + 0]),
            "w_attn": u((ninp, levels * nhead), keys[k + 1]),
            "w_out": u((ninp, ninp), keys[k + 2]),
            "w1": u((ninp, nhid), keys[k + 3]),
            "b1": jax.random.uniform(keys[k + 4], (1, nhid), jnp.float32,
                                     -1.0 / math.sqrt(ninp), 1.0 / math.sqrt(ninp)),
            "w2": u((nhid, ninp), keys[k + 5]),
            "b2": jnp.zeros((1, ninp), jnp.float32),
            "g1": jnp.ones((1, ninp), jnp.float32),
            "be1": jnp.zeros((1, ninp), jnp.float32),
            "g2": jnp.ones((1, ninp), jnp.float32),
            "be2": jnp.zeros((1, ninp), jnp.float32),
        }
        params["layers"].append(p)
        k += 6
    return params


def pack_params(raw, *, compute_dtype=jnp.float32, lane=LANE):
    """Kernel-side packing: decoder padded to a lane-dense 128-multiple; matmul weight
       matrices cast to `compute_dtype` (bf16 for v5e/v6e/v7x MXU peak; f32 accumulation
       is always used).  Biases / LN params stay f32."""
    ntoken = raw["dec_w"].shape[1]
    tp = _round_up(ntoken, lane)
    packed = {
        "embedding": raw["embedding"],
        "dec_w": jnp.pad(raw["dec_w"], ((0, 0), (0, tp - ntoken))).astype(compute_dtype),
        "dec_b": jnp.pad(raw["dec_b"], ((0, 0), (0, tp - ntoken))),
        "layers": [],
    }
    for p in raw["layers"]:
        q = {
            "w_in": p["w_in"].astype(compute_dtype),
            "w_attn": p["w_attn"].astype(compute_dtype),
            "w_out": p["w_out"].astype(compute_dtype),
            "w1": p["w1"].astype(compute_dtype),
            "w2": p["w2"].astype(compute_dtype),
            "b1": p["b1"], "b2": p["b2"],
            "g1": p["g1"], "be1": p["be1"], "g2": p["g2"], "be2": p["be2"],
        }
        packed["layers"].append(q)
    return packed


# ------------------------------ pure-JAX reference --------------------------

def reference_forward(tokens, params, *, nhead, levels):
    s, b = tokens.shape
    e = params["embedding"].shape[1]
    hd = e // nhead
    with jax.default_matmul_precision("highest"):
        emb = jnp.take(params["embedding"], tokens, axis=0) * math.sqrt(e)
        x = emb + positional_encoding(s, e)[:, None, :]
        x = jnp.transpose(x, (1, 0, 2))
        mask = dispatcher_mask(s, levels)
        for p in params["layers"]:
            x2d = x.reshape(b * s, e)
            v = x2d @ p["w_in"]
            att = (x2d @ p["w_attn"]).reshape(b * nhead, s, levels) * mask
            v = v.reshape(b * nhead, s, hd)
            for i in range(levels):
                shift = 2 ** i
                if shift > s:
                    break
                v = v + att[:, :, i:i + 1] * jnp.roll(v, shift, axis=1)
            h = x2d + v.reshape(b * s, e) @ p["w_out"]
            h = _layernorm(h, p["g1"], p["be1"])
            ff = jnp.maximum(h @ p["w1"] + p["b1"], 0.0) @ p["w2"] + p["b2"]
            h = _layernorm(h + ff, p["g2"], p["be2"])
            x = h.reshape(b, s, e)
        logits = x.reshape(b * s, e) @ params["dec_w"] + params["dec_b"]
        return jnp.transpose(logits.reshape(b, s, -1), (1, 0, 2))


# ----------------------------------- main -----------------------------------

if __name__ == "__main__":
    ntoken, ninp, nhead, nhid, nlayers, bptt = 50, 32, 4, 64, 2, 8
    levels = int(math.log(bptt, 2))          # 3 -> shifts 1, 2, 4
    S, B = bptt, 2

    key = jax.random.PRNGKey(0)
    pkey, tkey = jax.random.split(key)
    raw = init_params(pkey, ntoken=ntoken, ninp=ninp, nhead=nhead,
                      nhid=nhid, nlayers=nlayers, bptt=bptt)
    tokens = jax.random.randint(tkey, (S, B), 0, ntoken, dtype=jnp.int32)

    ref = reference_forward(tokens, raw, nhead=nhead, levels=levels)
    fwd = jax.jit(partial(dispatcher_model_forward, nhead=nhead,
                          levels=levels, ntoken=ntoken))

    # f32 matmul-operand path: strict parity with the PyTorch-equivalent reference.
    params32 = pack_params(raw, compute_dtype=jnp.float32)
    out32 = jax.block_until_ready(fwd(tokens, params32))
    assert out32.shape == (S, B, ntoken), out32.shape
    err32 = float(jnp.max(jnp.abs(out32 - ref)))
    assert err32 < 2e-3, f"f32 max abs err too large: {err32}"

    # bf16 matmul-operand path (perf-feedback item): f32 accumulation, looser smoke check.
    params_bf16 = pack_params(raw, compute_dtype=jnp.bfloat16)
    out_bf16 = jax.block_until_ready(fwd(tokens, params_bf16))
    err_bf16 = float(jnp.max(jnp.abs(out_bf16 - ref)))
    assert err_bf16 < 1.5e-1, f"bf16 max abs err too large: {err_bf16}"

    print("KERNEL_OK")
</pallas_src>

<mosaic_0001>
module attributes {stable_mosaic.version = 11 : i64} {
  func.func @_post_dec_kernel(%arg0: i32, %arg1: memref<8x32xf32, #tpu.memory_space<vmem>>, %arg2: memref<8x32xf32, #tpu.memory_space<vmem>>, %arg3: memref<32x32xf32, #tpu.memory_space<vmem>>, %arg4: memref<32x64xf32, #tpu.memory_space<vmem>>, %arg5: memref<1x64xf32, #tpu.memory_space<vmem>>, %arg6: memref<64x32xf32, #tpu.memory_space<vmem>>, %arg7: memref<1x32xf32, #tpu.memory_space<vmem>>, %arg8: memref<1x32xf32, #tpu.memory_space<vmem>>, %arg9: memref<1x32xf32, #tpu.memory_space<vmem>>, %arg10: memref<1x32xf32, #tpu.memory_space<vmem>>, %arg11: memref<1x32xf32, #tpu.memory_space<vmem>>, %arg12: memref<32x128xf32, #tpu.memory_space<vmem>>, %arg13: memref<1x128xf32, #tpu.memory_space<vmem>>, %arg14: memref<8x128xf32, #tpu.memory_space<vmem>>) attributes {dimension_semantics = [#tpu.dimension_semantics<parallel>], iteration_bounds = array<i64: 2>, scalar_prefetch = 0 : i64, scratch_operands = 0 : i64, tpu.core_type = #tpu.core_type<tc>, window_params = [{transform_indices = @transform_0, window_bounds = array<i64: 8, 32>}, {transform_indices = @transform_1, window_bounds = array<i64: 8, 32>}, {pipeline_mode = #tpu.pipeline_mode<synchronous>, transform_indices = @transform_2, window_bounds = array<i64: 32, 32>}, {pipeline_mode = #tpu.pipeline_mode<synchronous>, transform_indices = @transform_3, window_bounds = array<i64: 32, 64>}, {pipeline_mode = #tpu.pipeline_mode<synchronous>, transform_indices = @transform_4, window_bounds = array<i64: 1, 64>}, {pipeline_mode = #tpu.pipeline_mode<synchronous>, transform_indices = @transform_5, window_bounds = array<i64: 64, 32>}, {pipeline_mode = #tpu.pipeline_mode<synchronous>, transform_indices = @transform_6, window_bounds = array<i64: 1, 32>}, {pipeline_mode = #tpu.pipeline_mode<synchronous>, transform_indices = @transform_7, window_bounds = array<i64: 1, 32>}, {pipeline_mode = #tpu.pipeline_mode<synchronous>, transform_indices = @transform_8, window_bounds = array<i64: 1, 32>}, {pipeline_mode = #tpu.pipeline_mode<synchronous>, transform_indices = @transform_9, window_bounds = array<i64: 1, 32>}, {pipeline_mode = #tpu.pipeline_mode<synchronous>, transform_indices = @transform_10, window_bounds = array<i64: 1, 32>}, {pipeline_mode = #tpu.pipeline_mode<synchronous>, transform_indices = @transform_11, window_bounds = array<i64: 32, 128>}, {pipeline_mode = #tpu.pipeline_mode<synchronous>, transform_indices = @transform_12, window_bounds = array<i64: 1, 128>}, {transform_indices = @transform_13, window_bounds = array<i64: 8, 128>}]} {
    %c0 = arith.constant 0 : index
    %c0_0 = arith.constant 0 : index
    %0 = vector.load %arg1[%c0, %c0_0] : memref<8x32xf32, #tpu.memory_space<vmem>>, vector<8x32xf32>
    %c0_1 = arith.constant 0 : index
    %c0_2 = arith.constant 0 : index
    %1 = vector.load %arg2[%c0_1, %c0_2] : memref<8x32xf32, #tpu.memory_space<vmem>>, vector<8x32xf32>
    %c0_3 = arith.constant 0 : index
    %c0_4 = arith.constant 0 : index
    %2 = vector.load %arg3[%c0_3, %c0_4] : memref<32x32xf32, #tpu.memory_space<vmem>>, vector<32x32xf32>
    %cst = arith.constant dense<0.000000e+00> : vector<8x32xf32>
    %3 = tpu.matmul %1, %2, %cst {dimension_numbers = #tpu.dot_dimension_numbers<[1], [0], [0], [1], [0, 0, 1, 1], [], []>} : vector<8x32xf32>, vector<32x32xf32>, vector<8x32xf32> -> vector<8x32xf32>
    %4 = arith.addf %0, %3 : vector<8x32xf32>
    %c0_5 = arith.constant 0 : index
    %c0_6 = arith.constant 0 : index
    %5 = vector.load %arg8[%c0_5, %c0_6] : memref<1x32xf32, #tpu.memory_space<vmem>>, vector<1x32xf32>
    %c0_7 = arith.constant 0 : index
    %c0_8 = arith.constant 0 : index
    %6 = vector.load %arg9[%c0_7, %c0_8] : memref<1x32xf32, #tpu.memory_space<vmem>>, vector<1x32xf32>
    %cst_9 = arith.constant dense<0.000000e+00> : vector<8xf32>
    %7 = vector.multi_reduction <add>, %4, %cst_9 [1] : vector<8x32xf32> to vector<8xf32>
    %8 = vector.shape_cast %7 : vector<8xf32> to vector<8x1xf32>
    %cst_10 = arith.constant 3.200000e+01 : f32
    %9 = vector.broadcast %cst_10 : f32 to vector<8x1xf32>
    %10 = arith.divf %8, %9 : vector<8x1xf32>
    %11 = vector.broadcast %10 : vector<8x1xf32> to vector<8x32xf32>
    %12 = arith.subf %4, %11 : vector<8x32xf32>
    %13 = arith.mulf %12, %12 : vector<8x32xf32>
    %cst_11 = arith.constant dense<0.000000e+00> : vector<8xf32>
    %14 = vector.multi_reduction <add>, %13, %cst_11 [1] : vector<8x32xf32> to vector<8xf32>
    %15 = vector.shape_cast %14 : vector<8xf32> to vector<8x1xf32>
    %cst_12 = arith.constant 3.200000e+01 : f32
    %16 = vector.broadcast %cst_12 : f32 to vector<8x1xf32>
    %17 = arith.divf %15, %16 : vector<8x1xf32>
    %18 = vector.broadcast %10 : vector<8x1xf32> to vector<8x32xf32>
    %19 = arith.subf %4, %18 : vector<8x32xf32>
    %cst_13 = arith.constant 9.99999974E-6 : f32
    %20 = vector.broadcast %cst_13 : f32 to vector<8x1xf32>
    %21 = arith.addf %17, %20 : vector<8x1xf32>
    %22 = math.rsqrt %21 : vector<8x1xf32>
    %23 = vector.broadcast %22 : vector<8x1xf32> to vector<8x32xf32>
    %24 = arith.mulf %19, %23 : vector<8x32xf32>
    %25 = vector.broadcast %5 : vector<1x32xf32> to vector<8x32xf32>
    %26 = arith.mulf %24, %25 : vector<8x32xf32>
    %27 = vector.broadcast %6 : vector<1x32xf32> to vector<8x32xf32>
    %28 = arith.addf %26, %27 : vector<8x32xf32>
    %c0_14 = arith.constant 0 : index
    %c0_15 = arith.constant 0 : index
    %29 = vector.load %arg4[%c0_14, %c0_15] : memref<32x64xf32, #tpu.memory_space<vmem>>, vector<32x64xf32>
    %cst_16 = arith.constant dense<0.000000e+00> : vector<8x64xf32>
    %30 = tpu.matmul %28, %29, %cst_16 {dimension_numbers = #tpu.dot_dimension_numbers<[1], [0], [0], [1], [0, 0, 1, 1], [], []>} : vector<8x32xf32>, vector<32x64xf32>, vector<8x64xf32> -> vector<8x64xf32>
    %c0_17 = arith.constant 0 : index
    %c0_18 = arith.constant 0 : index
    %31 = vector.load %arg5[%c0_17, %c0_18] : memref<1x64xf32, #tpu.memory_space<vmem>>, vector<1x64xf32>
    %32 = vector.broadcast %31 : vector<1x64xf32> to vector<8x64xf32>
    %33 = arith.addf %30, %32 : vector<8x64xf32>
    %cst_19 = arith.constant 0.000000e+00 : f32
    %34 = vector.broadcast %cst_19 : f32 to vector<8x64xf32>
    %35 = arith.maximumf %33, %34 : vector<8x64xf32>
    %c0_20 = arith.constant 0 : index
    %c0_21 = arith.constant 0 : index
    %36 = vector.load %arg6[%c0_20, %c0_21] : memref<64x32xf32, #tpu.memory_space<vmem>>, vector<64x32xf32>
    %cst_22 = arith.constant dense<0.000000e+00> : vector<8x32xf32>
    %37 = tpu.matmul %35, %36, %cst_22 {dimension_numbers = #tpu.dot_dimension_numbers<[1], [0], [0], [1], [0, 0, 1, 1], [], []>} : vector<8x64xf32>, vector<64x32xf32>, vector<8x32xf32> -> vector<8x32xf32>
    %c0_23 = arith.constant 0 : index
    %c0_24 = arith.constant 0 : index
    %38 = vector.load %arg7[%c0_23, %c0_24] : memref<1x32xf32, #tpu.memory_space<vmem>>, vector<1x32xf32>
    %39 = vector.broadcast %38 : vector<1x32xf32> to vector<8x32xf32>
    %40 = arith.addf %37, %39 : vector<8x32xf32>
    %41 = arith.addf %28, %40 : vector<8x32xf32>
    %c0_25 = arith.constant 0 : index
    %c0_26 = arith.constant 0 : index
    %42 = vector.load %arg10[%c0_25, %c0_26] : memref<1x32xf32, #tpu.memory_space<vmem>>, vector<1x32xf32>
    %c0_27 = arith.constant 0 : index
    %c0_28 = arith.constant 0 : index
    %43 = vector.load %arg11[%c0_27, %c0_28] : memref<1x32xf32, #tpu.memory_space<vmem>>, vector<1x32xf32>
    %cst_29 = arith.constant dense<0.000000e+00> : vector<8xf32>
    %44 = vector.multi_reduction <add>, %41, %cst_29 [1] : vector<8x32xf32> to vector<8xf32>
    %45 = vector.shape_cast %44 : vector<8xf32> to vector<8x1xf32>
    %cst_30 = arith.constant 3.200000e+01 : f32
    %46 = vector.broadcast %cst_30 : f32 to vector<8x1xf32>
    %47 = arith.divf %45, %46 : vector<8x1xf32>
    %48 = vector.broadcast %47 : vector<8x1xf32> to vector<8x32xf32>
    %49 = arith.subf %41, %48 : vector<8x32xf32>
    %50 = arith.mulf %49, %49 : vector<8x32xf32>
    %cst_31 = arith.constant dense<0.000000e+00> : vector<8xf32>
    %51 = vector.multi_reduction <add>, %50, %cst_31 [1] : vector<8x32xf32> to vector<8xf32>
    %52 = vector.shape_cast %51 : vector<8xf32> to vector<8x1xf32>
    %cst_32 = arith.constant 3.200000e+01 : f32
    %53 = vector.broadcast %cst_32 : f32 to vector<8x1xf32>
    %54 = arith.divf %52, %53 : vector<8x1xf32>
    %55 = vector.broadcast %47 : vector<8x1xf32> to vector<8x32xf32>
    %56 = arith.subf %41, %55 : vector<8x32xf32>
    %cst_33 = arith.constant 9.99999974E-6 : f32
    %57 = vector.broadcast %cst_33 : f32 to vector<8x1xf32>
    %58 = arith.addf %54, %57 : vector<8x1xf32>
    %59 = math.rsqrt %58 : vector<8x1xf32>
    %60 = vector.broadcast %59 : vector<8x1xf32> to vector<8x32xf32>
    %61 = arith.mulf %56, %60 : vector<8x32xf32>
    %62 = vector.broadcast %42 : vector<1x32xf32> to vector<8x32xf32>
    %63 = arith.mulf %61, %62 : vector<8x32xf32>
    %64 = vector.broadcast %43 : vector<1x32xf32> to vector<8x32xf32>
    %65 = arith.addf %63, %64 : vector<8x32xf32>
    %c0_34 = arith.constant 0 : index
    %c0_35 = arith.constant 0 : index
    %66 = vector.load %arg12[%c0_34, %c0_35] : memref<32x128xf32, #tpu.memory_space<vmem>>, vector<32x128xf32>
    %cst_36 = arith.constant dense<0.000000e+00> : vector<8x128xf32>
    %67 = tpu.matmul %65, %66, %cst_36 {dimension_numbers = #tpu.dot_dimension_numbers<[1], [0], [0], [1], [0, 0, 1, 1], [], []>} : vector<8x32xf32>, vector<32x128xf32>, vector<8x128xf32> -> vector<8x128xf32>
    %c0_37 = arith.constant 0 : index
    %c0_38 = arith.constant 0 : index
    %68 = vector.load %arg13[%c0_37, %c0_38] : memref<1x128xf32, #tpu.memory_space<vmem>>, vector<1x128xf32>
    %69 = vector.broadcast %68 : vector<1x128xf32> to vector<8x128xf32>
    %70 = arith.addf %67, %69 : vector<8x128xf32>
    %c0_39 = arith.constant 0 : index
    %c0_40 = arith.constant 0 : index
    %71 = vector.load %arg14[%c0_39, %c0_40] : memref<8x128xf32, #tpu.memory_space<vmem>>, vector<8x128xf32>
    tpu.vector_store %arg14[%c0_39, %c0_40], %70 {strides = array<i32>} : memref<8x128xf32, #tpu.memory_space<vmem>>, vector<8x128xf32>,
    return
  }
  func.func @transform_0(%arg0: i32) -> (i32, i32) {
    %c0_i32 = arith.constant 0 : i32
    %c0_i32_0 = arith.constant 0 : i32
    return %arg0, %c0_i32 : i32, i32
  }
  func.func @transform_1(%arg0: i32) -> (i32, i32) {
    %c0_i32 = arith.constant 0 : i32
    %c0_i32_0 = arith.constant 0 : i32
    return %arg0, %c0_i32 : i32, i32
  }
  func.func @transform_2(%arg0: i32) -> (i32, i32) {
    %c0_i32 = arith.constant 0 : i32
    %c0_i32_0 = arith.constant 0 : i32
    %c0_i32_1 = arith.constant 0 : i32
    return %c0_i32, %c0_i32_0 : i32, i32
  }
  func.func @transform_3(%arg0: i32) -> (i32, i32) {
    %c0_i32 = arith.constant 0 : i32
    %c0_i32_0 = arith.constant 0 : i32
    %c0_i32_1 = arith.constant 0 : i32
    return %c0_i32, %c0_i32_0 : i32, i32
  }
  func.func @transform_4(%arg0: i32) -> (i32, i32) {
    %c0_i32 = arith.constant 0 : i32
    %c0_i32_0 = arith.constant 0 : i32
    %c0_i32_1 = arith.constant 0 : i32
    return %c0_i32, %c0_i32_0 : i32, i32
  }
  func.func @transform_5(%arg0: i32) -> (i32, i32) {
    %c0_i32 = arith.constant 0 : i32
    %c0_i32_0 = arith.constant 0 : i32
    %c0_i32_1 = arith.constant 0 : i32
    return %c0_i32, %c0_i32_0 : i32, i32
  }
  func.func @transform_6(%arg0: i32) -> (i32, i32) {
    %c0_i32 = arith.constant 0 : i32
    %c0_i32_0 = arith.constant 0 : i32
    %c0_i32_1 = arith.constant 0 : i32
    return %c0_i32, %c0_i32_0 : i32, i32
  }
  func.func @transform_7(%arg0: i32) -> (i32, i32) {
    %c0_i32 = arith.constant 0 : i32
    %c0_i32_0 = arith.constant 0 : i32
    %c0_i32_1 = arith.constant 0 : i32
    return %c0_i32, %c0_i32_0 : i32, i32
  }
  func.func @transform_8(%arg0: i32) -> (i32, i32) {
    %c0_i32 = arith.constant 0 : i32
    %c0_i32_0 = arith.constant 0 : i32
    %c0_i32_1 = arith.constant 0 : i32
    return %c0_i32, %c0_i32_0 : i32, i32
  }
  func.func @transform_9(%arg0: i32) -> (i32, i32) {
    %c0_i32 = arith.constant 0 : i32
    %c0_i32_0 = arith.constant 0 : i32
    %c0_i32_1 = arith.constant 0 : i32
    return %c0_i32, %c0_i32_0 : i32, i32
  }
  func.func @transform_10(%arg0: i32) -> (i32, i32) {
    %c0_i32 = arith.constant 0 : i32
    %c0_i32_0 = arith.constant 0 : i32
    %c0_i32_1 = arith.constant 0 : i32
    return %c0_i32, %c0_i32_0 : i32, i32
  }
  func.func @transform_11(%arg0: i32) -> (i32, i32) {
    %c0_i32 = arith.constant 0 : i32
    %c0_i32_0 = arith.constant 0 : i32
    %c0_i32_1 = arith.constant 0 : i32
    return %c0_i32, %c0_i32_0 : i32, i32
  }
  func.func @transform_12(%arg0: i32) -> (i32, i32) {
    %c0_i32 = arith.constant 0 : i32
    %c0_i32_0 = arith.constant 0 : i32
    %c0_i32_1 = arith.constant 0 : i32
    return %c0_i32, %c0_i32_0 : i32, i32
  }
  func.func @transform_13(%arg0: i32) -> (i32, i32) {
    %c0_i32 = arith.constant 0 : i32
    %c0_i32_0 = arith.constant 0 : i32
    return %arg0, %c0_i32 : i32, i32
  }
}

module attributes {stable_mosaic.version = 11 : i64} {
  func.func @_dispatch_kernel(%arg0: i32, %arg1: memref<4x8x8xf32, #tpu.memory_space<vmem>>, %arg2: memref<4x8x3xf32, #tpu.memory_space<vmem>>, %arg3: memref<8x3xf32, #tpu.memory_space<vmem>>, %arg4: memref<4x8x8xf32, #tpu.memory_space<vmem>>) attributes {dimension_semantics = [#tpu.dimension_semantics<parallel>], iteration_bounds = array<i64: 2>, scalar_prefetch = 0 : i64, scratch_operands = 0 : i64, tpu.core_type = #tpu.core_type<tc>, window_params = [{transform_indices = @transform_0, window_bounds = array<i64: 4, 8, 8>}, {transform_indices = @transform_1, window_bounds = array<i64: 4, 8, 3>}, {pipeline_mode = #tpu.pipeline_mode<synchronous>, transform_indices = @transform_2, window_bounds = array<i64: 8, 3>}, {transform_indices = @transform_3, window_bounds = array<i64: 4, 8, 8>}]} {
    %c0 = arith.constant 0 : index
    %c0_0 = arith.constant 0 : index
    %c0_1 = arith.constant 0 : index
    %0 = vector.load %arg2[%c0, %c0_0, %c0_1] : memref<4x8x3xf32, #tpu.memory_space<vmem>>, vector<4x8x3xf32>
    %c0_2 = arith.constant 0 : index
    %c0_3 = arith.constant 0 : index
    %1 = vector.load %arg3[%c0_2, %c0_3] : memref<8x3xf32, #tpu.memory_space<vmem>>, vector<8x3xf32>
    %2 = vector.shape_cast %1 : vector<8x3xf32> to vector<1x8x3xf32>
    %3 = vector.broadcast %2 : vector<1x8x3xf32> to vector<4x8x3xf32>
    %4 = arith.mulf %0, %3 : vector<4x8x3xf32>
    %c0_4 = arith.constant 0 : index
    %c0_5 = arith.constant 0 : index
    %c0_6 = arith.constant 0 : index
    %5 = vector.load %arg1[%c0_4, %c0_5, %c0_6] : memref<4x8x8xf32, #tpu.memory_space<vmem>>, vector<4x8x8xf32>
    %c0_7 = arith.constant 0 : index
    %c0_8 = arith.constant 0 : index
    %c0_9 = arith.constant 0 : index
    %6 = vector.load %arg4[%c0_7, %c0_8, %c0_9] : memref<4x8x8xf32, #tpu.memory_space<vmem>>, vector<4x8x8xf32>
    tpu.vector_store %arg4[%c0_7, %c0_8, %c0_9], %5 {strides = array<i32>} : memref<4x8x8xf32, #tpu.memory_space<vmem>>, vector<4x8x8xf32>,
    %c0_10 = arith.constant 0 : index
    %c0_11 = arith.constant 0 : index
    %c0_12 = arith.constant 0 : index
    %7 = vector.load %arg4[%c0_10, %c0_11, %c0_12] : memref<4x8x8xf32, #tpu.memory_space<vmem>>, vector<4x8x8xf32>
    %8 = vector.extract_strided_slice %4 {offsets = [0, 1, 0], sizes = [4, 7, 1], strides = [1, 1, 1]} : vector<4x8x3xf32> to vector<4x7x1xf32>
    %9 = vector.extract_strided_slice %7 {offsets = [0, 1, 0], sizes = [4, 7, 8], strides = [1, 1, 1]} : vector<4x8x8xf32> to vector<4x7x8xf32>
    %10 = vector.extract_strided_slice %7 {offsets = [0, 0, 0], sizes = [4, 7, 8], strides = [1, 1, 1]} : vector<4x8x8xf32> to vector<4x7x8xf32>
    %11 = vector.broadcast %8 : vector<4x7x1xf32> to vector<4x7x8xf32>
    %12 = arith.mulf %11, %10 : vector<4x7x8xf32>
    %13 = arith.addf %9, %12 : vector<4x7x8xf32>
    %c0_13 = arith.constant 0 : index
    %c1 = arith.constant 1 : index
    %c0_14 = arith.constant 0 : index
    %14 = vector.load %arg4[%c0_13, %c1, %c0_14] : memref<4x8x8xf32, #tpu.memory_space<vmem>>, vector<4x7x8xf32>
    tpu.vector_store %arg4[%c0_13, %c1, %c0_14], %13 {strides = array<i32>} : memref<4x8x8xf32, #tpu.memory_space<vmem>>, vector<4x7x8xf32>,
    %c0_15 = arith.constant 0 : index
    %c0_16 = arith.constant 0 : index
    %c0_17 = arith.constant 0 : index
    %15 = vector.load %arg4[%c0_15, %c0_16, %c0_17] : memref<4x8x8xf32, #tpu.memory_space<vmem>>, vector<4x8x8xf32>
    %16 = vector.extract_strided_slice %4 {offsets = [0, 2, 1], sizes = [4, 6, 1], strides = [1, 1, 1]} : vector<4x8x3xf32> to vector<4x6x1xf32>
    %17 = vector.extract_strided_slice %15 {offsets = [0, 2, 0], sizes = [4, 6, 8], strides = [1, 1, 1]} : vector<4x8x8xf32> to vector<4x6x8xf32>
    %18 = vector.extract_strided_slice %15 {offsets = [0, 0, 0], sizes = [4, 6, 8], strides = [1, 1, 1]} : vector<4x8x8xf32> to vector<4x6x8xf32>
    %19 = vector.broadcast %16 : vector<4x6x1xf32> to vector<4x6x8xf32>
    %20 = arith.mulf %19, %18 : vector<4x6x8xf32>
    %21 = arith.addf %17, %20 : vector<4x6x8xf32>
    %c0_18 = arith.constant 0 : index
    %c2 = arith.constant 2 : index
    %c0_19 = arith.constant 0 : index
    %22 = vector.load %arg4[%c0_18, %c2, %c0_19] : memref<4x8x8xf32, #tpu.memory_space<vmem>>, vector<4x6x8xf32>
    tpu.vector_store %arg4[%c0_18, %c2, %c0_19], %21 {strides = array<i32>} : memref<4x8x8xf32, #tpu.memory_space<vmem>>, vector<4x6x8xf32>,
    %c0_20 = arith.constant 0 : index
    %c0_21 = arith.constant 0 : index
    %c0_22 = arith.constant 0 : index
    %23 = vector.load %arg4[%c0_20, %c0_21, %c0_22] : memref<4x8x8xf32, #tpu.memory_space<vmem>>, vector<4x8x8xf32>
    %24 = vector.extract_strided_slice %4 {offsets = [0, 4, 2], sizes = [4, 4, 1], strides = [1, 1, 1]} : vector<4x8x3xf32> to vector<4x4x1xf32>
    %25 = vector.extract_strided_slice %23 {offsets = [0, 4, 0], sizes = [4, 4, 8], strides = [1, 1, 1]} : vector<4x8x8xf32> to vector<4x4x8xf32>
    %26 = vector.extract_strided_slice %23 {offsets = [0, 0, 0], sizes = [4, 4, 8], strides = [1, 1, 1]} : vector<4x8x8xf32> to vector<4x4x8xf32>
    %27 = vector.broadcast %24 : vector<4x4x1xf32> to vector<4x4x8xf32>
    %28 = arith.mulf %27, %26 : vector<4x4x8xf32>
    %29 = arith.addf %25, %28 : vector<4x4x8xf32>
    %c0_23 = arith.constant 0 : index
    %c4 = arith.constant 4 : index
    %c0_24 = arith.constant 0 : index
    %30 = vector.load %arg4[%c0_23, %c4, %c0_24] : memref<4x8x8xf32, #tpu.memory_space<vmem>>, vector<4x4x8xf32>
    tpu.vector_store %arg4[%c0_23, %c4, %c0_24], %29 {strides = array<i32>} : memref<4x8x8xf32, #tpu.memory_space<vmem>>, vector<4x4x8xf32>,
    return
  }
  func.func @transform_0(%arg0: i32) -> (i32, i32, i32) {
    %c0_i32 = arith.constant 0 : i32
    %c0_i32_0 = arith.constant 0 : i32
    %c0_i32_1 = arith.constant 0 : i32
    return %arg0, %c0_i32, %c0_i32_0 : i32, i32, i32
  }
  func.func @transform_1(%arg0: i32) -> (i32, i32, i32) {
    %c0_i32 = arith.constant 0 : i32
    %c0_i32_0 = arith.constant 0 : i32
    %c0_i32_1 = arith.constant 0 : i32
    return %arg0, %c0_i32, %c0_i32_0 : i32, i32, i32
  }
  func.func @transform_2(%arg0: i32) -> (i32, i32) {
    %c0_i32 = arith.constant 0 : i32
    %c0_i32_0 = arith.constant 0 : i32
    %c0_i32_1 = arith.constant 0 : i32
    return %c0_i32, %c0_i32_0 : i32, i32
  }
  func.func @transform_3(%arg0: i32) -> (i32, i32, i32) {
    %c0_i32 = arith.constant 0 : i32
    %c0_i32_0 = arith.constant 0 : i32
    %c0_i32_1 = arith.constant 0 : i32
    return %arg0, %c0_i32, %c0_i32_0 : i32, i32, i32
  }
}

module attributes {stable_mosaic.version = 11 : i64} {
  func.func @_proj_kernel(%arg0: i32, %arg1: memref<8x32xf32, #tpu.memory_space<vmem>>, %arg2: memref<32x32xf32, #tpu.memory_space<vmem>>, %arg3: memref<32x12xf32, #tpu.memory_space<vmem>>, %arg4: memref<8x32xf32, #tpu.memory_space<vmem>>, %arg5: memref<8x12xf32, #tpu.memory_space<vmem>>) attributes {dimension_semantics = [#tpu.dimension_semantics<parallel>], iteration_bounds = array<i64: 2>, scalar_prefetch = 0 : i64, scratch_operands = 0 : i64, tpu.core_type = #tpu.core_type<tc>, window_params = [{transform_indices = @transform_0, window_bounds = array<i64: 8, 32>}, {pipeline_mode = #tpu.pipeline_mode<synchronous>, transform_indices = @transform_1, window_bounds = array<i64: 32, 32>}, {pipeline_mode = #tpu.pipeline_mode<synchronous>, transform_indices = @transform_2, window_bounds = array<i64: 32, 12>}, {transform_indices = @transform_3, window_bounds = array<i64: 8, 32>}, {transform_indices = @transform_4, window_bounds = array<i64: 8, 12>}]} {
    %c0 = arith.constant 0 : index
    %c0_0 = arith.constant 0 : index
    %0 = vector.load %arg1[%c0, %c0_0] : memref<8x32xf32, #tpu.memory_space<vmem>>, vector<8x32xf32>
    %c0_1 = arith.constant 0 : index
    %c0_2 = arith.constant 0 : index
    %1 = vector.load %arg2[%c0_1, %c0_2] : memref<32x32xf32, #tpu.memory_space<vmem>>, vector<32x32xf32>
    %cst = arith.constant dense<0.000000e+00> : vector<8x32xf32>
    %2 = tpu.matmul %0, %1, %cst {dimension_numbers = #tpu.dot_dimension_numbers<[1], [0], [0], [1], [0, 0, 1, 1], [], []>} : vector<8x32xf32>, vector<32x32xf32>, vector<8x32xf32> -> vector<8x32xf32>
    %c0_3 = arith.constant 0 : index
    %c0_4 = arith.constant 0 : index
    %3 = vector.load %arg4[%c0_3, %c0_4] : memref<8x32xf32, #tpu.memory_space<vmem>>, vector<8x32xf32>
    tpu.vector_store %arg4[%c0_3, %c0_4], %2 {strides = array<i32>} : memref<8x32xf32, #tpu.memory_space<vmem>>, vector<8x32xf32>,
    %c0_5 = arith.constant 0 : index
    %c0_6 = arith.constant 0 : index
    %4 = vector.load %arg3[%c0_5, %c0_6] : memref<32x12xf32, #tpu.memory_space<vmem>>, vector<32x12xf32>
    %cst_7 = arith.constant dense<0.000000e+00> : vector<8x12xf32>
    %5 = tpu.matmul %0, %4, %cst_7 {dimension_numbers = #tpu.dot_dimension_numbers<[1], [0], [0], [1], [0, 0, 1, 1], [], []>} : vector<8x32xf32>, vector<32x12xf32>, vector<8x12xf32> -> vector<8x12xf32>
    %c0_8 = arith.constant 0 : index
    %c0_9 = arith.constant 0 : index
    %6 = vector.load %arg5[%c0_8, %c0_9] : memref<8x12xf32, #tpu.memory_space<vmem>>, vector<8x12xf32>
    tpu.vector_store %arg5[%c0_8, %c0_9], %5 {strides = array<i32>} : memref<8x12xf32, #tpu.memory_space<vmem>>, vector<8x12xf32>,
    return
  }
  func.func @transform_0(%arg0: i32) -> (i32, i32) {
    %c0_i32 = arith.constant 0 : i32
    %c0_i32_0 = arith.constant 0 : i32
    return %arg0, %c0_i32 : i32, i32
  }
  func.func @transform_1(%arg0: i32) -> (i32, i32) {
    %c0_i32 = arith.constant 0 : i32
    %c0_i32_0 = arith.constant 0 : i32
    %c0_i32_1 = arith.constant 0 : i32
    return %c0_i32, %c0_i32_0 : i32, i32
  }
  func.func @transform_2(%arg0: i32) -> (i32, i32) {
    %c0_i32 = arith.constant 0 : i32
    %c0_i32_0 = arith.constant 0 : i32
    %c0_i32_1 = arith.constant 0 : i32
    return %c0_i32, %c0_i32_0 : i32, i32
  }
  func.func @transform_3(%arg0: i32) -> (i32, i32) {
    %c0_i32 = arith.constant 0 : i32
    %c0_i32_0 = arith.constant 0 : i32
    return %arg0, %c0_i32 : i32, i32
  }
  func.func @transform_4(%arg0: i32) -> (i32, i32) {
    %c0_i32 = arith.constant 0 : i32
    %c0_i32_0 = arith.constant 0 : i32
    return %arg0, %c0_i32 : i32, i32
  }
}

module attributes {stable_mosaic.version = 11 : i64} {
  func.func @_post_proj_kernel(%arg0: i32, %arg1: memref<8x32xf32, #tpu.memory_space<vmem>>, %arg2: memref<8x32xf32, #tpu.memory_space<vmem>>, %arg3: memref<32x32xf32, #tpu.memory_space<vmem>>, %arg4: memref<32x64xf32, #tpu.memory_space<vmem>>, %arg5: memref<1x64xf32, #tpu.memory_space<vmem>>, %arg6: memref<64x32xf32, #tpu.memory_space<vmem>>, %arg7: memref<1x32xf32, #tpu.memory_space<vmem>>, %arg8: memref<1x32xf32, #tpu.memory_space<vmem>>, %arg9: memref<1x32xf32, #tpu.memory_space<vmem>>, %arg10: memref<1x32xf32, #tpu.memory_space<vmem>>, %arg11: memref<1x32xf32, #tpu.memory_space<vmem>>, %arg12: memref<32x32xf32, #tpu.memory_space<vmem>>, %arg13: memref<32x12xf32, #tpu.memory_space<vmem>>, %arg14: memref<8x32xf32, #tpu.memory_space<vmem>>, %arg15: memref<8x32xf32, #tpu.memory_space<vmem>>, %arg16: memref<8x12xf32, #tpu.memory_space<vmem>>) attributes {dimension_semantics = [#tpu.dimension_semantics<parallel>], iteration_bounds = array<i64: 2>, scalar_prefetch = 0 : i64, scratch_operands = 0 : i64, tpu.core_type = #tpu.core_type<tc>, window_params = [{transform_indices = @transform_0, window_bounds = array<i64: 8, 32>}, {transform_indices = @transform_1, window_bounds = array<i64: 8, 32>}, {pipeline_mode = #tpu.pipeline_mode<synchronous>, transform_indices = @transform_2, window_bounds = array<i64: 32, 32>}, {pipeline_mode = #tpu.pipeline_mode<synchronous>, transform_indices = @transform_3, window_bounds = array<i64: 32, 64>}, {pipeline_mode = #tpu.pipeline_mode<synchronous>, transform_indices = @transform_4, window_bounds = array<i64: 1, 64>}, {pipeline_mode = #tpu.pipeline_mode<synchronous>, transform_indices = @transform_5, window_bounds = array<i64: 64, 32>}, {pipeline_mode = #tpu.pipeline_mode<synchronous>, transform_indices = @transform_6, window_bounds = array<i64: 1, 32>}, {pipeline_mode = #tpu.pipeline_mode<synchronous>, transform_indices = @transform_7, window_bounds = array<i64: 1, 32>}, {pipeline_mode = #tpu.pipeline_mode<synchronous>, transform_indices = @transform_8, window_bounds = array<i64: 1, 32>}, {pipeline_mode = #tpu.pipeline_mode<synchronous>, transform_indices = @transform_9, window_bounds = array<i64: 1, 32>}, {pipeline_mode = #tpu.pipeline_mode<synchronous>, transform_indices = @transform_10, window_bounds = array<i64: 1, 32>}, {pipeline_mode = #tpu.pipeline_mode<synchronous>, transform_indices = @transform_11, window_bounds = array<i64: 32, 32>}, {pipeline_mode = #tpu.pipeline_mode<synchronous>, transform_indices = @transform_12, window_bounds = array<i64: 32, 12>}, {transform_indices = @transform_13, window_bounds = array<i64: 8, 32>}, {transform_indices = @transform_14, window_bounds = array<i64: 8, 32>}, {transform_indices = @transform_15, window_bounds = array<i64: 8, 12>}]} {
    %c0 = arith.constant 0 : index
    %c0_0 = arith.constant 0 : index
    %0 = vector.load %arg1[%c0, %c0_0] : memref<8x32xf32, #tpu.memory_space<vmem>>, vector<8x32xf32>
    %c0_1 = arith.constant 0 : index
    %c0_2 = arith.constant 0 : index
    %1 = vector.load %arg2[%c0_1, %c0_2] : memref<8x32xf32, #tpu.memory_space<vmem>>, vector<8x32xf32>
    %c0_3 = arith.constant 0 : index
    %c0_4 = arith.constant 0 : index
    %2 = vector.load %arg3[%c0_3, %c0_4] : memref<32x32xf32, #tpu.memory_space<vmem>>, vector<32x32xf32>
    %cst = arith.constant dense<0.000000e+00> : vector<8x32xf32>
    %3 = tpu.matmul %1, %2, %cst {dimension_numbers = #tpu.dot_dimension_numbers<[1], [0], [0], [1], [0, 0, 1, 1], [], []>} : vector<8x32xf32>, vector<32x32xf32>, vector<8x32xf32> -> vector<8x32xf32>
    %4 = arith.addf %0, %3 : vector<8x32xf32>
    %c0_5 = arith.constant 0 : index
    %c0_6 = arith.constant 0 : index
    %5 = vector.load %arg8[%c0_5, %c0_6] : memref<1x32xf32, #tpu.memory_space<vmem>>, vector<1x32xf32>
    %c0_7 = arith.constant 0 : index
    %c0_8 = arith.constant 0 : index
    %6 = vector.load %arg9[%c0_7, %c0_8] : memref<1x32xf32, #tpu.memory_space<vmem>>, vector<1x32xf32>
    %cst_9 = arith.constant dense<0.000000e+00> : vector<8xf32>
    %7 = vector.multi_reduction <add>, %4, %cst_9 [1] : vector<8x32xf32> to vector<8xf32>
    %8 = vector.shape_cast %7 : vector<8xf32> to vector<8x1xf32>
    %cst_10 = arith.constant 3.200000e+01 : f32
    %9 = vector.broadcast %cst_10 : f32 to vector<8x1xf32>
    %10 = arith.divf %8, %9 : vector<8x1xf32>
    %11 = vector.broadcast %10 : vector<8x1xf32> to vector<8x32xf32>
    %12 = arith.subf %4, %11 : vector<8x32xf32>
    %13 = arith.mulf %12, %12 : vector<8x32xf32>
    %cst_11 = arith.constant dense<0.000000e+00> : vector<8xf32>
    %14 = vector.multi_reduction <add>, %13, %cst_11 [1] : vector<8x32xf32> to vector<8xf32>
    %15 = vector.shape_cast %14 : vector<8xf32> to vector<8x1xf32>
    %cst_12 = arith.constant 3.200000e+01 : f32
    %16 = vector.broadcast %cst_12 : f32 to vector<8x1xf32>
    %17 = arith.divf %15, %16 : vector<8x1xf32>
    %18 = vector.broadcast %10 : vector<8x1xf32> to vector<8x32xf32>
    %19 = arith.subf %4, %18 : vector<8x32xf32>
    %cst_13 = arith.constant 9.99999974E-6 : f32
    %20 = vector.broadcast %cst_13 : f32 to vector<8x1xf32>
    %21 = arith.addf %17, %20 : vector<8x1xf32>
    %22 = math.rsqrt %21 : vector<8x1xf32>
    %23 = vector.broadcast %22 : vector<8x1xf32> to vector<8x32xf32>
    %24 = arith.mulf %19, %23 : vector<8x32xf32>
    %25 = vector.broadcast %5 : vector<1x32xf32> to vector<8x32xf32>
    %26 = arith.mulf %24, %25 : vector<8x32xf32>
    %27 = vector.broadcast %6 : vector<1x32xf32> to vector<8x32xf32>
    %28 = arith.addf %26, %27 : vector<8x32xf32>
    %c0_14 = arith.constant 0 : index
    %c0_15 = arith.constant 0 : index
    %29 = vector.load %arg4[%c0_14, %c0_15] : memref<32x64xf32, #tpu.memory_space<vmem>>, vector<32x64xf32>
    %cst_16 = arith.constant dense<0.000000e+00> : vector<8x64xf32>
    %30 = tpu.matmul %28, %29, %cst_16 {dimension_numbers = #tpu.dot_dimension_numbers<[1], [0], [0], [1], [0, 0, 1, 1], [], []>} : vector<8x32xf32>, vector<32x64xf32>, vector<8x64xf32> -> vector<8x64xf32>
    %c0_17 = arith.constant 0 : index
    %c0_18 = arith.constant 0 : index
    %31 = vector.load %arg5[%c0_17, %c0_18] : memref<1x64xf32, #tpu.memory_space<vmem>>, vector<1x64xf32>
    %32 = vector.broadcast %31 : vector<1x64xf32> to vector<8x64xf32>
    %33 = arith.addf %30, %32 : vector<8x64xf32>
    %cst_19 = arith.constant 0.000000e+00 : f32
    %34 = vector.broadcast %cst_19 : f32 to vector<8x64xf32>
    %35 = arith.maximumf %33, %34 : vector<8x64xf32>
    %c0_20 = arith.constant 0 : index
    %c0_21 = arith.constant 0 : index
    %36 = vector.load %arg6[%c0_20, %c0_21] : memref<64x32xf32, #tpu.memory_space<vmem>>, vector<64x32xf32>
    %cst_22 = arith.constant dense<0.000000e+00> : vector<8x32xf32>
    %37 = tpu.matmul %35, %36, %cst_22 {dimension_numbers = #tpu.dot_dimension_numbers<[1], [0], [0], [1], [0, 0, 1, 1], [], []>} : vector<8x64xf32>, vector<64x32xf32>, vector<8x32xf32> -> vector<8x32xf32>
    %c0_23 = arith.constant 0 : index
    %c0_24 = arith.constant 0 : index
    %38 = vector.load %arg7[%c0_23, %c0_24] : memref<1x32xf32, #tpu.memory_space<vmem>>, vector<1x32xf32>
    %39 = vector.broadcast %38 : vector<1x32xf32> to vector<8x32xf32>
    %40 = arith.addf %37, %39 : vector<8x32xf32>
    %41 = arith.addf %28, %40 : vector<8x32xf32>
    %c0_25 = arith.constant 0 : index
    %c0_26 = arith.constant 0 : index
    %42 = vector.load %arg10[%c0_25, %c0_26] : memref<1x32xf32, #tpu.memory_space<vmem>>, vector<1x32xf32>
    %c0_27 = arith.constant 0 : index
    %c0_28 = arith.constant 0 : index
    %43 = vector.load %arg11[%c0_27, %c0_28] : memref<1x32xf32, #tpu.memory_space<vmem>>, vector<1x32xf32>
    %cst_29 = arith.constant dense<0.000000e+00> : vector<8xf32>
    %44 = vector.multi_reduction <add>, %41, %cst_29 [1] : vector<8x32xf32> to vector<8xf32>
    %45 = vector.shape_cast %44 : vector<8xf32> to vector<8x1xf32>
    %cst_30 = arith.constant 3.200000e+01 : f32
    %46 = vector.broadcast %cst_30 : f32 to vector<8x1xf32>
    %47 = arith.divf %45, %46 : vector<8x1xf32>
    %48 = vector.broadcast %47 : vector<8x1xf32> to vector<8x32xf32>
    %49 = arith.subf %41, %48 : vector<8x32xf32>
    %50 = arith.mulf %49, %49 : vector<8x32xf32>
    %cst_31 = arith.constant dense<0.000000e+00> : vector<8xf32>
    %51 = vector.multi_reduction <add>, %50, %cst_31 [1] : vector<8x32xf32> to vector<8xf32>
    %52 = vector.shape_cast %51 : vector<8xf32> to vector<8x1xf32>
    %cst_32 = arith.constant 3.200000e+01 : f32
    %53 = vector.broadcast %cst_32 : f32 to vector<8x1xf32>
    %54 = arith.divf %52, %53 : vector<8x1xf32>
    %55 = vector.broadcast %47 : vector<8x1xf32> to vector<8x32xf32>
    %56 = arith.subf %41, %55 : vector<8x32xf32>
    %cst_33 = arith.constant 9.99999974E-6 : f32
    %57 = vector.broadcast %cst_33 : f32 to vector<8x1xf32>
    %58 = arith.addf %54, %57 : vector<8x1xf32>
    %59 = math.rsqrt %58 : vector<8x1xf32>
    %60 = vector.broadcast %59 : vector<8x1xf32> to vector<8x32xf32>
    %61 = arith.mulf %56, %60 : vector<8x32xf32>
    %62 = vector.broadcast %42 : vector<1x32xf32> to vector<8x32xf32>
    %63 = arith.mulf %61, %62 : vector<8x32xf32>
    %64 = vector.broadcast %43 : vector<1x32xf32> to vector<8x32xf32>
    %65 = arith.addf %63, %64 : vector<8x32xf32>
    %c0_34 = arith.constant 0 : index
    %c0_35 = arith.constant 0 : index
    %66 = vector.load %arg14[%c0_34, %c0_35] : memref<8x32xf32, #tpu.memory_space<vmem>>, vector<8x32xf32>
    tpu.vector_store %arg14[%c0_34, %c0_35], %65 {strides = array<i32>} : memref<8x32xf32, #tpu.memory_space<vmem>>, vector<8x32xf32>,
    %c0_36 = arith.constant 0 : index
    %c0_37 = arith.constant 0 : index
    %67 = vector.load %arg12[%c0_36, %c0_37] : memref<32x32xf32, #tpu.memory_space<vmem>>, vector<32x32xf32>
    %cst_38 = arith.constant dense<0.000000e+00> : vector<8x32xf32>
    %68 = tpu.matmul %65, %67, %cst_38 {dimension_numbers = #tpu.dot_dimension_numbers<[1], [0], [0], [1], [0, 0, 1, 1], [], []>} : vector<8x32xf32>, vector<32x32xf32>, vector<8x32xf32> -> vector<8x32xf32>
    %c0_39 = arith.constant 0 : index
    %c0_40 = arith.constant 0 : index
    %69 = vector.load %arg15[%c0_39, %c0_40] : memref<8x32xf32, #tpu.memory_space<vmem>>, vector<8x32xf32>
    tpu.vector_store %arg15[%c0_39, %c0_40], %68 {strides = array<i32>} : memref<8x32xf32, #tpu.memory_space<vmem>>, vector<8x32xf32>,
    %c0_41 = arith.constant 0 : index
    %c0_42 = arith.constant 0 : index
    %70 = vector.load %arg13[%c0_41, %c0_42] : memref<32x12xf32, #tpu.memory_space<vmem>>, vector<32x12xf32>
    %cst_43 = arith.constant dense<0.000000e+00> : vector<8x12xf32>
    %71 = tpu.matmul %65, %70, %cst_43 {dimension_numbers = #tpu.dot_dimension_numbers<[1], [0], [0], [1], [0, 0, 1, 1], [], []>} : vector<8x32xf32>, vector<32x12xf32>, vector<8x12xf32> -> vector<8x12xf32>
    %c0_44 = arith.constant 0 : index
    %c0_45 = arith.constant 0 : index
    %72 = vector.load %arg16[%c0_44, %c0_45] : memref<8x12xf32, #tpu.memory_space<vmem>>, vector<8x12xf32>
    tpu.vector_store %arg16[%c0_44, %c0_45], %71 {strides = array<i32>} : memref<8x12xf32, #tpu.memory_space<vmem>>, vector<8x12xf32>,
    return
  }
  func.func @transform_0(%arg0: i32) -> (i32, i32) {
    %c0_i32 = arith.constant 0 : i32
    %c0_i32_0 = arith.constant 0 : i32
    return %arg0, %c0_i32 : i32, i32
  }
  func.func @transform_1(%arg0: i32) -> (i32, i32) {
    %c0_i32 = arith.constant 0 : i32
    %c0_i32_0 = arith.constant 0 : i32
    return %arg0, %c0_i32 : i32, i32
  }
  func.func @transform_2(%arg0: i32) -> (i32, i32) {
    %c0_i32 = arith.constant 0 : i32
    %c0_i32_0 = arith.constant 0 : i32
    %c0_i32_1 = arith.constant 0 : i32
    return %c0_i32, %c0_i32_0 : i32, i32
  }
  func.func @transform_3(%arg0: i32) -> (i32, i32) {
    %c0_i32 = arith.constant 0 : i32
    %c0_i32_0 = arith.constant 0 : i32
    %c0_i32_1 = arith.constant 0 : i32
    return %c0_i32, %c0_i32_0 : i32, i32
  }
  func.func @transform_4(%arg0: i32) -> (i32, i32) {
    %c0_i32 = arith.constant 0 : i32
    %c0_i32_0 = arith.constant 0 : i32
    %c0_i32_1 = arith.constant 0 : i32
    return %c0_i32, %c0_i32_0 : i32, i32
  }
  func.func @transform_5(%arg0: i32) -> (i32, i32) {
    %c0_i32 = arith.constant 0 : i32
    %c0_i32_0 = arith.constant 0 : i32
    %c0_i32_1 = arith.constant 0 : i32
    return %c0_i32, %c0_i32_0 : i32, i32
  }
  func.func @transform_6(%arg0: i32) -> (i32, i32) {
    %c0_i32 = arith.constant 0 : i32
    %c0_i32_0 = arith.constant 0 : i32
    %c0_i32_1 = arith.constant 0 : i32
    return %c0_i32, %c0_i32_0 : i32, i32
  }
  func.func @transform_7(%arg0: i32) -> (i32, i32) {
    %c0_i32 = arith.constant 0 : i32
    %c0_i32_0 = arith.constant 0 : i32
    %c0_i32_1 = arith.constant 0 : i32
    return %c0_i32, %c0_i32_0 : i32, i32
  }
  func.func @transform_8(%arg0: i32) -> (i32, i32) {
    %c0_i32 = arith.constant 0 : i32
    %c0_i32_0 = arith.constant 0 : i32
    %c0_i32_1 = arith.constant 0 : i32
    return %c0_i32, %c0_i32_0 : i32, i32
  }
  func.func @transform_9(%arg0: i32) -> (i32, i32) {
    %c0_i32 = arith.constant 0 : i32
    %c0_i32_0 = arith.constant 0 : i32
    %c0_i32_1 = arith.constant 0 : i32
    return %c0_i32, %c0_i32_0 : i32, i32
  }
  func.func @transform_10(%arg0: i32) -> (i32, i32) {
    %c0_i32 = arith.constant 0 : i32
    %c0_i32_0 = arith.constant 0 : i32
    %c0_i32_1 = arith.constant 0 : i32
    return %c0_i32, %c0_i32_0 : i32, i32
  }
  func.func @transform_11(%arg0: i32) -> (i32, i32) {
    %c0_i32 = arith.constant 0 : i32
    %c0_i32_0 = arith.constant 0 : i32
    %c0_i32_1 = arith.constant 0 : i32
    return %c0_i32, %c0_i32_0 : i32, i32
  }
  func.func @transform_12(%arg0: i32) -> (i32, i32) {
    %c0_i32 = arith.constant 0 : i32
    %c0_i32_0 = arith.constant 0 : i32
    %c0_i32_1 = arith.constant 0 : i32
    return %c0_i32, %c0_i32_0 : i32, i32
  }
  func.func @transform_13(%arg0: i32) -> (i32, i32) {
    %c0_i32 = arith.constant 0 : i32
    %c0_i32_0 = arith.constant 0 : i32
    return %arg0, %c0_i32 : i32, i32
  }
  func.func @transform_14(%arg0: i32) -> (i32, i32) {
    %c0_i32 = arith.constant 0 : i32
    %c0_i32_0 = arith.constant 0 : i32
    return %arg0, %c0_i32 : i32, i32
  }
  func.func @transform_15(%arg0: i32) -> (i32, i32) {
    %c0_i32 = arith.constant 0 : i32
    %c0_i32_0 = arith.constant 0 : i32
    return %arg0, %c0_i32 : i32, i32
  }
}

</mosaic_0001>

<llo_original>
// kernel: dispatcher_model_forward.5
$region0: #{dispatcher_model_forward.5}
  #allocation0 [shape = 'u32[]', space=smem, size = 0x4, offset = 0x4, fixed_abs, tag = 'smem constant byte address 0x4 - core index']
  #allocation1 [shape = 'u32[144,128]{1,0:T(1,128)}', space=vmem, size = 0x12000, scoped, tag = 'internal scratch']
  %s0 = inlined_call_operand.vmem [shape: f32[16,32], index: 0, kind: input, shape index: {}]
  %s1 = inlined_call_operand.vmem [shape: f32[32,32], index: 1, kind: input, shape index: {}]
  %s2 = inlined_call_operand.vmem [shape: f32[32,12], index: 2, kind: input, shape index: {}]
  %s3 = inlined_call_operand.vmem [shape: f32[16,32], index: 3, kind: output, shape index: {0}]
  %s4 = inlined_call_operand.vmem [shape: f32[16,12], index: 4, kind: output, shape index: {1}]
  %5 = xla_tuple %s3, %s4
  %s6 = sld [smem:[#allocation0]]
  $region53: #{dispatcher_model_forward.5} parent=0
    _
  %s8 = ssub.s32 1, %s6
  %s9 = scalar_select 0, %s8, %s6
  loop: start=0, step=1, limit=4
  $region2: #{dispatcher_model_forward.5} parent=0 // loop_pre_header
    _
  $region3: #{dispatcher_model_forward.5} parent=0 // loop_header
    %s11 = sphi 0, %s15
    %p12 = scmp.ge.s32.totalorder %s11, 4
    %s21 = sphi 0, %s23
    %s24 = sphi 0, %s21
    %s25 = sphi 0, %s24
    %s41 = sphi 0, %s25
    %s45 = sphi 0, %s45
    %s47 = sphi 0, %s45
    %s48 = sphi 0, %s47
    %s62 = sphi 0, %s48
    %s66 = sphi 0, %s66
    %s68 = sphi 0, %s66
    %s69 = sphi 0, %s68
    %s83 = sphi 0, %s69
    %s89 = sphi 0, %s91
    %s92 = sphi 0, %s89
    %s93 = sphi 0, %s92
    %s109 = sphi 0, %s93
    %s115 = sphi 0, %s117
    %s118 = sphi 0, %s115
    %s119 = sphi 0, %s118
    %s135 = sphi 0, %s119
  $region4: #{dispatcher_model_forward.5} parent=0 // loop_header_branch
    %14 = sbr.rel (%p12) target = $region8
  $region5: #{dispatcher_model_forward.5} parent=0 // loop_body
    %s16 = ssub.s32 %s11, 1
    %s17 = ssub.s32 %s11, 2
    %s18 = sadd.s32 %s11, 1
    %s19 = ssub.s32 %s11, %s18
    %p20 = scmp.eq.s32.totalorder %s19, 0
    %s22 = sadd.s32 %s21, 1
    %s23 = scalar_select %p20, %s21, %s22
    %p26 = pneg %p20
    %p27 = scmp.eq.s32.totalorder %s11, 1
    %p28 = por %p26, %p27
    %p29 = scmp.ne.s32.totalorder %s21, %s24
    %p30 = scmp.eq.s32.totalorder %s11, 0
    %p31 = por %p29, %p30
    %p32 = scmp.ne.s32.totalorder %s21, %s24
    %p33 = scmp.eq.s32.totalorder %s16, 1
    %p34 = por %p32, %p33
    %p35 = scmp.ne.s32.totalorder %s24, %s25
    %p36 = scmp.eq.s32.totalorder %s16, 0
    %p37 = por %p35, %p36
    %p38 = scmp.ne.s32.totalorder %s24, %s25
    %p39 = scmp.eq.s32.totalorder %s17, 1
    %p40 = por %p38, %p39
    %p42 = scmp.ne.s32.totalorder %s25, %s41
    %p43 = scmp.eq.s32.totalorder %s17, 0
    %p44 = por %p42, %p43
    %s46 = sadd.s32 %s45, 1
    %p49 = scmp.eq.s32.totalorder %s11, 1
    %p50 = scmp.ne.s32.totalorder %s45, %s47
    %p51 = scmp.eq.s32.totalorder %s11, 0
    %p52 = por %p50, %p51
    %p53 = scmp.ne.s32.totalorder %s45, %s47
    %p54 = scmp.eq.s32.totalorder %s16, 1
    %p55 = por %p53, %p54
    %p56 = scmp.ne.s32.totalorder %s47, %s48
    %p57 = scmp.eq.s32.totalorder %s16, 0
    %p58 = por %p56, %p57
    %p59 = scmp.ne.s32.totalorder %s47, %s48
    %p60 = scmp.eq.s32.totalorder %s17, 1
    %p61 = por %p59, %p60
    %p63 = scmp.ne.s32.totalorder %s48, %s62
    %p64 = scmp.eq.s32.totalorder %s17, 0
    %p65 = por %p63, %p64
    %s67 = sadd.s32 %s66, 1
    %p70 = scmp.eq.s32.totalorder %s11, 1
    %p71 = scmp.ne.s32.totalorder %s66, %s68
    %p72 = scmp.eq.s32.totalorder %s11, 0
    %p73 = por %p71, %p72
    %p74 = scmp.ne.s32.totalorder %s66, %s68
    %p75 = scmp.eq.s32.totalorder %s16, 1
    %p76 = por %p74, %p75
    %p77 = scmp.ne.s32.totalorder %s68, %s69
    %p78 = scmp.eq.s32.totalorder %s16, 0
    %p79 = por %p77, %p78
    %p80 = scmp.ne.s32.totalorder %s68, %s69
    %p81 = scmp.eq.s32.totalorder %s17, 1
    %p82 = por %p80, %p81
    %p84 = scmp.ne.s32.totalorder %s69, %s83
    %p85 = scmp.eq.s32.totalorder %s17, 0
    %p86 = por %p84, %p85
    %s87 = ssub.s32 %s11, %s18
    %p88 = scmp.eq.s32.totalorder %s87, 0
    %s90 = sadd.s32 %s89, 1
    %s91 = scalar_select %p88, %s89, %s90
    %p94 = pneg %p88
    %p95 = scmp.eq.s32.totalorder %s11, 1
    %p96 = por %p94, %p95
    %p97 = scmp.ne.s32.totalorder %s89, %s92
    %p98 = scmp.eq.s32.totalorder %s11, 0
    %p99 = por %p97, %p98
    %p100 = scmp.ne.s32.totalorder %s89, %s92
    %p101 = scmp.eq.s32.totalorder %s16, 1
    %p102 = por %p100, %p101
    %p103 = scmp.ne.s32.totalorder %s92, %s93
    %p104 = scmp.eq.s32.totalorder %s16, 0
    %p105 = por %p103, %p104
    %p106 = scmp.ne.s32.totalorder %s92, %s93
    %p107 = scmp.eq.s32.totalorder %s17, 1
    %p108 = por %p106, %p107
    %p110 = scmp.ne.s32.totalorder %s93, %s109
    %p111 = scmp.eq.s32.totalorder %s17, 0
    %p112 = por %p110, %p111
    %s113 = ssub.s32 %s11, %s18
    %p114 = scmp.eq.s32.totalorder %s113, 0
    %s116 = sadd.s32 %s115, 1
    %s117 = scalar_select %p114, %s115, %s116
    %p120 = pneg %p114
    %p121 = scmp.eq.s32.totalorder %s11, 1
    %p122 = por %p120, %p121
    %p123 = scmp.ne.s32.totalorder %s115, %s118
    %p124 = scmp.eq.s32.totalorder %s11, 0
    %p125 = por %p123, %p124
    %p126 = scmp.ne.s32.totalorder %s115, %s118
    %p127 = scmp.eq.s32.totalorder %s16, 1
    %p128 = por %p126, %p127
    %p129 = scmp.ne.s32.totalorder %s118, %s119
    %p130 = scmp.eq.s32.totalorder %s16, 0
    %p131 = por %p129, %p130
    %p132 = scmp.ne.s32.totalorder %s118, %s119
    %p133 = scmp.eq.s32.totalorder %s17, 1
    %p134 = por %p132, %p133
    %p136 = scmp.ne.s32.totalorder %s119, %s135
    %p137 = scmp.eq.s32.totalorder %s17, 0
    %p138 = por %p136, %p137
    %p139 = scmp.le.s32.totalorder 1, %s11
    %p140 = scmp.lt.s32.totalorder %s11, 3
    %p141 = pnand %p139, %p140
    %p142 = pneg %p141
    // Predicated region
    $region9: #{dispatcher_model_forward.5} parent=5 // pred_check
      _
    $region10: #{dispatcher_model_forward.5} parent=5 // pred_check_branch
      %144 = sbr.rel (%p141) target = $region12
    $region11: #{dispatcher_model_forward.5} parent=5 // pred_region
      %s145 = ssub.s32 %s11, 1
      // Predicated region
      $region13: #{dispatcher_model_forward.5} parent=11 // pred_check
        %p146 = pneg %p58
      $region14: #{dispatcher_model_forward.5} parent=11 // pred_check_branch
        %148 = sbr.rel (%p146) target = $region16
      $region15: #{dispatcher_model_forward.5} parent=11 // pred_region
        _
      $region16: #{dispatcher_model_forward.5} parent=11 // pred_fallthru
        _
      // Predicated region
      $region17: #{dispatcher_model_forward.5} parent=11 // pred_check
        %p149 = pneg %p79
      $region18: #{dispatcher_model_forward.5} parent=11 // pred_check_branch
        %151 = sbr.rel (%p149) target = $region20
      $region19: #{dispatcher_model_forward.5} parent=11 // pred_region
        _
      $region20: #{dispatcher_model_forward.5} parent=11 // pred_fallthru
        _
    $region12: #{dispatcher_model_forward.5} parent=5 // pred_fallthru
      _
    %p152 = scmp.lt.s32.totalorder %s11, 2
    // Predicated region
    $region21: #{dispatcher_model_forward.5} parent=5 // pred_check
      %p153 = pneg %p152
    $region22: #{dispatcher_model_forward.5} parent=5 // pred_check_branch
      %155 = sbr.rel (%p153) target = $region24
    $region23: #{dispatcher_model_forward.5} parent=5 // pred_region
      // Predicated region
      $region25: #{dispatcher_model_forward.5} parent=23 // pred_check
        %p156 = pneg %p31
      $region26: #{dispatcher_model_forward.5} parent=23 // pred_check_branch
        %158 = sbr.rel (%p156) target = $region28
      $region27: #{dispatcher_model_forward.5} parent=23 // pred_region
        %p159 = scmp.lt.s32.totalorder %s11, 1
        %s160 = scalar_select %p159, %s11, 1
        %s161 = smul.addr %s160, 8
        %s162 = scalar_lea.vmem %s0, %s161
      $region28: #{dispatcher_model_forward.5} parent=23 // pred_fallthru
        _
    $region24: #{dispatcher_model_forward.5} parent=5 // pred_fallthru
      _
    %p163 = scmp.le.s32.totalorder 1, %s11
    %p164 = scmp.lt.s32.totalorder %s11, 3
    %p165 = pnand %p163, %p164
    %p166 = pneg %p165
    // Predicated region
    $region29: #{dispatcher_model_forward.5} parent=5 // pred_check
      _
    $region30: #{dispatcher_model_forward.5} parent=5 // pred_check_branch
      %168 = sbr.rel (%p165) target = $region32
    $region31: #{dispatcher_model_forward.5} parent=5 // pred_region
      %s169 = ssub.s32 %s11, 1
      %p170 = scmp.lt.s32.totalorder %s16, 1
      %s171 = scalar_select %p170, %s16, 1
      %s172 = smul.addr %s171, 8
      %s173 = scalar_lea.vmem %s0, %s172
      %p174 = pneg %p37
      %p175 = pneg %p34
      %p176 = pneg %p58
      %p177 = pneg %p55
      %p178 = pneg %p79
      %p179 = pneg %p76
      %p180 = pneg %p105
      %p181 = pneg %p102
      %p182 = scmp.lt.s32.totalorder %s16, 1
      %s183 = scalar_select %p182, %s16, 1
      %s184 = smul.addr %s183, 8
      %s185 = scalar_lea.vmem %s3, %s184
      %p186 = pneg %p131
      %p187 = pneg %p128
      %p188 = scmp.lt.s32.totalorder %s16, 1
      %s189 = scalar_select %p188, %s16, 1
      %s190 = smul.addr %s189, 8
      %s191 = scalar_lea.vmem %s4, %s190
      %p192 = scmp.lt.s32.totalorder %s16, 1
      %s193 = scalar_select %p192, %s16, 1
      %s194 = smul.addr %s193, 8
      %s195 = scalar_lea.vmem %s0, %s194
      %p196 = scmp.lt.s32.totalorder %s16, 1
      %s197 = scalar_select %p196, %s16, 1
      %s198 = smul.addr %s197, 8
      %s199 = scalar_lea.vmem %s3, %s198
      %p200 = scmp.lt.s32.totalorder %s16, 1
      %s201 = scalar_select %p200, %s16, 1
      %s202 = smul.addr %s201, 8
      %s203 = scalar_lea.vmem %s4, %s202
      %v204 = vld [vmem:[%s195] sm:$0xff]
      %v205 = vld [vmem:[%s1] sm:$0xff]
      %v206 = vld [vmem:[%s1 + $0x8] sm:$0xff]
      %v207 = vld [vmem:[%s1 + $0x10] sm:$0xff]
      %v208 = vld [vmem:[%s1 + $0x18] sm:$0xff]
      %vm209 = vcmask 261120
      %v211 = vsel %vm209, %v204, 0
      %213 = vmatprep.subr.mxu0 0.0
      %214 = vmatpush1.msra.mxu0 0.0
      %215 = vmatprep.subr.mxu0 0.0
      %216 = vmatpush1.msra.mxu0 0.0
      %217 = vmatprep.subr.mxu0 0.0
      %218 = vmatpush1.msra.mxu0 0.0
      %219 = vmatprep.subr.mxu0 0.0
      %220 = vmatpush1.msra.mxu0 0.0
      %221 = vmatprep.subr.mxu0 0.0
      %222 = vmatpush1.msra.mxu0 0.0
      %223 = vmatprep.subr.mxu0 0.0
      %224 = vmatpush1.msra.mxu0 0.0
      %225 = vmatprep.subr.mxu0 0.0
      %226 = vmatpush1.msra.mxu0 0.0
      %227 = vmatprep.subr.mxu0 0.0
      %228 = vmatpush1.msra.mxu0 0.0
      %229 = vmatprep.subr.mxu0 0.0
      %230 = vmatpush1.msra.mxu0 0.0
      %231 = vmatprep.subr.mxu0 0.0
      %232 = vmatpush1.msra.mxu0 0.0
      %233 = vmatprep.subr.mxu0 0.0
      %234 = vmatpush1.msra.mxu0 0.0
      %235 = vmatprep.subr.mxu0 0.0
      %236 = vmatpush1.msra.mxu0 0.0
      %237 = vmatprep.subr.mxu0 0.0
      %238 = vmatpush1.msra.mxu0 %v208
      %239 = vmatprep.subr.mxu0 0.0
      %240 = vmatpush1.msra.mxu0 %v207
      %241 = vmatprep.subr.mxu0 0.0
      %242 = vmatpush1.msra.mxu0 %v206
      %243 = vmatprep.subr.mxu0 0.0
      %244 = vmatpush1.msra.mxu0 %v205
      %245 = vmatprep.subr.mxu0 0.0
      %246 = vmatpush2.msra.mxu0 0.0
      %247 = vmatprep.subr.mxu0 0.0
      %248 = vmatpush2.msra.mxu0 0.0
      %249 = vmatprep.subr.mxu0 0.0
      %250 = vmatpush2.msra.mxu0 0.0
      %251 = vmatprep.subr.mxu0 0.0
      %252 = vmatpush2.msra.mxu0 0.0
      %253 = vmatprep.subr.mxu0 0.0
      %254 = vmatpush2.msra.mxu0 0.0
      %255 = vmatprep.subr.mxu0 0.0
      %256 = vmatpush2.msra.mxu0 0.0
      %257 = vmatprep.subr.mxu0 0.0
      %258 = vmatpush2.msra.mxu0 0.0
      %259 = vmatprep.subr.mxu0 0.0
      %260 = vmatpush2.msra.mxu0 0.0
      %261 = vmatprep.subr.mxu0 0.0
      %262 = vmatpush2.msra.mxu0 0.0
      %263 = vmatprep.subr.mxu0 0.0
      %264 = vmatpush2.msra.mxu0 0.0
      %265 = vmatprep.subr.mxu0 0.0
      %266 = vmatpush2.msra.mxu0 0.0
      %267 = vmatprep.subr.mxu0 0.0
      %268 = vmatpush2.msra.mxu0 0.0
      %269 = vmatprep.subr.mxu0 0.0
      %270 = vmatpush2.msra.mxu0 0.0
      %271 = vmatprep.subr.mxu0 0.0
      %272 = vmatpush2.msra.mxu0 0.0
      %273 = vmatprep.subr.mxu0 0.0
      %274 = vmatpush2.msra.mxu0 0.0
      %275 = vmatprep.subr.mxu0 0.0
      %276 = vmatpush2.msra.mxu0 0.0
      %277 = vmatprep.mubr.f32.mxu0 0.0
      %278 = vmatmul.mubr.f32.gmra.mxu0 %v211
      %v279 = vpop.f32.mrf.mxu0
      %v280 = vadd.f32 0.0, %v279
      %v281 = vpop.f32.mrf.mxu0
      %282 = vdwg.mxu0
      %283 = vst.msk [vmem:[%s199] sm:$0xff] %vm209, %v280
      %v284 = vld [vmem:[%s2] sm:$0xff]
      %v285 = vld [vmem:[%s2 + $0x8] sm:$0xff]
      %v286 = vld [vmem:[%s2 + $0x10] sm:$0xff]
      %v287 = vld [vmem:[%s2 + $0x18] sm:$0xff]
      %288 = vmatprep.subr.mxu0 0.0
      %289 = vmatpush1.msra.mxu0 0.0
      %290 = vmatprep.subr.mxu0 0.0
      %291 = vmatpush1.msra.mxu0 0.0
      %292 = vmatprep.subr.mxu0 0.0
      %293 = vmatpush1.msra.mxu0 0.0
      %294 = vmatprep.subr.mxu0 0.0
      %295 = vmatpush1.msra.mxu0 0.0
      %296 = vmatprep.subr.mxu0 0.0
      %297 = vmatpush1.msra.mxu0 0.0
      %298 = vmatprep.subr.mxu0 0.0
      %299 = vmatpush1.msra.mxu0 0.0
      %300 = vmatprep.subr.mxu0 0.0
      %301 = vmatpush1.msra.mxu0 0.0
      %302 = vmatprep.subr.mxu0 0.0
      %303 = vmatpush1.msra.mxu0 0.0
      %304 = vmatprep.subr.mxu0 0.0
      %305 = vmatpush1.msra.mxu0 0.0
      %306 = vmatprep.subr.mxu0 0.0
      %307 = vmatpush1.msra.mxu0 0.0
      %308 = vmatprep.subr.mxu0 0.0
      %309 = vmatpush1.msra.mxu0 0.0
      %310 = vmatprep.subr.mxu0 0.0
      %311 = vmatpush1.msra.mxu0 0.0
      %312 = vmatprep.subr.mxu0 0.0
      %313 = vmatpush1.msra.mxu0 %v287
      %314 = vmatprep.subr.mxu0 0.0
      %315 = vmatpush1.msra.mxu0 %v286
      %316 = vmatprep.subr.mxu0 0.0
      %317 = vmatpush1.msra.mxu0 %v285
      %318 = vmatprep.subr.mxu0 0.0
      %319 = vmatpush1.msra.mxu0 %v284
      %320 = vmatprep.subr.mxu0 0.0
      %321 = vmatpush2.msra.mxu0 0.0
      %322 = vmatprep.subr.mxu0 0.0
      %323 = vmatpush2.msra.mxu0 0.0
      %324 = vmatprep.subr.mxu0 0.0
      %325 = vmatpush2.msra.mxu0 0.0
      %326 = vmatprep.subr.mxu0 0.0
      %327 = vmatpush2.msra.mxu0 0.0
      %328 = vmatprep.subr.mxu0 0.0
      %329 = vmatpush2.msra.mxu0 0.0
      %330 = vmatprep.subr.mxu0 0.0
      %331 = vmatpush2.msra.mxu0 0.0
      %332 = vmatprep.subr.mxu0 0.0
      %333 = vmatpush2.msra.mxu0 0.0
      %334 = vmatprep.subr.mxu0 0.0
      %335 = vmatpush2.msra.mxu0 0.0
      %336 = vmatprep.subr.mxu0 0.0
      %337 = vmatpush2.msra.mxu0 0.0
      %338 = vmatprep.subr.mxu0 0.0
      %339 = vmatpush2.msra.mxu0 0.0
      %340 = vmatprep.subr.mxu0 0.0
      %341 = vmatpush2.msra.mxu0 0.0
      %342 = vmatprep.subr.mxu0 0.0
      %343 = vmatpush2.msra.mxu0 0.0
      %344 = vmatprep.subr.mxu0 0.0
      %345 = vmatpush2.msra.mxu0 0.0
      %346 = vmatprep.subr.mxu0 0.0
      %347 = vmatpush2.msra.mxu0 0.0
      %348 = vmatprep.subr.mxu0 0.0
      %349 = vmatpush2.msra.mxu0 0.0
      %350 = vmatprep.subr.mxu0 0.0
      %351 = vmatpush2.msra.mxu0 0.0
      %352 = vmatprep.mubr.f32.mxu0 0.0
      %353 = vmatmul.mubr.f32.gmra.mxu0 %v211
      %v354 = vpop.f32.mrf.mxu0
      %v355 = vadd.f32 0.0, %v354
      %v356 = vpop.f32.mrf.mxu0
      %357 = vdwg.mxu0
      %vm358 = vcmask 97280
      %359 = vst.msk [vmem:[%s203] sm:$0xff] %vm358, %v355
      %p360 = scmp.lt.s32.totalorder %s16, 1
      %s361 = scalar_select %p360, %s16, 1
      %s362 = smul.addr %s361, 8
      %s363 = scalar_lea.vmem %s3, %s362
      %p364 = scmp.lt.s32.totalorder %s16, 1
      %s365 = scalar_select %p364, %s16, 1
      %s366 = smul.addr %s365, 8
      %s367 = scalar_lea.vmem %s4, %s366
      // Predicated region
      $region33: #{dispatcher_model_forward.5} parent=31 // pred_check
        %p368 = pneg %p102
      $region34: #{dispatcher_model_forward.5} parent=31 // pred_check_branch
        %370 = sbr.rel (%p368) target = $region36
      $region35: #{dispatcher_model_forward.5} parent=31 // pred_region
        _
      $region36: #{dispatcher_model_forward.5} parent=31 // pred_fallthru
        _
      // Predicated region
      $region37: #{dispatcher_model_forward.5} parent=31 // pred_check
        %p371 = pneg %p128
      $region38: #{dispatcher_model_forward.5} parent=31 // pred_check_branch
        %373 = sbr.rel (%p371) target = $region40
      $region39: #{dispatcher_model_forward.5} parent=31 // pred_region
        _
      $region40: #{dispatcher_model_forward.5} parent=31 // pred_fallthru
        _
    $region32: #{dispatcher_model_forward.5} parent=5 // pred_fallthru
      _
    %p374 = scmp.le.s32.totalorder 2, %s11
    // Predicated region
    $region41: #{dispatcher_model_forward.5} parent=5 // pred_check
      %p375 = pneg %p374
    $region42: #{dispatcher_model_forward.5} parent=5 // pred_check_branch
      %377 = sbr.rel (%p375) target = $region44
    $region43: #{dispatcher_model_forward.5} parent=5 // pred_region
      %s378 = ssub.s32 %s11, 2
      // Predicated region
      $region45: #{dispatcher_model_forward.5} parent=43 // pred_check
        %p379 = pneg %p108
      $region46: #{dispatcher_model_forward.5} parent=43 // pred_check_branch
        %381 = sbr.rel (%p379) target = $region48
      $region47: #{dispatcher_model_forward.5} parent=43 // pred_region
        %p382 = scmp.lt.s32.totalorder %s17, 1
        %s383 = scalar_select %p382, %s17, 1
        %s384 = smul.addr %s383, 8
        %s385 = scalar_lea.vmem %s3, %s384
      $region48: #{dispatcher_model_forward.5} parent=43 // pred_fallthru
        _
      // Predicated region
      $region49: #{dispatcher_model_forward.5} parent=43 // pred_check
        %p386 = pneg %p134
      $region50: #{dispatcher_model_forward.5} parent=43 // pred_check_branch
        %388 = sbr.rel (%p386) target = $region52
      $region51: #{dispatcher_model_forward.5} parent=43 // pred_region
        %p389 = scmp.lt.s32.totalorder %s17, 1
        %s390 = scalar_select %p389, %s17, 1
        %s391 = smul.addr %s390, 8
        %s392 = scalar_lea.vmem %s4, %s391
      $region52: #{dispatcher_model_forward.5} parent=43 // pred_fallthru
        _
    $region44: #{dispatcher_model_forward.5} parent=5 // pred_fallthru
      _
  $region6: #{dispatcher_model_forward.5} parent=0 // loop_footer
    %s15 = sadd.s32 1, %s11
  $region7: #{dispatcher_model_forward.5} parent=0 // loop_footer_branch
    %10 = sbr.rel target = $region3
  $region8: #{dispatcher_model_forward.5} parent=0 // loop_exit
    _

// kernel: dispatcher_model_forward.6
$region0: #{dispatcher_model_forward.6}
  #allocation0 [shape = 'u32[]', space=smem, size = 0x4, offset = 0x4, fixed_abs, tag = 'smem constant byte address 0x4 - core index']
  #allocation1 [shape = 'u32[144,128]{1,0:T(1,128)}', space=vmem, size = 0x12000, scoped, tag = 'internal scratch']
  %s0 = inlined_call_operand.vmem [shape: f32[8,8,8], index: 0, kind: input, shape index: {}]
  %s1 = inlined_call_operand.vmem [shape: f32[8,8,3], index: 1, kind: input, shape index: {}]
  %s2 = inlined_call_operand.vmem [shape: f32[8,3], index: 2, kind: input, shape index: {}]
  %s3 = inlined_call_operand.vmem [shape: f32[8,8,8], index: 3, kind: output, shape index: {}]
  %s4 = sld [smem:[#allocation0]]
  $region45: #{dispatcher_model_forward.6} parent=0
    _
  %s6 = ssub.s32 1, %s4
  %s7 = scalar_select 0, %s6, %s4
  loop: start=0, step=1, limit=4
  $region2: #{dispatcher_model_forward.6} parent=0 // loop_pre_header
    _
  $region3: #{dispatcher_model_forward.6} parent=0 // loop_header
    %s9 = sphi 0, %s13
    %p10 = scmp.ge.s32.totalorder %s9, 4
    %s19 = sphi 0, %s21
    %s22 = sphi 0, %s19
    %s23 = sphi 0, %s22
    %s39 = sphi 0, %s23
    %s45 = sphi 0, %s47
    %s48 = sphi 0, %s45
    %s49 = sphi 0, %s48
    %s65 = sphi 0, %s49
    %s69 = sphi 0, %s69
    %s71 = sphi 0, %s69
    %s72 = sphi 0, %s71
    %s86 = sphi 0, %s72
    %s92 = sphi 0, %s94
    %s95 = sphi 0, %s92
    %s96 = sphi 0, %s95
    %s112 = sphi 0, %s96
  $region4: #{dispatcher_model_forward.6} parent=0 // loop_header_branch
    %12 = sbr.rel (%p10) target = $region8
  $region5: #{dispatcher_model_forward.6} parent=0 // loop_body
    %s14 = ssub.s32 %s9, 1
    %s15 = ssub.s32 %s9, 2
    %s16 = sadd.s32 %s9, 1
    %s17 = ssub.s32 %s9, %s16
    %p18 = scmp.eq.s32.totalorder %s17, 0
    %s20 = sadd.s32 %s19, 1
    %s21 = scalar_select %p18, %s19, %s20
    %p24 = pneg %p18
    %p25 = scmp.eq.s32.totalorder %s9, 1
    %p26 = por %p24, %p25
    %p27 = scmp.ne.s32.totalorder %s19, %s22
    %p28 = scmp.eq.s32.totalorder %s9, 0
    %p29 = por %p27, %p28
    %p30 = scmp.ne.s32.totalorder %s19, %s22
    %p31 = scmp.eq.s32.totalorder %s14, 1
    %p32 = por %p30, %p31
    %p33 = scmp.ne.s32.totalorder %s22, %s23
    %p34 = scmp.eq.s32.totalorder %s14, 0
    %p35 = por %p33, %p34
    %p36 = scmp.ne.s32.totalorder %s22, %s23
    %p37 = scmp.eq.s32.totalorder %s15, 1
    %p38 = por %p36, %p37
    %p40 = scmp.ne.s32.totalorder %s23, %s39
    %p41 = scmp.eq.s32.totalorder %s15, 0
    %p42 = por %p40, %p41
    %s43 = ssub.s32 %s9, %s16
    %p44 = scmp.eq.s32.totalorder %s43, 0
    %s46 = sadd.s32 %s45, 1
    %s47 = scalar_select %p44, %s45, %s46
    %p50 = pneg %p44
    %p51 = scmp.eq.s32.totalorder %s9, 1
    %p52 = por %p50, %p51
    %p53 = scmp.ne.s32.totalorder %s45, %s48
    %p54 = scmp.eq.s32.totalorder %s9, 0
    %p55 = por %p53, %p54
    %p56 = scmp.ne.s32.totalorder %s45, %s48
    %p57 = scmp.eq.s32.totalorder %s14, 1
    %p58 = por %p56, %p57
    %p59 = scmp.ne.s32.totalorder %s48, %s49
    %p60 = scmp.eq.s32.totalorder %s14, 0
    %p61 = por %p59, %p60
    %p62 = scmp.ne.s32.totalorder %s48, %s49
    %p63 = scmp.eq.s32.totalorder %s15, 1
    %p64 = por %p62, %p63
    %p66 = scmp.ne.s32.totalorder %s49, %s65
    %p67 = scmp.eq.s32.totalorder %s15, 0
    %p68 = por %p66, %p67
    %s70 = sadd.s32 %s69, 1
    %p73 = scmp.eq.s32.totalorder %s9, 1
    %p74 = scmp.ne.s32.totalorder %s69, %s71
    %p75 = scmp.eq.s32.totalorder %s9, 0
    %p76 = por %p74, %p75
    %p77 = scmp.ne.s32.totalorder %s69, %s71
    %p78 = scmp.eq.s32.totalorder %s14, 1
    %p79 = por %p77, %p78
    %p80 = scmp.ne.s32.totalorder %s71, %s72
    %p81 = scmp.eq.s32.totalorder %s14, 0
    %p82 = por %p80, %p81
    %p83 = scmp.ne.s32.totalorder %s71, %s72
    %p84 = scmp.eq.s32.totalorder %s15, 1
    %p85 = por %p83, %p84
    %p87 = scmp.ne.s32.totalorder %s72, %s86
    %p88 = scmp.eq.s32.totalorder %s15, 0
    %p89 = por %p87, %p88
    %s90 = ssub.s32 %s9, %s16
    %p91 = scmp.eq.s32.totalorder %s90, 0
    %s93 = sadd.s32 %s92, 1
    %s94 = scalar_select %p91, %s92, %s93
    %p97 = pneg %p91
    %p98 = scmp.eq.s32.totalorder %s9, 1
    %p99 = por %p97, %p98
    %p100 = scmp.ne.s32.totalorder %s92, %s95
    %p101 = scmp.eq.s32.totalorder %s9, 0
    %p102 = por %p100, %p101
    %p103 = scmp.ne.s32.totalorder %s92, %s95
    %p104 = scmp.eq.s32.totalorder %s14, 1
    %p105 = por %p103, %p104
    %p106 = scmp.ne.s32.totalorder %s95, %s96
    %p107 = scmp.eq.s32.totalorder %s14, 0
    %p108 = por %p106, %p107
    %p109 = scmp.ne.s32.totalorder %s95, %s96
    %p110 = scmp.eq.s32.totalorder %s15, 1
    %p111 = por %p109, %p110
    %p113 = scmp.ne.s32.totalorder %s96, %s112
    %p114 = scmp.eq.s32.totalorder %s15, 0
    %p115 = por %p113, %p114
    %p116 = scmp.le.s32.totalorder 1, %s9
    %p117 = scmp.lt.s32.totalorder %s9, 3
    %p118 = pnand %p116, %p117
    %p119 = pneg %p118
    // Predicated region
    $region9: #{dispatcher_model_forward.6} parent=5 // pred_check
      _
    $region10: #{dispatcher_model_forward.6} parent=5 // pred_check_branch
      %121 = sbr.rel (%p118) target = $region12
    $region11: #{dispatcher_model_forward.6} parent=5 // pred_region
      %s122 = ssub.s32 %s9, 1
      // Predicated region
      $region13: #{dispatcher_model_forward.6} parent=11 // pred_check
        %p123 = pneg %p82
      $region14: #{dispatcher_model_forward.6} parent=11 // pred_check_branch
        %125 = sbr.rel (%p123) target = $region16
      $region15: #{dispatcher_model_forward.6} parent=11 // pred_region
        _
      $region16: #{dispatcher_model_forward.6} parent=11 // pred_fallthru
        _
    $region12: #{dispatcher_model_forward.6} parent=5 // pred_fallthru
      _
    %p126 = scmp.lt.s32.totalorder %s9, 2
    // Predicated region
    $region17: #{dispatcher_model_forward.6} parent=5 // pred_check
      %p127 = pneg %p126
    $region18: #{dispatcher_model_forward.6} parent=5 // pred_check_branch
      %129 = sbr.rel (%p127) target = $region20
    $region19: #{dispatcher_model_forward.6} parent=5 // pred_region
      // Predicated region
      $region21: #{dispatcher_model_forward.6} parent=19 // pred_check
        %p130 = pneg %p29
      $region22: #{dispatcher_model_forward.6} parent=19 // pred_check_branch
        %132 = sbr.rel (%p130) target = $region24
      $region23: #{dispatcher_model_forward.6} parent=19 // pred_region
        %s133 = smul.u32 4, %s9
        %p134 = scmp.lt.s32.totalorder %s133, 7
        %s135 = scalar_select %p134, %s133, 7
        %s136 = smul.addr %s135, 8
        %s137 = scalar_lea.vmem %s0, %s136
        %s138 = smul.u32 4, %s9
      $region24: #{dispatcher_model_forward.6} parent=19 // pred_fallthru
        _
      // Predicated region
      $region25: #{dispatcher_model_forward.6} parent=19 // pred_check
        %p139 = pneg %p55
      $region26: #{dispatcher_model_forward.6} parent=19 // pred_check_branch
        %141 = sbr.rel (%p139) target = $region28
      $region27: #{dispatcher_model_forward.6} parent=19 // pred_region
        %s142 = smul.u32 4, %s9
        %p143 = scmp.lt.s32.totalorder %s142, 7
        %s144 = scalar_select %p143, %s142, 7
        %s145 = smul.addr %s144, 8
        %s146 = scalar_lea.vmem %s1, %s145
        %s147 = smul.u32 4, %s9
      $region28: #{dispatcher_model_forward.6} parent=19 // pred_fallthru
        _
    $region20: #{dispatcher_model_forward.6} parent=5 // pred_fallthru
      _
    %p148 = scmp.le.s32.totalorder 1, %s9
    %p149 = scmp.lt.s32.totalorder %s9, 3
    %p150 = pnand %p148, %p149
    %p151 = pneg %p150
    // Predicated region
    $region29: #{dispatcher_model_forward.6} parent=5 // pred_check
      _
    $region30: #{dispatcher_model_forward.6} parent=5 // pred_check_branch
      %153 = sbr.rel (%p150) target = $region32
    $region31: #{dispatcher_model_forward.6} parent=5 // pred_region
      %s154 = ssub.s32 %s9, 1
      %s155 = smul.u32 4, %s14
      %p156 = scmp.lt.s32.totalorder %s155, 7
      %s157 = scalar_select %p156, %s155, 7
      %s158 = smul.addr %s157, 8
      %s159 = scalar_lea.vmem %s0, %s158
      %p160 = pneg %p35
      %p161 = pneg %p32
      %s162 = smul.u32 4, %s14
      %p163 = scmp.lt.s32.totalorder %s162, 7
      %s164 = scalar_select %p163, %s162, 7
      %s165 = smul.addr %s164, 8
      %s166 = scalar_lea.vmem %s1, %s165
      %p167 = pneg %p61
      %p168 = pneg %p58
      %p169 = pneg %p82
      %p170 = pneg %p79
      %p171 = pneg %p108
      %p172 = pneg %p105
      %s173 = smul.u32 4, %s14
      %p174 = scmp.lt.s32.totalorder %s173, 7
      %s175 = scalar_select %p174, %s173, 7
      %s176 = smul.addr %s175, 8
      %s177 = scalar_lea.vmem %s3, %s176
      %s178 = smul.u32 4, %s14
      %p179 = scmp.lt.s32.totalorder %s178, 7
      %s180 = scalar_select %p179, %s178, 7
      %s181 = smul.addr %s180, 8
      %s182 = scalar_lea.vmem %s0, %s181
      %s183 = smul.u32 4, %s14
      %s184 = smul.u32 4, %s14
      %p185 = scmp.lt.s32.totalorder %s184, 7
      %s186 = scalar_select %p185, %s184, 7
      %s187 = smul.addr %s186, 8
      %s188 = scalar_lea.vmem %s1, %s187
      %s189 = smul.u32 4, %s14
      %s190 = smul.u32 4, %s14
      %p191 = scmp.lt.s32.totalorder %s190, 7
      %s192 = scalar_select %p191, %s190, 7
      %s193 = smul.addr %s192, 8
      %s194 = scalar_lea.vmem %s3, %s193
      %s195 = smul.u32 4, %s14
      %v196 = vld [vmem:[%s188] sm:$0xff]
      %v197 = vld [vmem:[%s188 + $0x8] sm:$0xff]
      %v198 = vld [vmem:[%s188 + $0x10] sm:$0xff]
      %v199 = vld [vmem:[%s188 + $0x18] sm:$0xff]
      %v200 = vld [vmem:[%s2] sm:$0xff]
      %v201 = vmul.f32 %v196, %v200
      %v202 = vmul.f32 %v197, %v200
      %v203 = vmul.f32 %v198, %v200
      %v204 = vmul.f32 %v199, %v200
      %v205 = vld [vmem:[%s182] sm:$0xff]
      %v206 = vld [vmem:[%s182 + $0x8] sm:$0xff]
      %v207 = vld [vmem:[%s182 + $0x10] sm:$0xff]
      %v208 = vld [vmem:[%s182 + $0x18] sm:$0xff]
      %vm209 = vcmask 64512
      %210 = vst.msk [vmem:[%s194] sm:$0xff] %vm209, %v205
      %211 = vst.msk [vmem:[%s194 + $0x8] sm:$0xff] %vm209, %v206
      %212 = vst.msk [vmem:[%s194 + $0x10] sm:$0xff] %vm209, %v207
      %213 = vst.msk [vmem:[%s194 + $0x18] sm:$0xff] %vm209, %v208
      %v214 = vld [vmem:[%s194] sm:$0xff]
      %v215 = vld [vmem:[%s194 + $0x8] sm:$0xff]
      %v216 = vld [vmem:[%s194 + $0x10] sm:$0xff]
      %v217 = vld [vmem:[%s194 + $0x18] sm:$0xff]
      %219 = vset.pattern.permute.xlu0 0
      %220 = vperm.xlu0 %219, %v201
      %v221 = vpop.permute.xlu0 %220
      %224 = vset.pattern.permute.xlu0 0
      %225 = vperm.xlu0 %224, %v202
      %v226 = vpop.permute.xlu0 %225
      %229 = vset.pattern.permute.xlu0 0
      %230 = vperm.xlu0 %229, %v203
      %v231 = vpop.permute.xlu0 %230
      %234 = vset.pattern.permute.xlu0 0
      %235 = vperm.xlu0 %234, %v204
      %v236 = vpop.permute.xlu0 %235
      %v242 = vrot.slane %v214, 7
      %v243 = vrot.slane %v215, 7
      %v244 = vrot.slane %v216, 7
      %v245 = vrot.slane %v217, 7
      %v250 = vmul.f32 %v221, %v242
      %v251 = vmul.f32 %v226, %v243
      %v252 = vmul.f32 %v231, %v244
      %v253 = vmul.f32 %v236, %v245
      %v254 = vadd.f32 %v214, %v250
      %v255 = vadd.f32 %v215, %v251
      %v256 = vadd.f32 %v216, %v252
      %v257 = vadd.f32 %v217, %v253
      %vm258 = vcmask 64513
      %259 = vst.msk [vmem:[%s194] sm:$0xfe] %vm258, %v254
      %260 = vst.msk [vmem:[%s194 + $0x8] sm:$0xfe] %vm258, %v255
      %261 = vst.msk [vmem:[%s194 + $0x10] sm:$0xfe] %vm258, %v256
      %262 = vst.msk [vmem:[%s194 + $0x18] sm:$0xfe] %vm258, %v257
      %v263 = vld [vmem:[%s194] sm:$0xff]
      %v264 = vld [vmem:[%s194 + $0x8] sm:$0xff]
      %v265 = vld [vmem:[%s194 + $0x10] sm:$0xff]
      %v266 = vld [vmem:[%s194 + $0x18] sm:$0xff]
      %267 = vset.pattern.permute.xlu0 1
      %268 = vperm.xlu0 %267, %v201
      %v269 = vpop.permute.xlu0 %268
      %271 = vset.pattern.permute.xlu0 1
      %272 = vperm.xlu0 %271, %v202
      %v273 = vpop.permute.xlu0 %272
      %275 = vset.pattern.permute.xlu0 1
      %276 = vperm.xlu0 %275, %v203
      %v277 = vpop.permute.xlu0 %276
      %279 = vset.pattern.permute.xlu0 1
      %280 = vperm.xlu0 %279, %v204
      %v281 = vpop.permute.xlu0 %280
      %v287 = vrot.slane %v263, 6
      %v288 = vrot.slane %v264, 6
      %v289 = vrot.slane %v265, 6
      %v290 = vrot.slane %v266, 6
      %v295 = vmul.f32 %v269, %v287
      %v296 = vmul.f32 %v273, %v288
      %v297 = vmul.f32 %v277, %v289
      %v298 = vmul.f32 %v281, %v290
      %v299 = vadd.f32 %v263, %v295
      %v300 = vadd.f32 %v264, %v296
      %v301 = vadd.f32 %v265, %v297
      %v302 = vadd.f32 %v266, %v298
      %vm303 = vcmask 64514
      %304 = vst.msk [vmem:[%s194] sm:$0xfc] %vm303, %v299
      %305 = vst.msk [vmem:[%s194 + $0x8] sm:$0xfc] %vm303, %v300
      %306 = vst.msk [vmem:[%s194 + $0x10] sm:$0xfc] %vm303, %v301
      %307 = vst.msk [vmem:[%s194 + $0x18] sm:$0xfc] %vm303, %v302
      %v308 = vld [vmem:[%s194] sm:$0xff]
      %v309 = vld [vmem:[%s194 + $0x8] sm:$0xff]
      %v310 = vld [vmem:[%s194 + $0x10] sm:$0xff]
      %v311 = vld [vmem:[%s194 + $0x18] sm:$0xff]
      %312 = vset.pattern.permute.xlu0 2
      %313 = vperm.xlu0 %312, %v201
      %v314 = vpop.permute.xlu0 %313
      %316 = vset.pattern.permute.xlu0 2
      %317 = vperm.xlu0 %316, %v202
      %v318 = vpop.permute.xlu0 %317
      %320 = vset.pattern.permute.xlu0 2
      %321 = vperm.xlu0 %320, %v203
      %v322 = vpop.permute.xlu0 %321
      %324 = vset.pattern.permute.xlu0 2
      %325 = vperm.xlu0 %324, %v204
      %v326 = vpop.permute.xlu0 %325
      %v332 = vrot.slane %v308, 4
      %v333 = vrot.slane %v309, 4
      %v334 = vrot.slane %v310, 4
      %v335 = vrot.slane %v311, 4
      %v340 = vmul.f32 %v314, %v332
      %v341 = vmul.f32 %v318, %v333
      %v342 = vmul.f32 %v322, %v334
      %v343 = vmul.f32 %v326, %v335
      %v344 = vadd.f32 %v308, %v340
      %v345 = vadd.f32 %v309, %v341
      %v346 = vadd.f32 %v310, %v342
      %v347 = vadd.f32 %v311, %v343
      %vm348 = vcmask 64516
      %349 = vst.msk [vmem:[%s194] sm:$0xf0] %vm348, %v344
      %350 = vst.msk [vmem:[%s194 + $0x8] sm:$0xf0] %vm348, %v345
      %351 = vst.msk [vmem:[%s194 + $0x10] sm:$0xf0] %vm348, %v346
      %352 = vst.msk [vmem:[%s194 + $0x18] sm:$0xf0] %vm348, %v347
      %s353 = smul.u32 4, %s14
      %p354 = scmp.lt.s32.totalorder %s353, 7
      %s355 = scalar_select %p354, %s353, 7
      %s356 = smul.addr %s355, 8
      %s357 = scalar_lea.vmem %s3, %s356
      // Predicated region
      $region33: #{dispatcher_model_forward.6} parent=31 // pred_check
        %p358 = pneg %p105
      $region34: #{dispatcher_model_forward.6} parent=31 // pred_check_branch
        %360 = sbr.rel (%p358) target = $region36
      $region35: #{dispatcher_model_forward.6} parent=31 // pred_region
        %s361 = smul.u32 4, %s14
      $region36: #{dispatcher_model_forward.6} parent=31 // pred_fallthru
        _
    $region32: #{dispatcher_model_forward.6} parent=5 // pred_fallthru
      _
    %p362 = scmp.le.s32.totalorder 2, %s9
    // Predicated region
    $region37: #{dispatcher_model_forward.6} parent=5 // pred_check
      %p363 = pneg %p362
    $region38: #{dispatcher_model_forward.6} parent=5 // pred_check_branch
      %365 = sbr.rel (%p363) target = $region40
    $region39: #{dispatcher_model_forward.6} parent=5 // pred_region
      %s366 = ssub.s32 %s9, 2
      // Predicated region
      $region41: #{dispatcher_model_forward.6} parent=39 // pred_check
        %p367 = pneg %p111
      $region42: #{dispatcher_model_forward.6} parent=39 // pred_check_branch
        %369 = sbr.rel (%p367) target = $region44
      $region43: #{dispatcher_model_forward.6} parent=39 // pred_region
        %s370 = smul.u32 4, %s15
        %p371 = scmp.lt.s32.totalorder %s370, 7
        %s372 = scalar_select %p371, %s370, 7
        %s373 = smul.addr %s372, 8
        %s374 = scalar_lea.vmem %s3, %s373
      $region44: #{dispatcher_model_forward.6} parent=39 // pred_fallthru
        _
    $region40: #{dispatcher_model_forward.6} parent=5 // pred_fallthru
      _
  $region6: #{dispatcher_model_forward.6} parent=0 // loop_footer
    %s13 = sadd.s32 1, %s9
  $region7: #{dispatcher_model_forward.6} parent=0 // loop_footer_branch
    %8 = sbr.rel target = $region3
  $region8: #{dispatcher_model_forward.6} parent=0 // loop_exit
    _

// kernel: dispatcher_model_forward.9
$region0: #{dispatcher_model_forward.9}
  #allocation0 [shape = 'u32[]', space=smem, size = 0x4, offset = 0x4, fixed_abs, tag = 'smem constant byte address 0x4 - core index']
  #allocation1 [shape = 'u32[144,128]{1,0:T(1,128)}', space=vmem, size = 0x12000, scoped, tag = 'internal scratch']
  %s0 = inlined_call_operand.vmem [shape: f32[16,32], index: 0, kind: input, shape index: {}]
  %s1 = inlined_call_operand.vmem [shape: f32[16,32], index: 1, kind: input, shape index: {}]
  %s2 = inlined_call_operand.vmem [shape: f32[32,32], index: 2, kind: input, shape index: {}]
  %s3 = inlined_call_operand.vmem [shape: f32[32,64], index: 3, kind: input, shape index: {}]
  %s4 = inlined_call_operand.vmem [shape: f32[1,64], index: 4, kind: input, shape index: {}]
  %s5 = inlined_call_operand.vmem [shape: f32[64,32], index: 5, kind: input, shape index: {}]
  %s6 = inlined_call_operand.vmem [shape: f32[1,32], index: 6, kind: input, shape index: {}]
  %s7 = inlined_call_operand.vmem [shape: f32[1,32], index: 7, kind: input, shape index: {}]
  %s8 = inlined_call_operand.vmem [shape: f32[1,32], index: 8, kind: input, shape index: {}]
  %s9 = inlined_call_operand.vmem [shape: f32[1,32], index: 9, kind: input, shape index: {}]
  %s10 = inlined_call_operand.vmem [shape: f32[1,32], index: 10, kind: input, shape index: {}]
  %s11 = inlined_call_operand.vmem [shape: f32[32,128], index: 11, kind: input, shape index: {}]
  %s12 = inlined_call_operand.vmem [shape: f32[1,128], index: 12, kind: input, shape index: {}]
  %s13 = inlined_call_operand.vmem [shape: f32[16,128], index: 13, kind: output, shape index: {}]
  %s14 = sld [smem:[#allocation0]]
  $region85: #{dispatcher_model_forward.9} parent=0
    _
  %s16 = ssub.s32 1, %s14
  %s17 = scalar_select 0, %s16, %s14
  loop: start=0, step=1, limit=4
  $region2: #{dispatcher_model_forward.9} parent=0 // loop_pre_header
    _
  $region3: #{dispatcher_model_forward.9} parent=0 // loop_header
    %s19 = sphi 0, %s23
    %p20 = scmp.ge.s32.totalorder %s19, 4
    %s29 = sphi 0, %s31
    %s32 = sphi 0, %s29
    %s33 = sphi 0, %s32
    %s49 = sphi 0, %s33
    %s55 = sphi 0, %s57
    %s58 = sphi 0, %s55
    %s59 = sphi 0, %s58
    %s75 = sphi 0, %s59
    %s79 = sphi 0, %s79
    %s81 = sphi 0, %s79
    %s82 = sphi 0, %s81
    %s96 = sphi 0, %s82
    %s100 = sphi 0, %s100
    %s102 = sphi 0, %s100
    %s103 = sphi 0, %s102
    %s117 = sphi 0, %s103
    %s121 = sphi 0, %s121
    %s123 = sphi 0, %s121
    %s124 = sphi 0, %s123
    %s138 = sphi 0, %s124
    %s142 = sphi 0, %s142
    %s144 = sphi 0, %s142
    %s145 = sphi 0, %s144
    %s159 = sphi 0, %s145
    %s163 = sphi 0, %s163
    %s165 = sphi 0, %s163
    %s166 = sphi 0, %s165
    %s180 = sphi 0, %s166
    %s184 = sphi 0, %s184
    %s186 = sphi 0, %s184
    %s187 = sphi 0, %s186
    %s201 = sphi 0, %s187
    %s205 = sphi 0, %s205
    %s207 = sphi 0, %s205
    %s208 = sphi 0, %s207
    %s222 = sphi 0, %s208
    %s226 = sphi 0, %s226
    %s228 = sphi 0, %s226
    %s229 = sphi 0, %s228
    %s243 = sphi 0, %s229
    %s247 = sphi 0, %s247
    %s249 = sphi 0, %s247
    %s250 = sphi 0, %s249
    %s264 = sphi 0, %s250
    %s268 = sphi 0, %s268
    %s270 = sphi 0, %s268
    %s271 = sphi 0, %s270
    %s285 = sphi 0, %s271
    %s289 = sphi 0, %s289
    %s291 = sphi 0, %s289
    %s292 = sphi 0, %s291
    %s306 = sphi 0, %s292
    %s312 = sphi 0, %s314
    %s315 = sphi 0, %s312
    %s316 = sphi 0, %s315
    %s332 = sphi 0, %s316
  $region4: #{dispatcher_model_forward.9} parent=0 // loop_header_branch
    %22 = sbr.rel (%p20) target = $region8
  $region5: #{dispatcher_model_forward.9} parent=0 // loop_body
    %s24 = ssub.s32 %s19, 1
    %s25 = ssub.s32 %s19, 2
    %s26 = sadd.s32 %s19, 1
    %s27 = ssub.s32 %s19, %s26
    %p28 = scmp.eq.s32.totalorder %s27, 0
    %s30 = sadd.s32 %s29, 1
    %s31 = scalar_select %p28, %s29, %s30
    %p34 = pneg %p28
    %p35 = scmp.eq.s32.totalorder %s19, 1
    %p36 = por %p34, %p35
    %p37 = scmp.ne.s32.totalorder %s29, %s32
    %p38 = scmp.eq.s32.totalorder %s19, 0
    %p39 = por %p37, %p38
    %p40 = scmp.ne.s32.totalorder %s29, %s32
    %p41 = scmp.eq.s32.totalorder %s24, 1
    %p42 = por %p40, %p41
    %p43 = scmp.ne.s32.totalorder %s32, %s33
    %p44 = scmp.eq.s32.totalorder %s24, 0
    %p45 = por %p43, %p44
    %p46 = scmp.ne.s32.totalorder %s32, %s33
    %p47 = scmp.eq.s32.totalorder %s25, 1
    %p48 = por %p46, %p47
    %p50 = scmp.ne.s32.totalorder %s33, %s49
    %p51 = scmp.eq.s32.totalorder %s25, 0
    %p52 = por %p50, %p51
    %s53 = ssub.s32 %s19, %s26
    %p54 = scmp.eq.s32.totalorder %s53, 0
    %s56 = sadd.s32 %s55, 1
    %s57 = scalar_select %p54, %s55, %s56
    %p60 = pneg %p54
    %p61 = scmp.eq.s32.totalorder %s19, 1
    %p62 = por %p60, %p61
    %p63 = scmp.ne.s32.totalorder %s55, %s58
    %p64 = scmp.eq.s32.totalorder %s19, 0
    %p65 = por %p63, %p64
    %p66 = scmp.ne.s32.totalorder %s55, %s58
    %p67 = scmp.eq.s32.totalorder %s24, 1
    %p68 = por %p66, %p67
    %p69 = scmp.ne.s32.totalorder %s58, %s59
    %p70 = scmp.eq.s32.totalorder %s24, 0
    %p71 = por %p69, %p70
    %p72 = scmp.ne.s32.totalorder %s58, %s59
    %p73 = scmp.eq.s32.totalorder %s25, 1
    %p74 = por %p72, %p73
    %p76 = scmp.ne.s32.totalorder %s59, %s75
    %p77 = scmp.eq.s32.totalorder %s25, 0
    %p78 = por %p76, %p77
    %s80 = sadd.s32 %s79, 1
    %p83 = scmp.eq.s32.totalorder %s19, 1
    %p84 = scmp.ne.s32.totalorder %s79, %s81
    %p85 = scmp.eq.s32.totalorder %s19, 0
    %p86 = por %p84, %p85
    %p87 = scmp.ne.s32.totalorder %s79, %s81
    %p88 = scmp.eq.s32.totalorder %s24, 1
    %p89 = por %p87, %p88
    %p90 = scmp.ne.s32.totalorder %s81, %s82
    %p91 = scmp.eq.s32.totalorder %s24, 0
    %p92 = por %p90, %p91
    %p93 = scmp.ne.s32.totalorder %s81, %s82
    %p94 = scmp.eq.s32.totalorder %s25, 1
    %p95 = por %p93, %p94
    %p97 = scmp.ne.s32.totalorder %s82, %s96
    %p98 = scmp.eq.s32.totalorder %s25, 0
    %p99 = por %p97, %p98
    %s101 = sadd.s32 %s100, 1
    %p104 = scmp.eq.s32.totalorder %s19, 1
    %p105 = scmp.ne.s32.totalorder %s100, %s102
    %p106 = scmp.eq.s32.totalorder %s19, 0
    %p107 = por %p105, %p106
    %p108 = scmp.ne.s32.totalorder %s100, %s102
    %p109 = scmp.eq.s32.totalorder %s24, 1
    %p110 = por %p108, %p109
    %p111 = scmp.ne.s32.totalorder %s102, %s103
    %p112 = scmp.eq.s32.totalorder %s24, 0
    %p113 = por %p111, %p112
    %p114 = scmp.ne.s32.totalorder %s102, %s103
    %p115 = scmp.eq.s32.totalorder %s25, 1
    %p116 = por %p114, %p115
    %p118 = scmp.ne.s32.totalorder %s103, %s117
    %p119 = scmp.eq.s32.totalorder %s25, 0
    %p120 = por %p118, %p119
    %s122 = sadd.s32 %s121, 1
    %p125 = scmp.eq.s32.totalorder %s19, 1
    %p126 = scmp.ne.s32.totalorder %s121, %s123
    %p127 = scmp.eq.s32.totalorder %s19, 0
    %p128 = por %p126, %p127
    %p129 = scmp.ne.s32.totalorder %s121, %s123
    %p130 = scmp.eq.s32.totalorder %s24, 1
    %p131 = por %p129, %p130
    %p132 = scmp.ne.s32.totalorder %s123, %s124
    %p133 = scmp.eq.s32.totalorder %s24, 0
    %p134 = por %p132, %p133
    %p135 = scmp.ne.s32.totalorder %s123, %s124
    %p136 = scmp.eq.s32.totalorder %s25, 1
    %p137 = por %p135, %p136
    %p139 = scmp.ne.s32.totalorder %s124, %s138
    %p140 = scmp.eq.s32.totalorder %s25, 0
    %p141 = por %p139, %p140
    %s143 = sadd.s32 %s142, 1
    %p146 = scmp.eq.s32.totalorder %s19, 1
    %p147 = scmp.ne.s32.totalorder %s142, %s144
    %p148 = scmp.eq.s32.totalorder %s19, 0
    %p149 = por %p147, %p148
    %p150 = scmp.ne.s32.totalorder %s142, %s144
    %p151 = scmp.eq.s32.totalorder %s24, 1
    %p152 = por %p150, %p151
    %p153 = scmp.ne.s32.totalorder %s144, %s145
    %p154 = scmp.eq.s32.totalorder %s24, 0
    %p155 = por %p153, %p154
    %p156 = scmp.ne.s32.totalorder %s144, %s145
    %p157 = scmp.eq.s32.totalorder %s25, 1
    %p158 = por %p156, %p157
    %p160 = scmp.ne.s32.totalorder %s145, %s159
    %p161 = scmp.eq.s32.totalorder %s25, 0
    %p162 = por %p160, %p161
    %s164 = sadd.s32 %s163, 1
    %p167 = scmp.eq.s32.totalorder %s19, 1
    %p168 = scmp.ne.s32.totalorder %s163, %s165
    %p169 = scmp.eq.s32.totalorder %s19, 0
    %p170 = por %p168, %p169
    %p171 = scmp.ne.s32.totalorder %s163, %s165
    %p172 = scmp.eq.s32.totalorder %s24, 1
    %p173 = por %p171, %p172
    %p174 = scmp.ne.s32.totalorder %s165, %s166
    %p175 = scmp.eq.s32.totalorder %s24, 0
    %p176 = por %p174, %p175
    %p177 = scmp.ne.s32.totalorder %s165, %s166
    %p178 = scmp.eq.s32.totalorder %s25, 1
    %p179 = por %p177, %p178
    %p181 = scmp.ne.s32.totalorder %s166, %s180
    %p182 = scmp.eq.s32.totalorder %s25, 0
    %p183 = por %p181, %p182
    %s185 = sadd.s32 %s184, 1
    %p188 = scmp.eq.s32.totalorder %s19, 1
    %p189 = scmp.ne.s32.totalorder %s184, %s186
    %p190 = scmp.eq.s32.totalorder %s19, 0
    %p191 = por %p189, %p190
    %p192 = scmp.ne.s32.totalorder %s184, %s186
    %p193 = scmp.eq.s32.totalorder %s24, 1
    %p194 = por %p192, %p193
    %p195 = scmp.ne.s32.totalorder %s186, %s187
    %p196 = scmp.eq.s32.totalorder %s24, 0
    %p197 = por %p195, %p196
    %p198 = scmp.ne.s32.totalorder %s186, %s187
    %p199 = scmp.eq.s32.totalorder %s25, 1
    %p200 = por %p198, %p199
    %p202 = scmp.ne.s32.totalorder %s187, %s201
    %p203 = scmp.eq.s32.totalorder %s25, 0
    %p204 = por %p202, %p203
    %s206 = sadd.s32 %s205, 1
    %p209 = scmp.eq.s32.totalorder %s19, 1
    %p210 = scmp.ne.s32.totalorder %s205, %s207
    %p211 = scmp.eq.s32.totalorder %s19, 0
    %p212 = por %p210, %p211
    %p213 = scmp.ne.s32.totalorder %s205, %s207
    %p214 = scmp.eq.s32.totalorder %s24, 1
    %p215 = por %p213, %p214
    %p216 = scmp.ne.s32.totalorder %s207, %s208
    %p217 = scmp.eq.s32.totalorder %s24, 0
    %p218 = por %p216, %p217
    %p219 = scmp.ne.s32.totalorder %s207, %s208
    %p220 = scmp.eq.s32.totalorder %s25, 1
    %p221 = por %p219, %p220
    %p223 = scmp.ne.s32.totalorder %s208, %s222
    %p224 = scmp.eq.s32.totalorder %s25, 0
    %p225 = por %p223, %p224
    %s227 = sadd.s32 %s226, 1
    %p230 = scmp.eq.s32.totalorder %s19, 1
    %p231 = scmp.ne.s32.totalorder %s226, %s228
    %p232 = scmp.eq.s32.totalorder %s19, 0
    %p233 = por %p231, %p232
    %p234 = scmp.ne.s32.totalorder %s226, %s228
    %p235 = scmp.eq.s32.totalorder %s24, 1
    %p236 = por %p234, %p235
    %p237 = scmp.ne.s32.totalorder %s228, %s229
    %p238 = scmp.eq.s32.totalorder %s24, 0
    %p239 = por %p237, %p238
    %p240 = scmp.ne.s32.totalorder %s228, %s229
    %p241 = scmp.eq.s32.totalorder %s25, 1
    %p242 = por %p240, %p241
    %p244 = scmp.ne.s32.totalorder %s229, %s243
    %p245 = scmp.eq.s32.totalorder %s25, 0
    %p246 = por %p244, %p245
    %s248 = sadd.s32 %s247, 1
    %p251 = scmp.eq.s32.totalorder %s19, 1
    %p252 = scmp.ne.s32.totalorder %s247, %s249
    %p253 = scmp.eq.s32.totalorder %s19, 0
    %p254 = por %p252, %p253
    %p255 = scmp.ne.s32.totalorder %s247, %s249
    %p256 = scmp.eq.s32.totalorder %s24, 1
    %p257 = por %p255, %p256
    %p258 = scmp.ne.s32.totalorder %s249, %s250
    %p259 = scmp.eq.s32.totalorder %s24, 0
    %p260 = por %p258, %p259
    %p261 = scmp.ne.s32.totalorder %s249, %s250
    %p262 = scmp.eq.s32.totalorder %s25, 1
    %p263 = por %p261, %p262
    %p265 = scmp.ne.s32.totalorder %s250, %s264
    %p266 = scmp.eq.s32.totalorder %s25, 0
    %p267 = por %p265, %p266
    %s269 = sadd.s32 %s268, 1
    %p272 = scmp.eq.s32.totalorder %s19, 1
    %p273 = scmp.ne.s32.totalorder %s268, %s270
    %p274 = scmp.eq.s32.totalorder %s19, 0
    %p275 = por %p273, %p274
    %p276 = scmp.ne.s32.totalorder %s268, %s270
    %p277 = scmp.eq.s32.totalorder %s24, 1
    %p278 = por %p276, %p277
    %p279 = scmp.ne.s32.totalorder %s270, %s271
    %p280 = scmp.eq.s32.totalorder %s24, 0
    %p281 = por %p279, %p280
    %p282 = scmp.ne.s32.totalorder %s270, %s271
    %p283 = scmp.eq.s32.totalorder %s25, 1
    %p284 = por %p282, %p283
    %p286 = scmp.ne.s32.totalorder %s271, %s285
    %p287 = scmp.eq.s32.totalorder %s25, 0
    %p288 = por %p286, %p287
    %s290 = sadd.s32 %s289, 1
    %p293 = scmp.eq.s32.totalorder %s19, 1
    %p294 = scmp.ne.s32.totalorder %s289, %s291
    %p295 = scmp.eq.s32.totalorder %s19, 0
    %p296 = por %p294, %p295
    %p297 = scmp.ne.s32.totalorder %s289, %s291
    %p298 = scmp.eq.s32.totalorder %s24, 1
    %p299 = por %p297, %p298
    %p300 = scmp.ne.s32.totalorder %s291, %s292
    %p301 = scmp.eq.s32.totalorder %s24, 0
    %p302 = por %p300, %p301
    %p303 = scmp.ne.s32.totalorder %s291, %s292
    %p304 = scmp.eq.s32.totalorder %s25, 1
    %p305 = por %p303, %p304
    %p307 = scmp.ne.s32.totalorder %s292, %s306
    %p308 = scmp.eq.s32.totalorder %s25, 0
    %p309 = por %p307, %p308
    %s310 = ssub.s32 %s19, %s26
    %p311 = scmp.eq.s32.totalorder %s310, 0
    %s313 = sadd.s32 %s312, 1
    %s314 = scalar_select %p311, %s312, %s313
    %p317 = pneg %p311
    %p318 = scmp.eq.s32.totalorder %s19, 1
    %p319 = por %p317, %p318
    %p320 = scmp.ne.s32.totalorder %s312, %s315
    %p321 = scmp.eq.s32.totalorder %s19, 0
    %p322 = por %p320, %p321
    %p323 = scmp.ne.s32.totalorder %s312, %s315
    %p324 = scmp.eq.s32.totalorder %s24, 1
    %p325 = por %p323, %p324
    %p326 = scmp.ne.s32.totalorder %s315, %s316
    %p327 = scmp.eq.s32.totalorder %s24, 0
    %p328 = por %p326, %p327
    %p329 = scmp.ne.s32.totalorder %s315, %s316
    %p330 = scmp.eq.s32.totalorder %s25, 1
    %p331 = por %p329, %p330
    %p333 = scmp.ne.s32.totalorder %s316, %s332
    %p334 = scmp.eq.s32.totalorder %s25, 0
    %p335 = por %p333, %p334
    %p336 = scmp.le.s32.totalorder 1, %s19
    %p337 = scmp.lt.s32.totalorder %s19, 3
    %p338 = pnand %p336, %p337
    %p339 = pneg %p338
    // Predicated region
    $region9: #{dispatcher_model_forward.9} parent=5 // pred_check
      _
    $region10: #{dispatcher_model_forward.9} parent=5 // pred_check_branch
      %341 = sbr.rel (%p338) target = $region12
    $region11: #{dispatcher_model_forward.9} parent=5 // pred_region
      %s342 = ssub.s32 %s19, 1
      // Predicated region
      $region13: #{dispatcher_model_forward.9} parent=11 // pred_check
        %p343 = pneg %p92
      $region14: #{dispatcher_model_forward.9} parent=11 // pred_check_branch
        %345 = sbr.rel (%p343) target = $region16
      $region15: #{dispatcher_model_forward.9} parent=11 // pred_region
        _
      $region16: #{dispatcher_model_forward.9} parent=11 // pred_fallthru
        _
      // Predicated region
      $region17: #{dispatcher_model_forward.9} parent=11 // pred_check
        %p346 = pneg %p113
      $region18: #{dispatcher_model_forward.9} parent=11 // pred_check_branch
        %348 = sbr.rel (%p346) target = $region20
      $region19: #{dispatcher_model_forward.9} parent=11 // pred_region
        _
      $region20: #{dispatcher_model_forward.9} parent=11 // pred_fallthru
        _
      // Predicated region
      $region21: #{dispatcher_model_forward.9} parent=11 // pred_check
        %p349 = pneg %p134
      $region22: #{dispatcher_model_forward.9} parent=11 // pred_check_branch
        %351 = sbr.rel (%p349) target = $region24
      $region23: #{dispatcher_model_forward.9} parent=11 // pred_region
        _
      $region24: #{dispatcher_model_forward.9} parent=11 // pred_fallthru
        _
      // Predicated region
      $region25: #{dispatcher_model_forward.9} parent=11 // pred_check
        %p352 = pneg %p155
      $region26: #{dispatcher_model_forward.9} parent=11 // pred_check_branch
        %354 = sbr.rel (%p352) target = $region28
      $region27: #{dispatcher_model_forward.9} parent=11 // pred_region
        _
      $region28: #{dispatcher_model_forward.9} parent=11 // pred_fallthru
        _
      // Predicated region
      $region29: #{dispatcher_model_forward.9} parent=11 // pred_check
        %p355 = pneg %p176
      $region30: #{dispatcher_model_forward.9} parent=11 // pred_check_branch
        %357 = sbr.rel (%p355) target = $region32
      $region31: #{dispatcher_model_forward.9} parent=11 // pred_region
        _
      $region32: #{dispatcher_model_forward.9} parent=11 // pred_fallthru
        _
      // Predicated region
      $region33: #{dispatcher_model_forward.9} parent=11 // pred_check
        %p358 = pneg %p197
      $region34: #{dispatcher_model_forward.9} parent=11 // pred_check_branch
        %360 = sbr.rel (%p358) target = $region36
      $region35: #{dispatcher_model_forward.9} parent=11 // pred_region
        _
      $region36: #{dispatcher_model_forward.9} parent=11 // pred_fallthru
        _
      // Predicated region
      $region37: #{dispatcher_model_forward.9} parent=11 // pred_check
        %p361 = pneg %p218
      $region38: #{dispatcher_model_forward.9} parent=11 // pred_check_branch
        %363 = sbr.rel (%p361) target = $region40
      $region39: #{dispatcher_model_forward.9} parent=11 // pred_region
        _
      $region40: #{dispatcher_model_forward.9} parent=11 // pred_fallthru
        _
      // Predicated region
      $region41: #{dispatcher_model_forward.9} parent=11 // pred_check
        %p364 = pneg %p239
      $region42: #{dispatcher_model_forward.9} parent=11 // pred_check_branch
        %366 = sbr.rel (%p364) target = $region44
      $region43: #{dispatcher_model_forward.9} parent=11 // pred_region
        _
      $region44: #{dispatcher_model_forward.9} parent=11 // pred_fallthru
        _
      // Predicated region
      $region45: #{dispatcher_model_forward.9} parent=11 // pred_check
        %p367 = pneg %p260
      $region46: #{dispatcher_model_forward.9} parent=11 // pred_check_branch
        %369 = sbr.rel (%p367) target = $region48
      $region47: #{dispatcher_model_forward.9} parent=11 // pred_region
        _
      $region48: #{dispatcher_model_forward.9} parent=11 // pred_fallthru
        _
      // Predicated region
      $region49: #{dispatcher_model_forward.9} parent=11 // pred_check
        %p370 = pneg %p281
      $region50: #{dispatcher_model_forward.9} parent=11 // pred_check_branch
        %372 = sbr.rel (%p370) target = $region52
      $region51: #{dispatcher_model_forward.9} parent=11 // pred_region
        _
      $region52: #{dispatcher_model_forward.9} parent=11 // pred_fallthru
        _
      // Predicated region
      $region53: #{dispatcher_model_forward.9} parent=11 // pred_check
        %p373 = pneg %p302
      $region54: #{dispatcher_model_forward.9} parent=11 // pred_check_branch
        %375 = sbr.rel (%p373) target = $region56
      $region55: #{dispatcher_model_forward.9} parent=11 // pred_region
        _
      $region56: #{dispatcher_model_forward.9} parent=11 // pred_fallthru
        _
    $region12: #{dispatcher_model_forward.9} parent=5 // pred_fallthru
      _
    %p376 = scmp.lt.s32.totalorder %s19, 2
    // Predicated region
    $region57: #{dispatcher_model_forward.9} parent=5 // pred_check
      %p377 = pneg %p376
    $region58: #{dispatcher_model_forward.9} parent=5 // pred_check_branch
      %379 = sbr.rel (%p377) target = $region60
    $region59: #{dispatcher_model_forward.9} parent=5 // pred_region
      // Predicated region
      $region61: #{dispatcher_model_forward.9} parent=59 // pred_check
        %p380 = pneg %p39
      $region62: #{dispatcher_model_forward.9} parent=59 // pred_check_branch
        %382 = sbr.rel (%p380) target = $region64
      $region63: #{dispatcher_model_forward.9} parent=59 // pred_region
        %p383 = scmp.lt.s32.totalorder %s19, 1
        %s384 = scalar_select %p383, %s19, 1
        %s385 = smul.addr %s384, 8
        %s386 = scalar_lea.vmem %s0, %s385
      $region64: #{dispatcher_model_forward.9} parent=59 // pred_fallthru
        _
      // Predicated region
      $region65: #{dispatcher_model_forward.9} parent=59 // pred_check
        %p387 = pneg %p65
      $region66: #{dispatcher_model_forward.9} parent=59 // pred_check_branch
        %389 = sbr.rel (%p387) target = $region68
      $region67: #{dispatcher_model_forward.9} parent=59 // pred_region
        %p390 = scmp.lt.s32.totalorder %s19, 1
        %s391 = scalar_select %p390, %s19, 1
        %s392 = smul.addr %s391, 8
        %s393 = scalar_lea.vmem %s1, %s392
      $region68: #{dispatcher_model_forward.9} parent=59 // pred_fallthru
        _
    $region60: #{dispatcher_model_forward.9} parent=5 // pred_fallthru
      _
    %p394 = scmp.le.s32.totalorder 1, %s19
    %p395 = scmp.lt.s32.totalorder %s19, 3
    %p396 = pnand %p394, %p395
    %p397 = pneg %p396
    // Predicated region
    $region69: #{dispatcher_model_forward.9} parent=5 // pred_check
      _
    $region70: #{dispatcher_model_forward.9} parent=5 // pred_check_branch
      %399 = sbr.rel (%p396) target = $region72
    $region71: #{dispatcher_model_forward.9} parent=5 // pred_region
      %s400 = ssub.s32 %s19, 1
      %p401 = scmp.lt.s32.totalorder %s24, 1
      %s402 = scalar_select %p401, %s24, 1
      %s403 = smul.addr %s402, 8
      %s404 = scalar_lea.vmem %s0, %s403
      %p405 = pneg %p45
      %p406 = pneg %p42
      %p407 = scmp.lt.s32.totalorder %s24, 1
      %s408 = scalar_select %p407, %s24, 1
      %s409 = smul.addr %s408, 8
      %s410 = scalar_lea.vmem %s1, %s409
      %p411 = pneg %p71
      %p412 = pneg %p68
      %p413 = pneg %p92
      %p414 = pneg %p89
      %p415 = pneg %p113
      %p416 = pneg %p110
      %p417 = pneg %p134
      %p418 = pneg %p131
      %p419 = pneg %p155
      %p420 = pneg %p152
      %p421 = pneg %p176
      %p422 = pneg %p173
      %p423 = pneg %p197
      %p424 = pneg %p194
      %p425 = pneg %p218
      %p426 = pneg %p215
      %p427 = pneg %p239
      %p428 = pneg %p236
      %p429 = pneg %p260
      %p430 = pneg %p257
      %p431 = pneg %p281
      %p432 = pneg %p278
      %p433 = pneg %p302
      %p434 = pneg %p299
      %p435 = pneg %p328
      %p436 = pneg %p325
      %p437 = scmp.lt.s32.totalorder %s24, 1
      %s438 = scalar_select %p437, %s24, 1
      %s439 = smul.addr %s438, 8
      %s440 = scalar_lea.vmem %s13, %s439
      %p441 = scmp.lt.s32.totalorder %s24, 1
      %s442 = scalar_select %p441, %s24, 1
      %s443 = smul.addr %s442, 8
      %s444 = scalar_lea.vmem %s0, %s443
      %p445 = scmp.lt.s32.totalorder %s24, 1
      %s446 = scalar_select %p445, %s24, 1
      %s447 = smul.addr %s446, 8
      %s448 = scalar_lea.vmem %s1, %s447
      %p449 = scmp.lt.s32.totalorder %s24, 1
      %s450 = scalar_select %p449, %s24, 1
      %s451 = smul.addr %s450, 8
      %s452 = scalar_lea.vmem %s13, %s451
      %v453 = vld [vmem:[%s444] sm:$0xff]
      %v454 = vld [vmem:[%s448] sm:$0xff]
      %v455 = vld [vmem:[%s2] sm:$0xff]
      %v456 = vld [vmem:[%s2 + $0x8] sm:$0xff]
      %v457 = vld [vmem:[%s2 + $0x10] sm:$0xff]
      %v458 = vld [vmem:[%s2 + $0x18] sm:$0xff]
      %vm459 = vcmask 261120
      %v461 = vsel %vm459, %v454, 0
      %463 = vmatprep.subr.mxu0 0.0
      %464 = vmatpush1.msra.mxu0 0.0
      %465 = vmatprep.subr.mxu0 0.0
      %466 = vmatpush1.msra.mxu0 0.0
      %467 = vmatprep.subr.mxu0 0.0
      %468 = vmatpush1.msra.mxu0 0.0
      %469 = vmatprep.subr.mxu0 0.0
      %470 = vmatpush1.msra.mxu0 0.0
      %471 = vmatprep.subr.mxu0 0.0
      %472 = vmatpush1.msra.mxu0 0.0
      %473 = vmatprep.subr.mxu0 0.0
      %474 = vmatpush1.msra.mxu0 0.0
      %475 = vmatprep.subr.mxu0 0.0
      %476 = vmatpush1.msra.mxu0 0.0
      %477 = vmatprep.subr.mxu0 0.0
      %478 = vmatpush1.msra.mxu0 0.0
      %479 = vmatprep.subr.mxu0 0.0
      %480 = vmatpush1.msra.mxu0 0.0
      %481 = vmatprep.subr.mxu0 0.0
      %482 = vmatpush1.msra.mxu0 0.0
      %483 = vmatprep.subr.mxu0 0.0
      %484 = vmatpush1.msra.mxu0 0.0
      %485 = vmatprep.subr.mxu0 0.0
      %486 = vmatpush1.msra.mxu0 0.0
      %487 = vmatprep.subr.mxu0 0.0
      %488 = vmatpush1.msra.mxu0 %v458
      %489 = vmatprep.subr.mxu0 0.0
      %490 = vmatpush1.msra.mxu0 %v457
      %491 = vmatprep.subr.mxu0 0.0
      %492 = vmatpush1.msra.mxu0 %v456
      %493 = vmatprep.subr.mxu0 0.0
      %494 = vmatpush1.msra.mxu0 %v455
      %495 = vmatprep.subr.mxu0 0.0
      %496 = vmatpush2.msra.mxu0 0.0
      %497 = vmatprep.subr.mxu0 0.0
      %498 = vmatpush2.msra.mxu0 0.0
      %499 = vmatprep.subr.mxu0 0.0
      %500 = vmatpush2.msra.mxu0 0.0
      %501 = vmatprep.subr.mxu0 0.0
      %502 = vmatpush2.msra.mxu0 0.0
      %503 = vmatprep.subr.mxu0 0.0
      %504 = vmatpush2.msra.mxu0 0.0
      %505 = vmatprep.subr.mxu0 0.0
      %506 = vmatpush2.msra.mxu0 0.0
      %507 = vmatprep.subr.mxu0 0.0
      %508 = vmatpush2.msra.mxu0 0.0
      %509 = vmatprep.subr.mxu0 0.0
      %510 = vmatpush2.msra.mxu0 0.0
      %511 = vmatprep.subr.mxu0 0.0
      %512 = vmatpush2.msra.mxu0 0.0
      %513 = vmatprep.subr.mxu0 0.0
      %514 = vmatpush2.msra.mxu0 0.0
      %515 = vmatprep.subr.mxu0 0.0
      %516 = vmatpush2.msra.mxu0 0.0
      %517 = vmatprep.subr.mxu0 0.0
      %518 = vmatpush2.msra.mxu0 0.0
      %519 = vmatprep.subr.mxu0 0.0
      %520 = vmatpush2.msra.mxu0 0.0
      %521 = vmatprep.subr.mxu0 0.0
      %522 = vmatpush2.msra.mxu0 0.0
      %523 = vmatprep.subr.mxu0 0.0
      %524 = vmatpush2.msra.mxu0 0.0
      %525 = vmatprep.subr.mxu0 0.0
      %526 = vmatpush2.msra.mxu0 0.0
      %527 = vmatprep.mubr.f32.mxu0 0.0
      %528 = vmatmul.mubr.f32.gmra.mxu0 %v461
      %v529 = vpop.f32.mrf.mxu0
      %v530 = vadd.f32 0.0, %v529
      %v531 = vpop.f32.mrf.mxu0
      %532 = vdwg.mxu0
      %v533 = vadd.f32 %v453, %v530
      %v534 = vld [vmem:[%s7] sm:$0x1]
      %v535 = vld [vmem:[%s8] sm:$0x1]
      %v536 = vsel %vm459, %v533, 0.0
      %537 = vadd.xlane.f32.xlu0 %v536
      %v538 = vpop.xlane.xlu0 %537
      %v539 = vrcp.pop 32.0
      %v540 = vmul.f32 %v538, %v539
      %v541 = vsub.f32 %v533, %v540
      %v542 = vmul.f32 %v541, %v541
      %v543 = vsel %vm459, %v542, 0.0
      %544 = vadd.xlane.f32.xlu0 %v543
      %v545 = vpop.xlane.xlu0 %544
      %v546 = vmul.f32 %v545, %v539
      %v547 = vadd.f32 %v546, 1e-05
      %v548 = vrsqrt.pop %v547
      %v549 = vmul.f32 %v541, %v548
      %v551 = vlaneseq
      %v552 = vshrl.u32 %v551, 7
      %v553 = vsub.s32 0, %v552
      %v554 = vrot.slane %v534, %v553
      %v556 = vmul.f32 %v549, %v554
      %v558 = vlaneseq
      %v559 = vshrl.u32 %v558, 7
      %v560 = vsub.s32 0, %v559
      %v561 = vrot.slane %v535, %v560
      %v563 = vadd.f32 %v556, %v561
      %v564 = vld [vmem:[%s3] sm:$0xff]
      %v565 = vld [vmem:[%s3 + $0x8] sm:$0xff]
      %v566 = vld [vmem:[%s3 + $0x10] sm:$0xff]
      %v567 = vld [vmem:[%s3 + $0x18] sm:$0xff]
      %v568 = vld [vmem:[%s4] sm:$0x1]
      %v570 = vlaneseq
      %v571 = vshrl.u32 %v570, 7
      %v572 = vsub.s32 0, %v571
      %v573 = vrot.slane %v568, %v572
      %v576 = vsel %vm459, %v563, 0
      %578 = vmatprep.subr.mxu0 0.0
      %579 = vmatpush1.msra.mxu0 0.0
      %580 = vmatprep.subr.mxu0 0.0
      %581 = vmatpush1.msra.mxu0 0.0
      %582 = vmatprep.subr.mxu0 0.0
      %583 = vmatpush1.msra.mxu0 0.0
      %584 = vmatprep.subr.mxu0 0.0
      %585 = vmatpush1.msra.mxu0 0.0
      %586 = vmatprep.subr.mxu0 0.0
      %587 = vmatpush1.msra.mxu0 0.0
      %588 = vmatprep.subr.mxu0 0.0
      %589 = vmatpush1.msra.mxu0 0.0
      %590 = vmatprep.subr.mxu0 0.0
      %591 = vmatpush1.msra.mxu0 0.0
      %592 = vmatprep.subr.mxu0 0.0
      %593 = vmatpush1.msra.mxu0 0.0
      %594 = vmatprep.subr.mxu0 0.0
      %595 = vmatpush1.msra.mxu0 0.0
      %596 = vmatprep.subr.mxu0 0.0
      %597 = vmatpush1.msra.mxu0 0.0
      %598 = vmatprep.subr.mxu0 0.0
      %599 = vmatpush1.msra.mxu0 0.0
      %600 = vmatprep.subr.mxu0 0.0
      %601 = vmatpush1.msra.mxu0 0.0
      %602 = vmatprep.subr.mxu0 0.0
      %603 = vmatpush1.msra.mxu0 %v567
      %604 = vmatprep.subr.mxu0 0.0
      %605 = vmatpush1.msra.mxu0 %v566
      %606 = vmatprep.subr.mxu0 0.0
      %607 = vmatpush1.msra.mxu0 %v565
      %608 = vmatprep.subr.mxu0 0.0
      %609 = vmatpush1.msra.mxu0 %v564
      %610 = vmatprep.subr.mxu0 0.0
      %611 = vmatpush2.msra.mxu0 0.0
      %612 = vmatprep.subr.mxu0 0.0
      %613 = vmatpush2.msra.mxu0 0.0
      %614 = vmatprep.subr.mxu0 0.0
      %615 = vmatpush2.msra.mxu0 0.0
      %616 = vmatprep.subr.mxu0 0.0
      %617 = vmatpush2.msra.mxu0 0.0
      %618 = vmatprep.subr.mxu0 0.0
      %619 = vmatpush2.msra.mxu0 0.0
      %620 = vmatprep.subr.mxu0 0.0
      %621 = vmatpush2.msra.mxu0 0.0
      %622 = vmatprep.subr.mxu0 0.0
      %623 = vmatpush2.msra.mxu0 0.0
      %624 = vmatprep.subr.mxu0 0.0
      %625 = vmatpush2.msra.mxu0 0.0
      %626 = vmatprep.subr.mxu0 0.0
      %627 = vmatpush2.msra.mxu0 0.0
      %628 = vmatprep.subr.mxu0 0.0
      %629 = vmatpush2.msra.mxu0 0.0
      %630 = vmatprep.subr.mxu0 0.0
      %631 = vmatpush2.msra.mxu0 0.0
      %632 = vmatprep.subr.mxu0 0.0
      %633 = vmatpush2.msra.mxu0 0.0
      %634 = vmatprep.subr.mxu0 0.0
      %635 = vmatpush2.msra.mxu0 0.0
      %636 = vmatprep.subr.mxu0 0.0
      %637 = vmatpush2.msra.mxu0 0.0
      %638 = vmatprep.subr.mxu0 0.0
      %639 = vmatpush2.msra.mxu0 0.0
      %640 = vmatprep.subr.mxu0 0.0
      %641 = vmatpush2.msra.mxu0 0.0
      %642 = vmatprep.mubr.f32.mxu0 0.0
      %643 = vmatmul.mubr.f32.gmra.mxu0 %v576
      %v644 = vpop.f32.mrf.mxu0
      %v645 = vadd.f32 %v573, %v644
      %v646 = vpop.f32.mrf.mxu0
      %647 = vdwg.mxu0
      %v648 = vmax.f32 %v645, 0.0
      %v649 = vld [vmem:[%s5] sm:$0xff]
      %v650 = vld [vmem:[%s5 + $0x8] sm:$0xff]
      %v651 = vld [vmem:[%s5 + $0x10] sm:$0xff]
      %v652 = vld [vmem:[%s5 + $0x18] sm:$0xff]
      %v653 = vld [vmem:[%s5 + $0x20] sm:$0xff]
      %v654 = vld [vmem:[%s5 + $0x28] sm:$0xff]
      %v655 = vld [vmem:[%s5 + $0x30] sm:$0xff]
      %v656 = vld [vmem:[%s5 + $0x38] sm:$0xff]
      %v657 = vld [vmem:[%s6] sm:$0x1]
      %v659 = vlaneseq
      %v660 = vshrl.u32 %v659, 7
      %v661 = vsub.s32 0, %v660
      %v662 = vrot.slane %v657, %v661
      %vm664 = vcmask 523264
      %v666 = vsel %vm664, %v648, 0
      %668 = vmatprep.subr.mxu0 0.0
      %669 = vmatpush1.msra.mxu0 0.0
      %670 = vmatprep.subr.mxu0 0.0
      %671 = vmatpush1.msra.mxu0 0.0
      %672 = vmatprep.subr.mxu0 0.0
      %673 = vmatpush1.msra.mxu0 0.0
      %674 = vmatprep.subr.mxu0 0.0
      %675 = vmatpush1.msra.mxu0 0.0
      %676 = vmatprep.subr.mxu0 0.0
      %677 = vmatpush1.msra.mxu0 0.0
      %678 = vmatprep.subr.mxu0 0.0
      %679 = vmatpush1.msra.mxu0 0.0
      %680 = vmatprep.subr.mxu0 0.0
      %681 = vmatpush1.msra.mxu0 0.0
      %682 = vmatprep.subr.mxu0 0.0
      %683 = vmatpush1.msra.mxu0 0.0
      %684 = vmatprep.subr.mxu0 0.0
      %685 = vmatpush1.msra.mxu0 %v656
      %686 = vmatprep.subr.mxu0 0.0
      %687 = vmatpush1.msra.mxu0 %v655
      %688 = vmatprep.subr.mxu0 0.0
      %689 = vmatpush1.msra.mxu0 %v654
      %690 = vmatprep.subr.mxu0 0.0
      %691 = vmatpush1.msra.mxu0 %v653
      %692 = vmatprep.subr.mxu0 0.0
      %693 = vmatpush1.msra.mxu0 %v652
      %694 = vmatprep.subr.mxu0 0.0
      %695 = vmatpush1.msra.mxu0 %v651
      %696 = vmatprep.subr.mxu0 0.0
      %697 = vmatpush1.msra.mxu0 %v650
      %698 = vmatprep.subr.mxu0 0.0
      %699 = vmatpush1.msra.mxu0 %v649
      %700 = vmatprep.subr.mxu0 0.0
      %701 = vmatpush2.msra.mxu0 0.0
      %702 = vmatprep.subr.mxu0 0.0
      %703 = vmatpush2.msra.mxu0 0.0
      %704 = vmatprep.subr.mxu0 0.0
      %705 = vmatpush2.msra.mxu0 0.0
      %706 = vmatprep.subr.mxu0 0.0
      %707 = vmatpush2.msra.mxu0 0.0
      %708 = vmatprep.subr.mxu0 0.0
      %709 = vmatpush2.msra.mxu0 0.0
      %710 = vmatprep.subr.mxu0 0.0
      %711 = vmatpush2.msra.mxu0 0.0
      %712 = vmatprep.subr.mxu0 0.0
      %713 = vmatpush2.msra.mxu0 0.0
      %714 = vmatprep.subr.mxu0 0.0
      %715 = vmatpush2.msra.mxu0 0.0
      %716 = vmatprep.subr.mxu0 0.0
      %717 = vmatpush2.msra.mxu0 0.0
      %718 = vmatprep.subr.mxu0 0.0
      %719 = vmatpush2.msra.mxu0 0.0
      %720 = vmatprep.subr.mxu0 0.0
      %721 = vmatpush2.msra.mxu0 0.0
      %722 = vmatprep.subr.mxu0 0.0
      %723 = vmatpush2.msra.mxu0 0.0
      %724 = vmatprep.subr.mxu0 0.0
      %725 = vmatpush2.msra.mxu0 0.0
      %726 = vmatprep.subr.mxu0 0.0
      %727 = vmatpush2.msra.mxu0 0.0
      %728 = vmatprep.subr.mxu0 0.0
      %729 = vmatpush2.msra.mxu0 0.0
      %730 = vmatprep.subr.mxu0 0.0
      %731 = vmatpush2.msra.mxu0 0.0
      %732 = vmatprep.mubr.f32.mxu0 0.0
      %733 = vmatmul.mubr.f32.gmra.mxu0 %v666
      %v734 = vpop.f32.mrf.mxu0
      %v735 = vadd.f32 %v662, %v734
      %v736 = vpop.f32.mrf.mxu0
      %737 = vdwg.mxu0
      %v738 = vadd.f32 %v563, %v735
      %v739 = vld [vmem:[%s9] sm:$0x1]
      %v740 = vld [vmem:[%s10] sm:$0x1]
      %v741 = vsel %vm459, %v738, 0.0
      %742 = vadd.xlane.f32.xlu0 %v741
      %v743 = vpop.xlane.xlu0 %742
      %v744 = vmul.f32 %v743, %v539
      %v745 = vsub.f32 %v738, %v744
      %v746 = vmul.f32 %v745, %v745
      %v747 = vsel %vm459, %v746, 0.0
      %748 = vadd.xlane.f32.xlu0 %v747
      %v749 = vpop.xlane.xlu0 %748
      %v750 = vmul.f32 %v749, %v539
      %v751 = vadd.f32 %v750, 1e-05
      %v752 = vrsqrt.pop %v751
      %v753 = vmul.f32 %v745, %v752
      %v755 = vlaneseq
      %v756 = vshrl.u32 %v755, 7
      %v757 = vsub.s32 0, %v756
      %v758 = vrot.slane %v739, %v757
      %v760 = vmul.f32 %v753, %v758
      %v762 = vlaneseq
      %v763 = vshrl.u32 %v762, 7
      %v764 = vsub.s32 0, %v763
      %v765 = vrot.slane %v740, %v764
      %v767 = vadd.f32 %v760, %v765
      %v768 = vld [vmem:[%s11] sm:$0xff]
      %v769 = vld [vmem:[%s11 + $0x8] sm:$0xff]
      %v770 = vld [vmem:[%s11 + $0x10] sm:$0xff]
      %v771 = vld [vmem:[%s11 + $0x18] sm:$0xff]
      %v772 = vld [vmem:[%s12] sm:$0x1]
      %v774 = vlaneseq
      %v775 = vshrl.u32 %v774, 7
      %v776 = vsub.s32 0, %v775
      %v777 = vrot.slane %v772, %v776
      %v780 = vsel %vm459, %v767, 0
      %782 = vmatprep.subr.mxu0 0.0
      %783 = vmatpush1.msra.mxu0 0.0
      %784 = vmatprep.subr.mxu0 0.0
      %785 = vmatpush1.msra.mxu0 0.0
      %786 = vmatprep.subr.mxu0 0.0
      %787 = vmatpush1.msra.mxu0 0.0
      %788 = vmatprep.subr.mxu0 0.0
      %789 = vmatpush1.msra.mxu0 0.0
      %790 = vmatprep.subr.mxu0 0.0
      %791 = vmatpush1.msra.mxu0 0.0
      %792 = vmatprep.subr.mxu0 0.0
      %793 = vmatpush1.msra.mxu0 0.0
      %794 = vmatprep.subr.mxu0 0.0
      %795 = vmatpush1.msra.mxu0 0.0
      %796 = vmatprep.subr.mxu0 0.0
      %797 = vmatpush1.msra.mxu0 0.0
      %798 = vmatprep.subr.mxu0 0.0
      %799 = vmatpush1.msra.mxu0 0.0
      %800 = vmatprep.subr.mxu0 0.0
      %801 = vmatpush1.msra.mxu0 0.0
      %802 = vmatprep.subr.mxu0 0.0
      %803 = vmatpush1.msra.mxu0 0.0
      %804 = vmatprep.subr.mxu0 0.0
      %805 = vmatpush1.msra.mxu0 0.0
      %806 = vmatprep.subr.mxu0 0.0
      %807 = vmatpush1.msra.mxu0 %v771
      %808 = vmatprep.subr.mxu0 0.0
      %809 = vmatpush1.msra.mxu0 %v770
      %810 = vmatprep.subr.mxu0 0.0
      %811 = vmatpush1.msra.mxu0 %v769
      %812 = vmatprep.subr.mxu0 0.0
      %813 = vmatpush1.msra.mxu0 %v768
      %814 = vmatprep.subr.mxu0 0.0
      %815 = vmatpush2.msra.mxu0 0.0
      %816 = vmatprep.subr.mxu0 0.0
      %817 = vmatpush2.msra.mxu0 0.0
      %818 = vmatprep.subr.mxu0 0.0
      %819 = vmatpush2.msra.mxu0 0.0
      %820 = vmatprep.subr.mxu0 0.0
      %821 = vmatpush2.msra.mxu0 0.0
      %822 = vmatprep.subr.mxu0 0.0
      %823 = vmatpush2.msra.mxu0 0.0
      %824 = vmatprep.subr.mxu0 0.0
      %825 = vmatpush2.msra.mxu0 0.0
      %826 = vmatprep.subr.mxu0 0.0
      %827 = vmatpush2.msra.mxu0 0.0
      %828 = vmatprep.subr.mxu0 0.0
      %829 = vmatpush2.msra.mxu0 0.0
      %830 = vmatprep.subr.mxu0 0.0
      %831 = vmatpush2.msra.mxu0 0.0
      %832 = vmatprep.subr.mxu0 0.0
      %833 = vmatpush2.msra.mxu0 0.0
      %834 = vmatprep.subr.mxu0 0.0
      %835 = vmatpush2.msra.mxu0 0.0
      %836 = vmatprep.subr.mxu0 0.0
      %837 = vmatpush2.msra.mxu0 0.0
      %838 = vmatprep.subr.mxu0 0.0
      %839 = vmatpush2.msra.mxu0 0.0
      %840 = vmatprep.subr.mxu0 0.0
      %841 = vmatpush2.msra.mxu0 0.0
      %842 = vmatprep.subr.mxu0 0.0
      %843 = vmatpush2.msra.mxu0 0.0
      %844 = vmatprep.subr.mxu0 0.0
      %845 = vmatpush2.msra.mxu0 0.0
      %846 = vmatprep.mubr.f32.mxu0 0.0
      %847 = vmatmul.mubr.f32.gmra.mxu0 %v780
      %v848 = vpop.f32.mrf.mxu0
      %v849 = vadd.f32 %v777, %v848
      %v850 = vpop.f32.mrf.mxu0
      %851 = vdwg.mxu0
      %852 = vst [vmem:[%s452] sm:$0xff] %v849
      %p853 = scmp.lt.s32.totalorder %s24, 1
      %s854 = scalar_select %p853, %s24, 1
      %s855 = smul.addr %s854, 8
      %s856 = scalar_lea.vmem %s13, %s855
      // Predicated region
      $region73: #{dispatcher_model_forward.9} parent=71 // pred_check
        %p857 = pneg %p325
      $region74: #{dispatcher_model_forward.9} parent=71 // pred_check_branch
        %859 = sbr.rel (%p857) target = $region76
      $region75: #{dispatcher_model_forward.9} parent=71 // pred_region
        _
      $region76: #{dispatcher_model_forward.9} parent=71 // pred_fallthru
        _
    $region72: #{dispatcher_model_forward.9} parent=5 // pred_fallthru
      _
    %p860 = scmp.le.s32.totalorder 2, %s19
    // Predicated region
    $region77: #{dispatcher_model_forward.9} parent=5 // pred_check
      %p861 = pneg %p860
    $region78: #{dispatcher_model_forward.9} parent=5 // pred_check_branch
      %863 = sbr.rel (%p861) target = $region80
    $region79: #{dispatcher_model_forward.9} parent=5 // pred_region
      %s864 = ssub.s32 %s19, 2
      // Predicated region
      $region81: #{dispatcher_model_forward.9} parent=79 // pred_check
        %p865 = pneg %p331
      $region82: #{dispatcher_model_forward.9} parent=79 // pred_check_branch
        %867 = sbr.rel (%p865) target = $region84
      $region83: #{dispatcher_model_forward.9} parent=79 // pred_region
        %p868 = scmp.lt.s32.totalorder %s25, 1
        %s869 = scalar_select %p868, %s25, 1
        %s870 = smul.addr %s869, 8
        %s871 = scalar_lea.vmem %s13, %s870
      $region84: #{dispatcher_model_forward.9} parent=79 // pred_fallthru
        _
    $region80: #{dispatcher_model_forward.9} parent=5 // pred_fallthru
      _
  $region6: #{dispatcher_model_forward.9} parent=0 // loop_footer
    %s23 = sadd.s32 1, %s19
  $region7: #{dispatcher_model_forward.9} parent=0 // loop_footer_branch
    %18 = sbr.rel target = $region3
  $region8: #{dispatcher_model_forward.9} parent=0 // loop_exit
    _

// kernel: dispatcher_model_forward.7
$region0: #{dispatcher_model_forward.7}
  #allocation0 [shape = 'u32[]', space=smem, size = 0x4, offset = 0x4, fixed_abs, tag = 'smem constant byte address 0x4 - core index']
  #allocation1 [shape = 'u32[144,128]{1,0:T(1,128)}', space=vmem, size = 0x12000, scoped, tag = 'internal scratch']
  %s0 = inlined_call_operand.vmem [shape: f32[16,32], index: 0, kind: input, shape index: {}]
  %s1 = inlined_call_operand.vmem [shape: f32[16,32], index: 1, kind: input, shape index: {}]
  %s2 = inlined_call_operand.vmem [shape: f32[32,32], index: 2, kind: input, shape index: {}]
  %s3 = inlined_call_operand.vmem [shape: f32[32,64], index: 3, kind: input, shape index: {}]
  %s4 = inlined_call_operand.vmem [shape: f32[1,64], index: 4, kind: input, shape index: {}]
  %s5 = inlined_call_operand.vmem [shape: f32[64,32], index: 5, kind: input, shape index: {}]
  %s6 = inlined_call_operand.vmem [shape: f32[1,32], index: 6, kind: input, shape index: {}]
  %s7 = inlined_call_operand.vmem [shape: f32[1,32], index: 7, kind: input, shape index: {}]
  %s8 = inlined_call_operand.vmem [shape: f32[1,32], index: 8, kind: input, shape index: {}]
  %s9 = inlined_call_operand.vmem [shape: f32[1,32], index: 9, kind: input, shape index: {}]
  %s10 = inlined_call_operand.vmem [shape: f32[1,32], index: 10, kind: input, shape index: {}]
  %s11 = inlined_call_operand.vmem [shape: f32[32,32], index: 11, kind: input, shape index: {}]
  %s12 = inlined_call_operand.vmem [shape: f32[32,12], index: 12, kind: input, shape index: {}]
  %s13 = inlined_call_operand.vmem [shape: f32[16,32], index: 13, kind: output, shape index: {0}]
  %s14 = inlined_call_operand.vmem [shape: f32[16,32], index: 14, kind: output, shape index: {1}]
  %s15 = inlined_call_operand.vmem [shape: f32[16,12], index: 15, kind: output, shape index: {2}]
  %16 = xla_tuple %s13, %s14, %s15
  %s17 = sld [smem:[#allocation0]]
  $region101: #{dispatcher_model_forward.7} parent=0
    _
  %s19 = ssub.s32 1, %s17
  %s20 = scalar_select 0, %s19, %s17
  loop: start=0, step=1, limit=4
  $region2: #{dispatcher_model_forward.7} parent=0 // loop_pre_header
    _
  $region3: #{dispatcher_model_forward.7} parent=0 // loop_header
    %s22 = sphi 0, %s26
    %p23 = scmp.ge.s32.totalorder %s22, 4
    %s32 = sphi 0, %s34
    %s35 = sphi 0, %s32
    %s36 = sphi 0, %s35
    %s52 = sphi 0, %s36
    %s58 = sphi 0, %s60
    %s61 = sphi 0, %s58
    %s62 = sphi 0, %s61
    %s78 = sphi 0, %s62
    %s82 = sphi 0, %s82
    %s84 = sphi 0, %s82
    %s85 = sphi 0, %s84
    %s99 = sphi 0, %s85
    %s103 = sphi 0, %s103
    %s105 = sphi 0, %s103
    %s106 = sphi 0, %s105
    %s120 = sphi 0, %s106
    %s124 = sphi 0, %s124
    %s126 = sphi 0, %s124
    %s127 = sphi 0, %s126
    %s141 = sphi 0, %s127
    %s145 = sphi 0, %s145
    %s147 = sphi 0, %s145
    %s148 = sphi 0, %s147
    %s162 = sphi 0, %s148
    %s166 = sphi 0, %s166
    %s168 = sphi 0, %s166
    %s169 = sphi 0, %s168
    %s183 = sphi 0, %s169
    %s187 = sphi 0, %s187
    %s189 = sphi 0, %s187
    %s190 = sphi 0, %s189
    %s204 = sphi 0, %s190
    %s208 = sphi 0, %s208
    %s210 = sphi 0, %s208
    %s211 = sphi 0, %s210
    %s225 = sphi 0, %s211
    %s229 = sphi 0, %s229
    %s231 = sphi 0, %s229
    %s232 = sphi 0, %s231
    %s246 = sphi 0, %s232
    %s250 = sphi 0, %s250
    %s252 = sphi 0, %s250
    %s253 = sphi 0, %s252
    %s267 = sphi 0, %s253
    %s271 = sphi 0, %s271
    %s273 = sphi 0, %s271
    %s274 = sphi 0, %s273
    %s288 = sphi 0, %s274
    %s292 = sphi 0, %s292
    %s294 = sphi 0, %s292
    %s295 = sphi 0, %s294
    %s309 = sphi 0, %s295
    %s315 = sphi 0, %s317
    %s318 = sphi 0, %s315
    %s319 = sphi 0, %s318
    %s335 = sphi 0, %s319
    %s341 = sphi 0, %s343
    %s344 = sphi 0, %s341
    %s345 = sphi 0, %s344
    %s361 = sphi 0, %s345
    %s367 = sphi 0, %s369
    %s370 = sphi 0, %s367
    %s371 = sphi 0, %s370
    %s387 = sphi 0, %s371
  $region4: #{dispatcher_model_forward.7} parent=0 // loop_header_branch
    %25 = sbr.rel (%p23) target = $region8
  $region5: #{dispatcher_model_forward.7} parent=0 // loop_body
    %s27 = ssub.s32 %s22, 1
    %s28 = ssub.s32 %s22, 2
    %s29 = sadd.s32 %s22, 1
    %s30 = ssub.s32 %s22, %s29
    %p31 = scmp.eq.s32.totalorder %s30, 0
    %s33 = sadd.s32 %s32, 1
    %s34 = scalar_select %p31, %s32, %s33
    %p37 = pneg %p31
    %p38 = scmp.eq.s32.totalorder %s22, 1
    %p39 = por %p37, %p38
    %p40 = scmp.ne.s32.totalorder %s32, %s35
    %p41 = scmp.eq.s32.totalorder %s22, 0
    %p42 = por %p40, %p41
    %p43 = scmp.ne.s32.totalorder %s32, %s35
    %p44 = scmp.eq.s32.totalorder %s27, 1
    %p45 = por %p43, %p44
    %p46 = scmp.ne.s32.totalorder %s35, %s36
    %p47 = scmp.eq.s32.totalorder %s27, 0
    %p48 = por %p46, %p47
    %p49 = scmp.ne.s32.totalorder %s35, %s36
    %p50 = scmp.eq.s32.totalorder %s28, 1
    %p51 = por %p49, %p50
    %p53 = scmp.ne.s32.totalorder %s36, %s52
    %p54 = scmp.eq.s32.totalorder %s28, 0
    %p55 = por %p53, %p54
    %s56 = ssub.s32 %s22, %s29
    %p57 = scmp.eq.s32.totalorder %s56, 0
    %s59 = sadd.s32 %s58, 1
    %s60 = scalar_select %p57, %s58, %s59
    %p63 = pneg %p57
    %p64 = scmp.eq.s32.totalorder %s22, 1
    %p65 = por %p63, %p64
    %p66 = scmp.ne.s32.totalorder %s58, %s61
    %p67 = scmp.eq.s32.totalorder %s22, 0
    %p68 = por %p66, %p67
    %p69 = scmp.ne.s32.totalorder %s58, %s61
    %p70 = scmp.eq.s32.totalorder %s27, 1
    %p71 = por %p69, %p70
    %p72 = scmp.ne.s32.totalorder %s61, %s62
    %p73 = scmp.eq.s32.totalorder %s27, 0
    %p74 = por %p72, %p73
    %p75 = scmp.ne.s32.totalorder %s61, %s62
    %p76 = scmp.eq.s32.totalorder %s28, 1
    %p77 = por %p75, %p76
    %p79 = scmp.ne.s32.totalorder %s62, %s78
    %p80 = scmp.eq.s32.totalorder %s28, 0
    %p81 = por %p79, %p80
    %s83 = sadd.s32 %s82, 1
    %p86 = scmp.eq.s32.totalorder %s22, 1
    %p87 = scmp.ne.s32.totalorder %s82, %s84
    %p88 = scmp.eq.s32.totalorder %s22, 0
    %p89 = por %p87, %p88
    %p90 = scmp.ne.s32.totalorder %s82, %s84
    %p91 = scmp.eq.s32.totalorder %s27, 1
    %p92 = por %p90, %p91
    %p93 = scmp.ne.s32.totalorder %s84, %s85
    %p94 = scmp.eq.s32.totalorder %s27, 0
    %p95 = por %p93, %p94
    %p96 = scmp.ne.s32.totalorder %s84, %s85
    %p97 = scmp.eq.s32.totalorder %s28, 1
    %p98 = por %p96, %p97
    %p100 = scmp.ne.s32.totalorder %s85, %s99
    %p101 = scmp.eq.s32.totalorder %s28, 0
    %p102 = por %p100, %p101
    %s104 = sadd.s32 %s103, 1
    %p107 = scmp.eq.s32.totalorder %s22, 1
    %p108 = scmp.ne.s32.totalorder %s103, %s105
    %p109 = scmp.eq.s32.totalorder %s22, 0
    %p110 = por %p108, %p109
    %p111 = scmp.ne.s32.totalorder %s103, %s105
    %p112 = scmp.eq.s32.totalorder %s27, 1
    %p113 = por %p111, %p112
    %p114 = scmp.ne.s32.totalorder %s105, %s106
    %p115 = scmp.eq.s32.totalorder %s27, 0
    %p116 = por %p114, %p115
    %p117 = scmp.ne.s32.totalorder %s105, %s106
    %p118 = scmp.eq.s32.totalorder %s28, 1
    %p119 = por %p117, %p118
    %p121 = scmp.ne.s32.totalorder %s106, %s120
    %p122 = scmp.eq.s32.totalorder %s28, 0
    %p123 = por %p121, %p122
    %s125 = sadd.s32 %s124, 1
    %p128 = scmp.eq.s32.totalorder %s22, 1
    %p129 = scmp.ne.s32.totalorder %s124, %s126
    %p130 = scmp.eq.s32.totalorder %s22, 0
    %p131 = por %p129, %p130
    %p132 = scmp.ne.s32.totalorder %s124, %s126
    %p133 = scmp.eq.s32.totalorder %s27, 1
    %p134 = por %p132, %p133
    %p135 = scmp.ne.s32.totalorder %s126, %s127
    %p136 = scmp.eq.s32.totalorder %s27, 0
    %p137 = por %p135, %p136
    %p138 = scmp.ne.s32.totalorder %s126, %s127
    %p139 = scmp.eq.s32.totalorder %s28, 1
    %p140 = por %p138, %p139
    %p142 = scmp.ne.s32.totalorder %s127, %s141
    %p143 = scmp.eq.s32.totalorder %s28, 0
    %p144 = por %p142, %p143
    %s146 = sadd.s32 %s145, 1
    %p149 = scmp.eq.s32.totalorder %s22, 1
    %p150 = scmp.ne.s32.totalorder %s145, %s147
    %p151 = scmp.eq.s32.totalorder %s22, 0
    %p152 = por %p150, %p151
    %p153 = scmp.ne.s32.totalorder %s145, %s147
    %p154 = scmp.eq.s32.totalorder %s27, 1
    %p155 = por %p153, %p154
    %p156 = scmp.ne.s32.totalorder %s147, %s148
    %p157 = scmp.eq.s32.totalorder %s27, 0
    %p158 = por %p156, %p157
    %p159 = scmp.ne.s32.totalorder %s147, %s148
    %p160 = scmp.eq.s32.totalorder %s28, 1
    %p161 = por %p159, %p160
    %p163 = scmp.ne.s32.totalorder %s148, %s162
    %p164 = scmp.eq.s32.totalorder %s28, 0
    %p165 = por %p163, %p164
    %s167 = sadd.s32 %s166, 1
    %p170 = scmp.eq.s32.totalorder %s22, 1
    %p171 = scmp.ne.s32.totalorder %s166, %s168
    %p172 = scmp.eq.s32.totalorder %s22, 0
    %p173 = por %p171, %p172
    %p174 = scmp.ne.s32.totalorder %s166, %s168
    %p175 = scmp.eq.s32.totalorder %s27, 1
    %p176 = por %p174, %p175
    %p177 = scmp.ne.s32.totalorder %s168, %s169
    %p178 = scmp.eq.s32.totalorder %s27, 0
    %p179 = por %p177, %p178
    %p180 = scmp.ne.s32.totalorder %s168, %s169
    %p181 = scmp.eq.s32.totalorder %s28, 1
    %p182 = por %p180, %p181
    %p184 = scmp.ne.s32.totalorder %s169, %s183
    %p185 = scmp.eq.s32.totalorder %s28, 0
    %p186 = por %p184, %p185
    %s188 = sadd.s32 %s187, 1
    %p191 = scmp.eq.s32.totalorder %s22, 1
    %p192 = scmp.ne.s32.totalorder %s187, %s189
    %p193 = scmp.eq.s32.totalorder %s22, 0
    %p194 = por %p192, %p193
    %p195 = scmp.ne.s32.totalorder %s187, %s189
    %p196 = scmp.eq.s32.totalorder %s27, 1
    %p197 = por %p195, %p196
    %p198 = scmp.ne.s32.totalorder %s189, %s190
    %p199 = scmp.eq.s32.totalorder %s27, 0
    %p200 = por %p198, %p199
    %p201 = scmp.ne.s32.totalorder %s189, %s190
    %p202 = scmp.eq.s32.totalorder %s28, 1
    %p203 = por %p201, %p202
    %p205 = scmp.ne.s32.totalorder %s190, %s204
    %p206 = scmp.eq.s32.totalorder %s28, 0
    %p207 = por %p205, %p206
    %s209 = sadd.s32 %s208, 1
    %p212 = scmp.eq.s32.totalorder %s22, 1
    %p213 = scmp.ne.s32.totalorder %s208, %s210
    %p214 = scmp.eq.s32.totalorder %s22, 0
    %p215 = por %p213, %p214
    %p216 = scmp.ne.s32.totalorder %s208, %s210
    %p217 = scmp.eq.s32.totalorder %s27, 1
    %p218 = por %p216, %p217
    %p219 = scmp.ne.s32.totalorder %s210, %s211
    %p220 = scmp.eq.s32.totalorder %s27, 0
    %p221 = por %p219, %p220
    %p222 = scmp.ne.s32.totalorder %s210, %s211
    %p223 = scmp.eq.s32.totalorder %s28, 1
    %p224 = por %p222, %p223
    %p226 = scmp.ne.s32.totalorder %s211, %s225
    %p227 = scmp.eq.s32.totalorder %s28, 0
    %p228 = por %p226, %p227
    %s230 = sadd.s32 %s229, 1
    %p233 = scmp.eq.s32.totalorder %s22, 1
    %p234 = scmp.ne.s32.totalorder %s229, %s231
    %p235 = scmp.eq.s32.totalorder %s22, 0
    %p236 = por %p234, %p235
    %p237 = scmp.ne.s32.totalorder %s229, %s231
    %p238 = scmp.eq.s32.totalorder %s27, 1
    %p239 = por %p237, %p238
    %p240 = scmp.ne.s32.totalorder %s231, %s232
    %p241 = scmp.eq.s32.totalorder %s27, 0
    %p242 = por %p240, %p241
    %p243 = scmp.ne.s32.totalorder %s231, %s232
    %p244 = scmp.eq.s32.totalorder %s28, 1
    %p245 = por %p243, %p244
    %p247 = scmp.ne.s32.totalorder %s232, %s246
    %p248 = scmp.eq.s32.totalorder %s28, 0
    %p249 = por %p247, %p248
    %s251 = sadd.s32 %s250, 1
    %p254 = scmp.eq.s32.totalorder %s22, 1
    %p255 = scmp.ne.s32.totalorder %s250, %s252
    %p256 = scmp.eq.s32.totalorder %s22, 0
    %p257 = por %p255, %p256
    %p258 = scmp.ne.s32.totalorder %s250, %s252
    %p259 = scmp.eq.s32.totalorder %s27, 1
    %p260 = por %p258, %p259
    %p261 = scmp.ne.s32.totalorder %s252, %s253
    %p262 = scmp.eq.s32.totalorder %s27, 0
    %p263 = por %p261, %p262
    %p264 = scmp.ne.s32.totalorder %s252, %s253
    %p265 = scmp.eq.s32.totalorder %s28, 1
    %p266 = por %p264, %p265
    %p268 = scmp.ne.s32.totalorder %s253, %s267
    %p269 = scmp.eq.s32.totalorder %s28, 0
    %p270 = por %p268, %p269
    %s272 = sadd.s32 %s271, 1
    %p275 = scmp.eq.s32.totalorder %s22, 1
    %p276 = scmp.ne.s32.totalorder %s271, %s273
    %p277 = scmp.eq.s32.totalorder %s22, 0
    %p278 = por %p276, %p277
    %p279 = scmp.ne.s32.totalorder %s271, %s273
    %p280 = scmp.eq.s32.totalorder %s27, 1
    %p281 = por %p279, %p280
    %p282 = scmp.ne.s32.totalorder %s273, %s274
    %p283 = scmp.eq.s32.totalorder %s27, 0
    %p284 = por %p282, %p283
    %p285 = scmp.ne.s32.totalorder %s273, %s274
    %p286 = scmp.eq.s32.totalorder %s28, 1
    %p287 = por %p285, %p286
    %p289 = scmp.ne.s32.totalorder %s274, %s288
    %p290 = scmp.eq.s32.totalorder %s28, 0
    %p291 = por %p289, %p290
    %s293 = sadd.s32 %s292, 1
    %p296 = scmp.eq.s32.totalorder %s22, 1
    %p297 = scmp.ne.s32.totalorder %s292, %s294
    %p298 = scmp.eq.s32.totalorder %s22, 0
    %p299 = por %p297, %p298
    %p300 = scmp.ne.s32.totalorder %s292, %s294
    %p301 = scmp.eq.s32.totalorder %s27, 1
    %p302 = por %p300, %p301
    %p303 = scmp.ne.s32.totalorder %s294, %s295
    %p304 = scmp.eq.s32.totalorder %s27, 0
    %p305 = por %p303, %p304
    %p306 = scmp.ne.s32.totalorder %s294, %s295
    %p307 = scmp.eq.s32.totalorder %s28, 1
    %p308 = por %p306, %p307
    %p310 = scmp.ne.s32.totalorder %s295, %s309
    %p311 = scmp.eq.s32.totalorder %s28, 0
    %p312 = por %p310, %p311
    %s313 = ssub.s32 %s22, %s29
    %p314 = scmp.eq.s32.totalorder %s313, 0
    %s316 = sadd.s32 %s315, 1
    %s317 = scalar_select %p314, %s315, %s316
    %p320 = pneg %p314
    %p321 = scmp.eq.s32.totalorder %s22, 1
    %p322 = por %p320, %p321
    %p323 = scmp.ne.s32.totalorder %s315, %s318
    %p324 = scmp.eq.s32.totalorder %s22, 0
    %p325 = por %p323, %p324
    %p326 = scmp.ne.s32.totalorder %s315, %s318
    %p327 = scmp.eq.s32.totalorder %s27, 1
    %p328 = por %p326, %p327
    %p329 = scmp.ne.s32.totalorder %s318, %s319
    %p330 = scmp.eq.s32.totalorder %s27, 0
    %p331 = por %p329, %p330
    %p332 = scmp.ne.s32.totalorder %s318, %s319
    %p333 = scmp.eq.s32.totalorder %s28, 1
    %p334 = por %p332, %p333
    %p336 = scmp.ne.s32.totalorder %s319, %s335
    %p337 = scmp.eq.s32.totalorder %s28, 0
    %p338 = por %p336, %p337
    %s339 = ssub.s32 %s22, %s29
    %p340 = scmp.eq.s32.totalorder %s339, 0
    %s342 = sadd.s32 %s341, 1
    %s343 = scalar_select %p340, %s341, %s342
    %p346 = pneg %p340
    %p347 = scmp.eq.s32.totalorder %s22, 1
    %p348 = por %p346, %p347
    %p349 = scmp.ne.s32.totalorder %s341, %s344
    %p350 = scmp.eq.s32.totalorder %s22, 0
    %p351 = por %p349, %p350
    %p352 = scmp.ne.s32.totalorder %s341, %s344
    %p353 = scmp.eq.s32.totalorder %s27, 1
    %p354 = por %p352, %p353
    %p355 = scmp.ne.s32.totalorder %s344, %s345
    %p356 = scmp.eq.s32.totalorder %s27, 0
    %p357 = por %p355, %p356
    %p358 = scmp.ne.s32.totalorder %s344, %s345
    %p359 = scmp.eq.s32.totalorder %s28, 1
    %p360 = por %p358, %p359
    %p362 = scmp.ne.s32.totalorder %s345, %s361
    %p363 = scmp.eq.s32.totalorder %s28, 0
    %p364 = por %p362, %p363
    %s365 = ssub.s32 %s22, %s29
    %p366 = scmp.eq.s32.totalorder %s365, 0
    %s368 = sadd.s32 %s367, 1
    %s369 = scalar_select %p366, %s367, %s368
    %p372 = pneg %p366
    %p373 = scmp.eq.s32.totalorder %s22, 1
    %p374 = por %p372, %p373
    %p375 = scmp.ne.s32.totalorder %s367, %s370
    %p376 = scmp.eq.s32.totalorder %s22, 0
    %p377 = por %p375, %p376
    %p378 = scmp.ne.s32.totalorder %s367, %s370
    %p379 = scmp.eq.s32.totalorder %s27, 1
    %p380 = por %p378, %p379
    %p381 = scmp.ne.s32.totalorder %s370, %s371
    %p382 = scmp.eq.s32.totalorder %s27, 0
    %p383 = por %p381, %p382
    %p384 = scmp.ne.s32.totalorder %s370, %s371
    %p385 = scmp.eq.s32.totalorder %s28, 1
    %p386 = por %p384, %p385
    %p388 = scmp.ne.s32.totalorder %s371, %s387
    %p389 = scmp.eq.s32.totalorder %s28, 0
    %p390 = por %p388, %p389
    %p391 = scmp.le.s32.totalorder 1, %s22
    %p392 = scmp.lt.s32.totalorder %s22, 3
    %p393 = pnand %p391, %p392
    %p394 = pneg %p393
    // Predicated region
    $region9: #{dispatcher_model_forward.7} parent=5 // pred_check
      _
    $region10: #{dispatcher_model_forward.7} parent=5 // pred_check_branch
      %396 = sbr.rel (%p393) target = $region12
    $region11: #{dispatcher_model_forward.7} parent=5 // pred_region
      %s397 = ssub.s32 %s22, 1
      // Predicated region
      $region13: #{dispatcher_model_forward.7} parent=11 // pred_check
        %p398 = pneg %p95
      $region14: #{dispatcher_model_forward.7} parent=11 // pred_check_branch
        %400 = sbr.rel (%p398) target = $region16
      $region15: #{dispatcher_model_forward.7} parent=11 // pred_region
        _
      $region16: #{dispatcher_model_forward.7} parent=11 // pred_fallthru
        _
      // Predicated region
      $region17: #{dispatcher_model_forward.7} parent=11 // pred_check
        %p401 = pneg %p116
      $region18: #{dispatcher_model_forward.7} parent=11 // pred_check_branch
        %403 = sbr.rel (%p401) target = $region20
      $region19: #{dispatcher_model_forward.7} parent=11 // pred_region
        _
      $region20: #{dispatcher_model_forward.7} parent=11 // pred_fallthru
        _
      // Predicated region
      $region21: #{dispatcher_model_forward.7} parent=11 // pred_check
        %p404 = pneg %p137
      $region22: #{dispatcher_model_forward.7} parent=11 // pred_check_branch
        %406 = sbr.rel (%p404) target = $region24
      $region23: #{dispatcher_model_forward.7} parent=11 // pred_region
        _
      $region24: #{dispatcher_model_forward.7} parent=11 // pred_fallthru
        _
      // Predicated region
      $region25: #{dispatcher_model_forward.7} parent=11 // pred_check
        %p407 = pneg %p158
      $region26: #{dispatcher_model_forward.7} parent=11 // pred_check_branch
        %409 = sbr.rel (%p407) target = $region28
      $region27: #{dispatcher_model_forward.7} parent=11 // pred_region
        _
      $region28: #{dispatcher_model_forward.7} parent=11 // pred_fallthru
        _
      // Predicated region
      $region29: #{dispatcher_model_forward.7} parent=11 // pred_check
        %p410 = pneg %p179
      $region30: #{dispatcher_model_forward.7} parent=11 // pred_check_branch
        %412 = sbr.rel (%p410) target = $region32
      $region31: #{dispatcher_model_forward.7} parent=11 // pred_region
        _
      $region32: #{dispatcher_model_forward.7} parent=11 // pred_fallthru
        _
      // Predicated region
      $region33: #{dispatcher_model_forward.7} parent=11 // pred_check
        %p413 = pneg %p200
      $region34: #{dispatcher_model_forward.7} parent=11 // pred_check_branch
        %415 = sbr.rel (%p413) target = $region36
      $region35: #{dispatcher_model_forward.7} parent=11 // pred_region
        _
      $region36: #{dispatcher_model_forward.7} parent=11 // pred_fallthru
        _
      // Predicated region
      $region37: #{dispatcher_model_forward.7} parent=11 // pred_check
        %p416 = pneg %p221
      $region38: #{dispatcher_model_forward.7} parent=11 // pred_check_branch
        %418 = sbr.rel (%p416) target = $region40
      $region39: #{dispatcher_model_forward.7} parent=11 // pred_region
        _
      $region40: #{dispatcher_model_forward.7} parent=11 // pred_fallthru
        _
      // Predicated region
      $region41: #{dispatcher_model_forward.7} parent=11 // pred_check
        %p419 = pneg %p242
      $region42: #{dispatcher_model_forward.7} parent=11 // pred_check_branch
        %421 = sbr.rel (%p419) target = $region44
      $region43: #{dispatcher_model_forward.7} parent=11 // pred_region
        _
      $region44: #{dispatcher_model_forward.7} parent=11 // pred_fallthru
        _
      // Predicated region
      $region45: #{dispatcher_model_forward.7} parent=11 // pred_check
        %p422 = pneg %p263
      $region46: #{dispatcher_model_forward.7} parent=11 // pred_check_branch
        %424 = sbr.rel (%p422) target = $region48
      $region47: #{dispatcher_model_forward.7} parent=11 // pred_region
        _
      $region48: #{dispatcher_model_forward.7} parent=11 // pred_fallthru
        _
      // Predicated region
      $region49: #{dispatcher_model_forward.7} parent=11 // pred_check
        %p425 = pneg %p284
      $region50: #{dispatcher_model_forward.7} parent=11 // pred_check_branch
        %427 = sbr.rel (%p425) target = $region52
      $region51: #{dispatcher_model_forward.7} parent=11 // pred_region
        _
      $region52: #{dispatcher_model_forward.7} parent=11 // pred_fallthru
        _
      // Predicated region
      $region53: #{dispatcher_model_forward.7} parent=11 // pred_check
        %p428 = pneg %p305
      $region54: #{dispatcher_model_forward.7} parent=11 // pred_check_branch
        %430 = sbr.rel (%p428) target = $region56
      $region55: #{dispatcher_model_forward.7} parent=11 // pred_region
        _
      $region56: #{dispatcher_model_forward.7} parent=11 // pred_fallthru
        _
    $region12: #{dispatcher_model_forward.7} parent=5 // pred_fallthru
      _
    %p431 = scmp.lt.s32.totalorder %s22, 2
    // Predicated region
    $region57: #{dispatcher_model_forward.7} parent=5 // pred_check
      %p432 = pneg %p431
    $region58: #{dispatcher_model_forward.7} parent=5 // pred_check_branch
      %434 = sbr.rel (%p432) target = $region60
    $region59: #{dispatcher_model_forward.7} parent=5 // pred_region
      // Predicated region
      $region61: #{dispatcher_model_forward.7} parent=59 // pred_check
        %p435 = pneg %p42
      $region62: #{dispatcher_model_forward.7} parent=59 // pred_check_branch
        %437 = sbr.rel (%p435) target = $region64
      $region63: #{dispatcher_model_forward.7} parent=59 // pred_region
        %p438 = scmp.lt.s32.totalorder %s22, 1
        %s439 = scalar_select %p438, %s22, 1
        %s440 = smul.addr %s439, 8
        %s441 = scalar_lea.vmem %s0, %s440
      $region64: #{dispatcher_model_forward.7} parent=59 // pred_fallthru
        _
      // Predicated region
      $region65: #{dispatcher_model_forward.7} parent=59 // pred_check
        %p442 = pneg %p68
      $region66: #{dispatcher_model_forward.7} parent=59 // pred_check_branch
        %444 = sbr.rel (%p442) target = $region68
      $region67: #{dispatcher_model_forward.7} parent=59 // pred_region
        %p445 = scmp.lt.s32.totalorder %s22, 1
        %s446 = scalar_select %p445, %s22, 1
        %s447 = smul.addr %s446, 8
        %s448 = scalar_lea.vmem %s1, %s447
      $region68: #{dispatcher_model_forward.7} parent=59 // pred_fallthru
        _
    $region60: #{dispatcher_model_forward.7} parent=5 // pred_fallthru
      _
    %p449 = scmp.le.s32.totalorder 1, %s22
    %p450 = scmp.lt.s32.totalorder %s22, 3
    %p451 = pnand %p449, %p450
    %p452 = pneg %p451
    // Predicated region
    $region69: #{dispatcher_model_forward.7} parent=5 // pred_check
      _
    $region70: #{dispatcher_model_forward.7} parent=5 // pred_check_branch
      %454 = sbr.rel (%p451) target = $region72
    $region71: #{dispatcher_model_forward.7} parent=5 // pred_region
      %s455 = ssub.s32 %s22, 1
      %p456 = scmp.lt.s32.totalorder %s27, 1
      %s457 = scalar_select %p456, %s27, 1
      %s458 = smul.addr %s457, 8
      %s459 = scalar_lea.vmem %s0, %s458
      %p460 = pneg %p48
      %p461 = pneg %p45
      %p462 = scmp.lt.s32.totalorder %s27, 1
      %s463 = scalar_select %p462, %s27, 1
      %s464 = smul.addr %s463, 8
      %s465 = scalar_lea.vmem %s1, %s464
      %p466 = pneg %p74
      %p467 = pneg %p71
      %p468 = pneg %p95
      %p469 = pneg %p92
      %p470 = pneg %p116
      %p471 = pneg %p113
      %p472 = pneg %p137
      %p473 = pneg %p134
      %p474 = pneg %p158
      %p475 = pneg %p155
      %p476 = pneg %p179
      %p477 = pneg %p176
      %p478 = pneg %p200
      %p479 = pneg %p197
      %p480 = pneg %p221
      %p481 = pneg %p218
      %p482 = pneg %p242
      %p483 = pneg %p239
      %p484 = pneg %p263
      %p485 = pneg %p260
      %p486 = pneg %p284
      %p487 = pneg %p281
      %p488 = pneg %p305
      %p489 = pneg %p302
      %p490 = pneg %p331
      %p491 = pneg %p328
      %p492 = scmp.lt.s32.totalorder %s27, 1
      %s493 = scalar_select %p492, %s27, 1
      %s494 = smul.addr %s493, 8
      %s495 = scalar_lea.vmem %s13, %s494
      %p496 = pneg %p357
      %p497 = pneg %p354
      %p498 = scmp.lt.s32.totalorder %s27, 1
      %s499 = scalar_select %p498, %s27, 1
      %s500 = smul.addr %s499, 8
      %s501 = scalar_lea.vmem %s14, %s500
      %p502 = pneg %p383
      %p503 = pneg %p380
      %p504 = scmp.lt.s32.totalorder %s27, 1
      %s505 = scalar_select %p504, %s27, 1
      %s506 = smul.addr %s505, 8
      %s507 = scalar_lea.vmem %s15, %s506
      %p508 = scmp.lt.s32.totalorder %s27, 1
      %s509 = scalar_select %p508, %s27, 1
      %s510 = smul.addr %s509, 8
      %s511 = scalar_lea.vmem %s0, %s510
      %p512 = scmp.lt.s32.totalorder %s27, 1
      %s513 = scalar_select %p512, %s27, 1
      %s514 = smul.addr %s513, 8
      %s515 = scalar_lea.vmem %s1, %s514
      %p516 = scmp.lt.s32.totalorder %s27, 1
      %s517 = scalar_select %p516, %s27, 1
      %s518 = smul.addr %s517, 8
      %s519 = scalar_lea.vmem %s13, %s518
      %p520 = scmp.lt.s32.totalorder %s27, 1
      %s521 = scalar_select %p520, %s27, 1
      %s522 = smul.addr %s521, 8
      %s523 = scalar_lea.vmem %s14, %s522
      %p524 = scmp.lt.s32.totalorder %s27, 1
      %s525 = scalar_select %p524, %s27, 1
      %s526 = smul.addr %s525, 8
      %s527 = scalar_lea.vmem %s15, %s526
      %v528 = vld [vmem:[%s511] sm:$0xff]
      %v529 = vld [vmem:[%s515] sm:$0xff]
      %v530 = vld [vmem:[%s2] sm:$0xff]
      %v531 = vld [vmem:[%s2 + $0x8] sm:$0xff]
      %v532 = vld [vmem:[%s2 + $0x10] sm:$0xff]
      %v533 = vld [vmem:[%s2 + $0x18] sm:$0xff]
      %vm534 = vcmask 261120
      %v536 = vsel %vm534, %v529, 0
      %538 = vmatprep.subr.mxu0 0.0
      %539 = vmatpush1.msra.mxu0 0.0
      %540 = vmatprep.subr.mxu0 0.0
      %541 = vmatpush1.msra.mxu0 0.0
      %542 = vmatprep.subr.mxu0 0.0
      %543 = vmatpush1.msra.mxu0 0.0
      %544 = vmatprep.subr.mxu0 0.0
      %545 = vmatpush1.msra.mxu0 0.0
      %546 = vmatprep.subr.mxu0 0.0
      %547 = vmatpush1.msra.mxu0 0.0
      %548 = vmatprep.subr.mxu0 0.0
      %549 = vmatpush1.msra.mxu0 0.0
      %550 = vmatprep.subr.mxu0 0.0
      %551 = vmatpush1.msra.mxu0 0.0
      %552 = vmatprep.subr.mxu0 0.0
      %553 = vmatpush1.msra.mxu0 0.0
      %554 = vmatprep.subr.mxu0 0.0
      %555 = vmatpush1.msra.mxu0 0.0
      %556 = vmatprep.subr.mxu0 0.0
      %557 = vmatpush1.msra.mxu0 0.0
      %558 = vmatprep.subr.mxu0 0.0
      %559 = vmatpush1.msra.mxu0 0.0
      %560 = vmatprep.subr.mxu0 0.0
      %561 = vmatpush1.msra.mxu0 0.0
      %562 = vmatprep.subr.mxu0 0.0
      %563 = vmatpush1.msra.mxu0 %v533
      %564 = vmatprep.subr.mxu0 0.0
      %565 = vmatpush1.msra.mxu0 %v532
      %566 = vmatprep.subr.mxu0 0.0
      %567 = vmatpush1.msra.mxu0 %v531
      %568 = vmatprep.subr.mxu0 0.0
      %569 = vmatpush1.msra.mxu0 %v530
      %570 = vmatprep.subr.mxu0 0.0
      %571 = vmatpush2.msra.mxu0 0.0
      %572 = vmatprep.subr.mxu0 0.0
      %573 = vmatpush2.msra.mxu0 0.0
      %574 = vmatprep.subr.mxu0 0.0
      %575 = vmatpush2.msra.mxu0 0.0
      %576 = vmatprep.subr.mxu0 0.0
      %577 = vmatpush2.msra.mxu0 0.0
      %578 = vmatprep.subr.mxu0 0.0
      %579 = vmatpush2.msra.mxu0 0.0
      %580 = vmatprep.subr.mxu0 0.0
      %581 = vmatpush2.msra.mxu0 0.0
      %582 = vmatprep.subr.mxu0 0.0
      %583 = vmatpush2.msra.mxu0 0.0
      %584 = vmatprep.subr.mxu0 0.0
      %585 = vmatpush2.msra.mxu0 0.0
      %586 = vmatprep.subr.mxu0 0.0
      %587 = vmatpush2.msra.mxu0 0.0
      %588 = vmatprep.subr.mxu0 0.0
      %589 = vmatpush2.msra.mxu0 0.0
      %590 = vmatprep.subr.mxu0 0.0
      %591 = vmatpush2.msra.mxu0 0.0
      %592 = vmatprep.subr.mxu0 0.0
      %593 = vmatpush2.msra.mxu0 0.0
      %594 = vmatprep.subr.mxu0 0.0
      %595 = vmatpush2.msra.mxu0 0.0
      %596 = vmatprep.subr.mxu0 0.0
      %597 = vmatpush2.msra.mxu0 0.0
      %598 = vmatprep.subr.mxu0 0.0
      %599 = vmatpush2.msra.mxu0 0.0
      %600 = vmatprep.subr.mxu0 0.0
      %601 = vmatpush2.msra.mxu0 0.0
      %602 = vmatprep.mubr.f32.mxu0 0.0
      %603 = vmatmul.mubr.f32.gmra.mxu0 %v536
      %v604 = vpop.f32.mrf.mxu0
      %v605 = vadd.f32 0.0, %v604
      %v606 = vpop.f32.mrf.mxu0
      %607 = vdwg.mxu0
      %v608 = vadd.f32 %v528, %v605
      %v609 = vld [vmem:[%s7] sm:$0x1]
      %v610 = vld [vmem:[%s8] sm:$0x1]
      %v611 = vsel %vm534, %v608, 0.0
      %612 = vadd.xlane.f32.xlu0 %v611
      %v613 = vpop.xlane.xlu0 %612
      %v614 = vrcp.pop 32.0
      %v615 = vmul.f32 %v613, %v614
      %v616 = vsub.f32 %v608, %v615
      %v617 = vmul.f32 %v616, %v616
      %v618 = vsel %vm534, %v617, 0.0
      %619 = vadd.xlane.f32.xlu0 %v618
      %v620 = vpop.xlane.xlu0 %619
      %v621 = vmul.f32 %v620, %v614
      %v622 = vadd.f32 %v621, 1e-05
      %v623 = vrsqrt.pop %v622
      %v624 = vmul.f32 %v616, %v623
      %v626 = vlaneseq
      %v627 = vshrl.u32 %v626, 7
      %v628 = vsub.s32 0, %v627
      %v629 = vrot.slane %v609, %v628
      %v631 = vmul.f32 %v624, %v629
      %v633 = vlaneseq
      %v634 = vshrl.u32 %v633, 7
      %v635 = vsub.s32 0, %v634
      %v636 = vrot.slane %v610, %v635
      %v638 = vadd.f32 %v631, %v636
      %v639 = vld [vmem:[%s3] sm:$0xff]
      %v640 = vld [vmem:[%s3 + $0x8] sm:$0xff]
      %v641 = vld [vmem:[%s3 + $0x10] sm:$0xff]
      %v642 = vld [vmem:[%s3 + $0x18] sm:$0xff]
      %v643 = vld [vmem:[%s4] sm:$0x1]
      %v645 = vlaneseq
      %v646 = vshrl.u32 %v645, 7
      %v647 = vsub.s32 0, %v646
      %v648 = vrot.slane %v643, %v647
      %v651 = vsel %vm534, %v638, 0
      %653 = vmatprep.subr.mxu0 0.0
      %654 = vmatpush1.msra.mxu0 0.0
      %655 = vmatprep.subr.mxu0 0.0
      %656 = vmatpush1.msra.mxu0 0.0
      %657 = vmatprep.subr.mxu0 0.0
      %658 = vmatpush1.msra.mxu0 0.0
      %659 = vmatprep.subr.mxu0 0.0
      %660 = vmatpush1.msra.mxu0 0.0
      %661 = vmatprep.subr.mxu0 0.0
      %662 = vmatpush1.msra.mxu0 0.0
      %663 = vmatprep.subr.mxu0 0.0
      %664 = vmatpush1.msra.mxu0 0.0
      %665 = vmatprep.subr.mxu0 0.0
      %666 = vmatpush1.msra.mxu0 0.0
      %667 = vmatprep.subr.mxu0 0.0
      %668 = vmatpush1.msra.mxu0 0.0
      %669 = vmatprep.subr.mxu0 0.0
      %670 = vmatpush1.msra.mxu0 0.0
      %671 = vmatprep.subr.mxu0 0.0
      %672 = vmatpush1.msra.mxu0 0.0
      %673 = vmatprep.subr.mxu0 0.0
      %674 = vmatpush1.msra.mxu0 0.0
      %675 = vmatprep.subr.mxu0 0.0
      %676 = vmatpush1.msra.mxu0 0.0
      %677 = vmatprep.subr.mxu0 0.0
      %678 = vmatpush1.msra.mxu0 %v642
      %679 = vmatprep.subr.mxu0 0.0
      %680 = vmatpush1.msra.mxu0 %v641
      %681 = vmatprep.subr.mxu0 0.0
      %682 = vmatpush1.msra.mxu0 %v640
      %683 = vmatprep.subr.mxu0 0.0
      %684 = vmatpush1.msra.mxu0 %v639
      %685 = vmatprep.subr.mxu0 0.0
      %686 = vmatpush2.msra.mxu0 0.0
      %687 = vmatprep.subr.mxu0 0.0
      %688 = vmatpush2.msra.mxu0 0.0
      %689 = vmatprep.subr.mxu0 0.0
      %690 = vmatpush2.msra.mxu0 0.0
      %691 = vmatprep.subr.mxu0 0.0
      %692 = vmatpush2.msra.mxu0 0.0
      %693 = vmatprep.subr.mxu0 0.0
      %694 = vmatpush2.msra.mxu0 0.0
      %695 = vmatprep.subr.mxu0 0.0
      %696 = vmatpush2.msra.mxu0 0.0
      %697 = vmatprep.subr.mxu0 0.0
      %698 = vmatpush2.msra.mxu0 0.0
      %699 = vmatprep.subr.mxu0 0.0
      %700 = vmatpush2.msra.mxu0 0.0
      %701 = vmatprep.subr.mxu0 0.0
      %702 = vmatpush2.msra.mxu0 0.0
      %703 = vmatprep.subr.mxu0 0.0
      %704 = vmatpush2.msra.mxu0 0.0
      %705 = vmatprep.subr.mxu0 0.0
      %706 = vmatpush2.msra.mxu0 0.0
      %707 = vmatprep.subr.mxu0 0.0
      %708 = vmatpush2.msra.mxu0 0.0
      %709 = vmatprep.subr.mxu0 0.0
      %710 = vmatpush2.msra.mxu0 0.0
      %711 = vmatprep.subr.mxu0 0.0
      %712 = vmatpush2.msra.mxu0 0.0
      %713 = vmatprep.subr.mxu0 0.0
      %714 = vmatpush2.msra.mxu0 0.0
      %715 = vmatprep.subr.mxu0 0.0
      %716 = vmatpush2.msra.mxu0 0.0
      %717 = vmatprep.mubr.f32.mxu0 0.0
      %718 = vmatmul.mubr.f32.gmra.mxu0 %v651
      %v719 = vpop.f32.mrf.mxu0
      %v720 = vadd.f32 %v648, %v719
      %v721 = vpop.f32.mrf.mxu0
      %722 = vdwg.mxu0
      %v723 = vmax.f32 %v720, 0.0
      %v724 = vld [vmem:[%s5] sm:$0xff]
      %v725 = vld [vmem:[%s5 + $0x8] sm:$0xff]
      %v726 = vld [vmem:[%s5 + $0x10] sm:$0xff]
      %v727 = vld [vmem:[%s5 + $0x18] sm:$0xff]
      %v728 = vld [vmem:[%s5 + $0x20] sm:$0xff]
      %v729 = vld [vmem:[%s5 + $0x28] sm:$0xff]
      %v730 = vld [vmem:[%s5 + $0x30] sm:$0xff]
      %v731 = vld [vmem:[%s5 + $0x38] sm:$0xff]
      %v732 = vld [vmem:[%s6] sm:$0x1]
      %v734 = vlaneseq
      %v735 = vshrl.u32 %v734, 7
      %v736 = vsub.s32 0, %v735
      %v737 = vrot.slane %v732, %v736
      %vm739 = vcmask 523264
      %v741 = vsel %vm739, %v723, 0
      %743 = vmatprep.subr.mxu0 0.0
      %744 = vmatpush1.msra.mxu0 0.0
      %745 = vmatprep.subr.mxu0 0.0
      %746 = vmatpush1.msra.mxu0 0.0
      %747 = vmatprep.subr.mxu0 0.0
      %748 = vmatpush1.msra.mxu0 0.0
      %749 = vmatprep.subr.mxu0 0.0
      %750 = vmatpush1.msra.mxu0 0.0
      %751 = vmatprep.subr.mxu0 0.0
      %752 = vmatpush1.msra.mxu0 0.0
      %753 = vmatprep.subr.mxu0 0.0
      %754 = vmatpush1.msra.mxu0 0.0
      %755 = vmatprep.subr.mxu0 0.0
      %756 = vmatpush1.msra.mxu0 0.0
      %757 = vmatprep.subr.mxu0 0.0
      %758 = vmatpush1.msra.mxu0 0.0
      %759 = vmatprep.subr.mxu0 0.0
      %760 = vmatpush1.msra.mxu0 %v731
      %761 = vmatprep.subr.mxu0 0.0
      %762 = vmatpush1.msra.mxu0 %v730
      %763 = vmatprep.subr.mxu0 0.0
      %764 = vmatpush1.msra.mxu0 %v729
      %765 = vmatprep.subr.mxu0 0.0
      %766 = vmatpush1.msra.mxu0 %v728
      %767 = vmatprep.subr.mxu0 0.0
      %768 = vmatpush1.msra.mxu0 %v727
      %769 = vmatprep.subr.mxu0 0.0
      %770 = vmatpush1.msra.mxu0 %v726
      %771 = vmatprep.subr.mxu0 0.0
      %772 = vmatpush1.msra.mxu0 %v725
      %773 = vmatprep.subr.mxu0 0.0
      %774 = vmatpush1.msra.mxu0 %v724
      %775 = vmatprep.subr.mxu0 0.0
      %776 = vmatpush2.msra.mxu0 0.0
      %777 = vmatprep.subr.mxu0 0.0
      %778 = vmatpush2.msra.mxu0 0.0
      %779 = vmatprep.subr.mxu0 0.0
      %780 = vmatpush2.msra.mxu0 0.0
      %781 = vmatprep.subr.mxu0 0.0
      %782 = vmatpush2.msra.mxu0 0.0
      %783 = vmatprep.subr.mxu0 0.0
      %784 = vmatpush2.msra.mxu0 0.0
      %785 = vmatprep.subr.mxu0 0.0
      %786 = vmatpush2.msra.mxu0 0.0
      %787 = vmatprep.subr.mxu0 0.0
      %788 = vmatpush2.msra.mxu0 0.0
      %789 = vmatprep.subr.mxu0 0.0
      %790 = vmatpush2.msra.mxu0 0.0
      %791 = vmatprep.subr.mxu0 0.0
      %792 = vmatpush2.msra.mxu0 0.0
      %793 = vmatprep.subr.mxu0 0.0
      %794 = vmatpush2.msra.mxu0 0.0
      %795 = vmatprep.subr.mxu0 0.0
      %796 = vmatpush2.msra.mxu0 0.0
      %797 = vmatprep.subr.mxu0 0.0
      %798 = vmatpush2.msra.mxu0 0.0
      %799 = vmatprep.subr.mxu0 0.0
      %800 = vmatpush2.msra.mxu0 0.0
      %801 = vmatprep.subr.mxu0 0.0
      %802 = vmatpush2.msra.mxu0 0.0
      %803 = vmatprep.subr.mxu0 0.0
      %804 = vmatpush2.msra.mxu0 0.0
      %805 = vmatprep.subr.mxu0 0.0
      %806 = vmatpush2.msra.mxu0 0.0
      %807 = vmatprep.mubr.f32.mxu0 0.0
      %808 = vmatmul.mubr.f32.gmra.mxu0 %v741
      %v809 = vpop.f32.mrf.mxu0
      %v810 = vadd.f32 %v737, %v809
      %v811 = vpop.f32.mrf.mxu0
      %812 = vdwg.mxu0
      %v813 = vadd.f32 %v638, %v810
      %v814 = vld [vmem:[%s9] sm:$0x1]
      %v815 = vld [vmem:[%s10] sm:$0x1]
      %v816 = vsel %vm534, %v813, 0.0
      %817 = vadd.xlane.f32.xlu0 %v816
      %v818 = vpop.xlane.xlu0 %817
      %v819 = vmul.f32 %v818, %v614
      %v820 = vsub.f32 %v813, %v819
      %v821 = vmul.f32 %v820, %v820
      %v822 = vsel %vm534, %v821, 0.0
      %823 = vadd.xlane.f32.xlu0 %v822
      %v824 = vpop.xlane.xlu0 %823
      %v825 = vmul.f32 %v824, %v614
      %v826 = vadd.f32 %v825, 1e-05
      %v827 = vrsqrt.pop %v826
      %v828 = vmul.f32 %v820, %v827
      %v830 = vlaneseq
      %v831 = vshrl.u32 %v830, 7
      %v832 = vsub.s32 0, %v831
      %v833 = vrot.slane %v814, %v832
      %v835 = vmul.f32 %v828, %v833
      %v837 = vlaneseq
      %v838 = vshrl.u32 %v837, 7
      %v839 = vsub.s32 0, %v838
      %v840 = vrot.slane %v815, %v839
      %v842 = vadd.f32 %v835, %v840
      %843 = vst.msk [vmem:[%s519] sm:$0xff] %vm534, %v842
      %v844 = vld [vmem:[%s11] sm:$0xff]
      %v845 = vld [vmem:[%s11 + $0x8] sm:$0xff]
      %v846 = vld [vmem:[%s11 + $0x10] sm:$0xff]
      %v847 = vld [vmem:[%s11 + $0x18] sm:$0xff]
      %v849 = vsel %vm534, %v842, 0
      %851 = vmatprep.subr.mxu0 0.0
      %852 = vmatpush1.msra.mxu0 0.0
      %853 = vmatprep.subr.mxu0 0.0
      %854 = vmatpush1.msra.mxu0 0.0
      %855 = vmatprep.subr.mxu0 0.0
      %856 = vmatpush1.msra.mxu0 0.0
      %857 = vmatprep.subr.mxu0 0.0
      %858 = vmatpush1.msra.mxu0 0.0
      %859 = vmatprep.subr.mxu0 0.0
      %860 = vmatpush1.msra.mxu0 0.0
      %861 = vmatprep.subr.mxu0 0.0
      %862 = vmatpush1.msra.mxu0 0.0
      %863 = vmatprep.subr.mxu0 0.0
      %864 = vmatpush1.msra.mxu0 0.0
      %865 = vmatprep.subr.mxu0 0.0
      %866 = vmatpush1.msra.mxu0 0.0
      %867 = vmatprep.subr.mxu0 0.0
      %868 = vmatpush1.msra.mxu0 0.0
      %869 = vmatprep.subr.mxu0 0.0
      %870 = vmatpush1.msra.mxu0 0.0
      %871 = vmatprep.subr.mxu0 0.0
      %872 = vmatpush1.msra.mxu0 0.0
      %873 = vmatprep.subr.mxu0 0.0
      %874 = vmatpush1.msra.mxu0 0.0
      %875 = vmatprep.subr.mxu0 0.0
      %876 = vmatpush1.msra.mxu0 %v847
      %877 = vmatprep.subr.mxu0 0.0
      %878 = vmatpush1.msra.mxu0 %v846
      %879 = vmatprep.subr.mxu0 0.0
      %880 = vmatpush1.msra.mxu0 %v845
      %881 = vmatprep.subr.mxu0 0.0
      %882 = vmatpush1.msra.mxu0 %v844
      %883 = vmatprep.subr.mxu0 0.0
      %884 = vmatpush2.msra.mxu0 0.0
      %885 = vmatprep.subr.mxu0 0.0
      %886 = vmatpush2.msra.mxu0 0.0
      %887 = vmatprep.subr.mxu0 0.0
      %888 = vmatpush2.msra.mxu0 0.0
      %889 = vmatprep.subr.mxu0 0.0
      %890 = vmatpush2.msra.mxu0 0.0
      %891 = vmatprep.subr.mxu0 0.0
      %892 = vmatpush2.msra.mxu0 0.0
      %893 = vmatprep.subr.mxu0 0.0
      %894 = vmatpush2.msra.mxu0 0.0
      %895 = vmatprep.subr.mxu0 0.0
      %896 = vmatpush2.msra.mxu0 0.0
      %897 = vmatprep.subr.mxu0 0.0
      %898 = vmatpush2.msra.mxu0 0.0
      %899 = vmatprep.subr.mxu0 0.0
      %900 = vmatpush2.msra.mxu0 0.0
      %901 = vmatprep.subr.mxu0 0.0
      %902 = vmatpush2.msra.mxu0 0.0
      %903 = vmatprep.subr.mxu0 0.0
      %904 = vmatpush2.msra.mxu0 0.0
      %905 = vmatprep.subr.mxu0 0.0
      %906 = vmatpush2.msra.mxu0 0.0
      %907 = vmatprep.subr.mxu0 0.0
      %908 = vmatpush2.msra.mxu0 0.0
      %909 = vmatprep.subr.mxu0 0.0
      %910 = vmatpush2.msra.mxu0 0.0
      %911 = vmatprep.subr.mxu0 0.0
      %912 = vmatpush2.msra.mxu0 0.0
      %913 = vmatprep.subr.mxu0 0.0
      %914 = vmatpush2.msra.mxu0 0.0
      %915 = vmatprep.mubr.f32.mxu0 0.0
      %916 = vmatmul.mubr.f32.gmra.mxu0 %v849
      %v917 = vpop.f32.mrf.mxu0
      %v918 = vadd.f32 0.0, %v917
      %v919 = vpop.f32.mrf.mxu0
      %920 = vdwg.mxu0
      %921 = vst.msk [vmem:[%s523] sm:$0xff] %vm534, %v918
      %v922 = vld [vmem:[%s12] sm:$0xff]
      %v923 = vld [vmem:[%s12 + $0x8] sm:$0xff]
      %v924 = vld [vmem:[%s12 + $0x10] sm:$0xff]
      %v925 = vld [vmem:[%s12 + $0x18] sm:$0xff]
      %926 = vmatprep.subr.mxu0 0.0
      %927 = vmatpush1.msra.mxu0 0.0
      %928 = vmatprep.subr.mxu0 0.0
      %929 = vmatpush1.msra.mxu0 0.0
      %930 = vmatprep.subr.mxu0 0.0
      %931 = vmatpush1.msra.mxu0 0.0
      %932 = vmatprep.subr.mxu0 0.0
      %933 = vmatpush1.msra.mxu0 0.0
      %934 = vmatprep.subr.mxu0 0.0
      %935 = vmatpush1.msra.mxu0 0.0
      %936 = vmatprep.subr.mxu0 0.0
      %937 = vmatpush1.msra.mxu0 0.0
      %938 = vmatprep.subr.mxu0 0.0
      %939 = vmatpush1.msra.mxu0 0.0
      %940 = vmatprep.subr.mxu0 0.0
      %941 = vmatpush1.msra.mxu0 0.0
      %942 = vmatprep.subr.mxu0 0.0
      %943 = vmatpush1.msra.mxu0 0.0
      %944 = vmatprep.subr.mxu0 0.0
      %945 = vmatpush1.msra.mxu0 0.0
      %946 = vmatprep.subr.mxu0 0.0
      %947 = vmatpush1.msra.mxu0 0.0
      %948 = vmatprep.subr.mxu0 0.0
      %949 = vmatpush1.msra.mxu0 0.0
      %950 = vmatprep.subr.mxu0 0.0
      %951 = vmatpush1.msra.mxu0 %v925
      %952 = vmatprep.subr.mxu0 0.0
      %953 = vmatpush1.msra.mxu0 %v924
      %954 = vmatprep.subr.mxu0 0.0
      %955 = vmatpush1.msra.mxu0 %v923
      %956 = vmatprep.subr.mxu0 0.0
      %957 = vmatpush1.msra.mxu0 %v922
      %958 = vmatprep.subr.mxu0 0.0
      %959 = vmatpush2.msra.mxu0 0.0
      %960 = vmatprep.subr.mxu0 0.0
      %961 = vmatpush2.msra.mxu0 0.0
      %962 = vmatprep.subr.mxu0 0.0
      %963 = vmatpush2.msra.mxu0 0.0
      %964 = vmatprep.subr.mxu0 0.0
      %965 = vmatpush2.msra.mxu0 0.0
      %966 = vmatprep.subr.mxu0 0.0
      %967 = vmatpush2.msra.mxu0 0.0
      %968 = vmatprep.subr.mxu0 0.0
      %969 = vmatpush2.msra.mxu0 0.0
      %970 = vmatprep.subr.mxu0 0.0
      %971 = vmatpush2.msra.mxu0 0.0
      %972 = vmatprep.subr.mxu0 0.0
      %973 = vmatpush2.msra.mxu0 0.0
      %974 = vmatprep.subr.mxu0 0.0
      %975 = vmatpush2.msra.mxu0 0.0
      %976 = vmatprep.subr.mxu0 0.0
      %977 = vmatpush2.msra.mxu0 0.0
      %978 = vmatprep.subr.mxu0 0.0
      %979 = vmatpush2.msra.mxu0 0.0
      %980 = vmatprep.subr.mxu0 0.0
      %981 = vmatpush2.msra.mxu0 0.0
      %982 = vmatprep.subr.mxu0 0.0
      %983 = vmatpush2.msra.mxu0 0.0
      %984 = vmatprep.subr.mxu0 0.0
      %985 = vmatpush2.msra.mxu0 0.0
      %986 = vmatprep.subr.mxu0 0.0
      %987 = vmatpush2.msra.mxu0 0.0
      %988 = vmatprep.subr.mxu0 0.0
      %989 = vmatpush2.msra.mxu0 0.0
      %990 = vmatprep.mubr.f32.mxu0 0.0
      %991 = vmatmul.mubr.f32.gmra.mxu0 %v849
      %v992 = vpop.f32.mrf.mxu0
      %v993 = vadd.f32 0.0, %v992
      %v994 = vpop.f32.mrf.mxu0
      %995 = vdwg.mxu0
      %vm996 = vcmask 97280
      %997 = vst.msk [vmem:[%s527] sm:$0xff] %vm996, %v993
      %p998 = scmp.lt.s32.totalorder %s27, 1
      %s999 = scalar_select %p998, %s27, 1
      %s1000 = smul.addr %s999, 8
      %s1001 = scalar_lea.vmem %s13, %s1000
      %p1002 = scmp.lt.s32.totalorder %s27, 1
      %s1003 = scalar_select %p1002, %s27, 1
      %s1004 = smul.addr %s1003, 8
      %s1005 = scalar_lea.vmem %s14, %s1004
      %p1006 = scmp.lt.s32.totalorder %s27, 1
      %s1007 = scalar_select %p1006, %s27, 1
      %s1008 = smul.addr %s1007, 8
      %s1009 = scalar_lea.vmem %s15, %s1008
      // Predicated region
      $region73: #{dispatcher_model_forward.7} parent=71 // pred_check
        %p1010 = pneg %p328
      $region74: #{dispatcher_model_forward.7} parent=71 // pred_check_branch
        %1012 = sbr.rel (%p1010) target = $region76
      $region75: #{dispatcher_model_forward.7} parent=71 // pred_region
        _
      $region76: #{dispatcher_model_forward.7} parent=71 // pred_fallthru
        _
      // Predicated region
      $region77: #{dispatcher_model_forward.7} parent=71 // pred_check
        %p1013 = pneg %p354
      $region78: #{dispatcher_model_forward.7} parent=71 // pred_check_branch
        %1015 = sbr.rel (%p1013) target = $region80
      $region79: #{dispatcher_model_forward.7} parent=71 // pred_region
        _
      $region80: #{dispatcher_model_forward.7} parent=71 // pred_fallthru
        _
      // Predicated region
      $region81: #{dispatcher_model_forward.7} parent=71 // pred_check
        %p1016 = pneg %p380
      $region82: #{dispatcher_model_forward.7} parent=71 // pred_check_branch
        %1018 = sbr.rel (%p1016) target = $region84
      $region83: #{dispatcher_model_forward.7} parent=71 // pred_region
        _
      $region84: #{dispatcher_model_forward.7} parent=71 // pred_fallthru
        _
    $region72: #{dispatcher_model_forward.7} parent=5 // pred_fallthru
      _
    %p1019 = scmp.le.s32.totalorder 2, %s22
    // Predicated region
    $region85: #{dispatcher_model_forward.7} parent=5 // pred_check
      %p1020 = pneg %p1019
    $region86: #{dispatcher_model_forward.7} parent=5 // pred_check_branch
      %1022 = sbr.rel (%p1020) target = $region88
    $region87: #{dispatcher_model_forward.7} parent=5 // pred_region
      %s1023 = ssub.s32 %s22, 2
      // Predicated region
      $region89: #{dispatcher_model_forward.7} parent=87 // pred_check
        %p1024 = pneg %p334
      $region90: #{dispatcher_model_forward.7} parent=87 // pred_check_branch
        %1026 = sbr.rel (%p1024) target = $region92
      $region91: #{dispatcher_model_forward.7} parent=87 // pred_region
        %p1027 = scmp.lt.s32.totalorder %s28, 1
        %s1028 = scalar_select %p1027, %s28, 1
        %s1029 = smul.addr %s1028, 8
        %s1030 = scalar_lea.vmem %s13, %s1029
      $region92: #{dispatcher_model_forward.7} parent=87 // pred_fallthru
        _
      // Predicated region
      $region93: #{dispatcher_model_forward.7} parent=87 // pred_check
        %p1031 = pneg %p360
      $region94: #{dispatcher_model_forward.7} parent=87 // pred_check_branch
        %1033 = sbr.rel (%p1031) target = $region96
      $region95: #{dispatcher_model_forward.7} parent=87 // pred_region
        %p1034 = scmp.lt.s32.totalorder %s28, 1
        %s1035 = scalar_select %p1034, %s28, 1
        %s1036 = smul.addr %s1035, 8
        %s1037 = scalar_lea.vmem %s14, %s1036
      $region96: #{dispatcher_model_forward.7} parent=87 // pred_fallthru
        _
      // Predicated region
      $region97: #{dispatcher_model_forward.7} parent=87 // pred_check
        %p1038 = pneg %p386
      $region98: #{dispatcher_model_forward.7} parent=87 // pred_check_branch
        %1040 = sbr.rel (%p1038) target = $region100
      $region99: #{dispatcher_model_forward.7} parent=87 // pred_region
        %p1041 = scmp.lt.s32.totalorder %s28, 1
        %s1042 = scalar_select %p1041, %s28, 1
        %s1043 = smul.addr %s1042, 8
        %s1044 = scalar_lea.vmem %s15, %s1043
      $region100: #{dispatcher_model_forward.7} parent=87 // pred_fallthru
        _
    $region88: #{dispatcher_model_forward.7} parent=5 // pred_fallthru
      _
  $region6: #{dispatcher_model_forward.7} parent=0 // loop_footer
    %s26 = sadd.s32 1, %s22
  $region7: #{dispatcher_model_forward.7} parent=0 // loop_footer_branch
    %21 = sbr.rel target = $region3
  $region8: #{dispatcher_model_forward.7} parent=0 // loop_exit
    _

</llo_original>
